<compile_context>
chip_gen: v5e
topology: v5e:2x2
jax: 0.10.0
libtpu: 0.0.40
codegen_flags: <defaults>
</compile_context>

<pallas_src>
import functools

import jax
import jax.numpy as jnp
from jax import lax
from jax.experimental import pallas as pl
from jax.experimental.pallas import tpu as pltpu


def _pick_tile(dim, candidates):
    """Largest candidate that evenly divides `dim`, else the full dim."""
    for c in candidates:
        if dim % c == 0:
            return c
    return dim


# --------------------- tiled matmul + bias (hoisted output projection) ----------------


def _matmul_bias_kernel(x_ref, w_ref, b_ref, o_ref):
    acc = jnp.dot(x_ref[...], w_ref[...], preferred_element_type=jnp.float32)
    o_ref[...] = (acc + b_ref[...].astype(jnp.float32)).astype(o_ref.dtype)


def matmul_bias(x, w, b, *, out_dtype=jnp.float32,
                vmem_limit_bytes=48 * 1024 * 1024):
    """out = x @ w + b, tiled over rows (M) and columns (N); K kept whole.

    The grid is ordered so the LARGER operand stays VMEM-resident across the inner
    grid axis (for the vocab projection the (H, V) weight >> activations, so the
    vocab axis is outer and each weight column-block is fetched from HBM once).
    Tiles are chosen as large as the VMEM budget allows, preferring tall row tiles
    (tm), which divides the number of redundant weight re-reads.
    """
    M, K = x.shape
    _, N = w.shape
    xb = jnp.dtype(x.dtype).itemsize
    wb = jnp.dtype(w.dtype).itemsize
    ob = jnp.dtype(out_dtype).itemsize
    budget = int(vmem_limit_bytes * 0.8)

    def fits(tm, tn):
        # double-buffered inputs + double-buffered output (conservative).
        return (2 * (tm * K * xb + K * tn * wb + tn * 4)
                + 2 * tm * tn * ob) <= budget

    tn = _pick_tile(N, (1024, 512, 256, 128))
    while (not fits(8, tn) and tn > 128 and tn % 2 == 0
           and N % (tn // 2) == 0):
        tn //= 2
    tm = None
    for cand in (2048, 1024, 512, 256, 128, 64, 32, 16, 8):
        if M % cand == 0 and fits(cand, tn):
            tm = cand
            break
    if tm is None:
        # NOTE: falls back to the full dim if nothing divides (review caveat).
        tm = _pick_tile(M, (256, 128, 64, 32, 16, 8))

    weight_resident = K * N * wb >= M * K * xb
    if weight_resident:
        # vocab (N) outer, rows inner -> weight column-block fetched once.
        grid = (N // tn, M // tm)
        in_specs = [
            pl.BlockSpec((tm, K), lambda j, i: (i, 0)),
            pl.BlockSpec((K, tn), lambda j, i: (0, j)),
            pl.BlockSpec((1, tn), lambda j, i: (0, j)),
        ]
        out_specs = pl.BlockSpec((tm, tn), lambda j, i: (i, j))
    else:
        grid = (M // tm, N // tn)
        in_specs = [
            pl.BlockSpec((tm, K), lambda i, j: (i, 0)),
            pl.BlockSpec((K, tn), lambda i, j: (0, j)),
            pl.BlockSpec((1, tn), lambda i, j: (0, j)),
        ]
        out_specs = pl.BlockSpec((tm, tn), lambda i, j: (i, j))

    return pl.pallas_call(
        _matmul_bias_kernel,
        out_shape=jax.ShapeDtypeStruct((M, N), out_dtype),
        grid_spec=pltpu.PrefetchScalarGridSpec(
            num_scalar_prefetch=0,
            grid=grid,
            in_specs=in_specs,
            out_specs=out_specs,
        ),
        compiler_params=pltpu.CompilerParams(
            dimension_semantics=("parallel", "parallel"),
            vmem_limit_bytes=vmem_limit_bytes),
    )(x, w, b)


# ------------------------------ recurrence kernel -------------------------------------


def _rnn_recurrence_kernel(xe_ref, h0_ref, bh_ref, wx0_hbm, wh_hbm, *rest,
                           num_layers, ts, unroll):
    """One grid step == TS time steps of the stacked RNN for one batch block.

    xe_ref : (TS, BB, E)  embedded tokens (compute dtype)
    h0_ref : (L, BB, H)   initial hidden states (f32, aliased with hout)
    bh_ref : (L, 1, H)    recurrent biases (f32)
    wx0_hbm/wh_hbm/(wxr_hbm): stationary weights in HBM (pl.ANY) - copied once
    htop_ref: (TS, BB, H) top-layer hidden per step (compute dtype)
    hout_ref: (L, BB, H)  final hidden states (f32)
    wx0_v/wh_v/(wxr_v): single-buffered VMEM copies of the weights
    h_scratch: (L, BB, H) f32 carried hidden state
    xp_scratch: (TS, BB, H) f32 fused layer-0 input projection for this block
    """
    if num_layers > 1:
        (wxr_hbm, htop_ref, hout_ref, wx0_v, wh_v, wxr_v,
         h_scratch, xp_scratch, dma_sem) = rest
    else:
        wxr_hbm = wxr_v = None
        (htop_ref, hout_ref, wx0_v, wh_v,
         h_scratch, xp_scratch, dma_sem) = rest

    _, bb, hdim = h_scratch.shape
    cdtype = wh_v.dtype          # matmul operand dtype; accumulation is f32
    t = pl.program_id(1)

    @pl.when(t == 0)
    def _init():
        # One-time (per batch block) HBM -> VMEM copy of the stationary weights:
        # single-buffered residency (no 2x pipeline copy), no per-step HBM traffic.
        def copy(src, dst):
            cp = pltpu.make_async_copy(src, dst, dma_sem)
            cp.start()
            cp.wait()
        copy(wx0_hbm, wx0_v)
        copy(wh_hbm, wh_v)
        if wxr_hbm is not None:
            copy(wxr_hbm, wxr_v)
        h_scratch[...] = h0_ref[...].astype(jnp.float32)

    # Fused layer-0 input projection for the whole time block: one decently-shaped
    # (ts*BB, E) @ (E, H) MXU matmul; the layer-0 recurrent bias is folded in here
    # (one broadcast per block instead of one per time step).
    xe = xe_ref[...]
    e = xe.shape[-1]
    xp = jnp.dot(xe.reshape(ts * bb, e), wx0_v[...],
                 preferred_element_type=jnp.float32)
    xp = xp + bh_ref[0].astype(jnp.float32)
    xp_scratch[...] = xp.reshape(ts, bb, hdim)

    # Hoist weight / bias loads and broadcasts out of the unrolled time loop.
    w_h = [wh_v[l] for l in range(num_layers)]
    w_x = [wxr_v[l - 1] for l in range(1, num_layers)]
    bias = [jnp.broadcast_to(bh_ref[l].astype(jnp.float32), (bb, hdim))
            for l in range(1, num_layers)]

    def step(s, carry):
        # Layer 0: only the HxH recurrent matmul remains on the per-step path.
        h = jnp.tanh(
            xp_scratch[s]
            + jnp.dot(h_scratch[0].astype(cdtype), w_h[0],
                      preferred_element_type=jnp.float32))
        h_scratch[0] = h
        x = h.astype(cdtype)
        # Layers 1..L-1 depend on the same-time-step output of the layer below.
        for l in range(1, num_layers):
            h = jnp.tanh(
                jnp.dot(x, w_x[l - 1], preferred_element_type=jnp.float32)
                + jnp.dot(h_scratch[l].astype(cdtype), w_h[l],
                          preferred_element_type=jnp.float32)
                + bias[l - 1])
            h_scratch[l] = h
            x = h.astype(cdtype)
        htop_ref[s] = h.astype(htop_ref.dtype)
        return carry

    lax.fori_loop(0, ts, step, 0, unroll=unroll)

    @pl.when(t == pl.num_programs(1) - 1)
    def _final():
        hout_ref[...] = h_scratch[...].astype(hout_ref.dtype)


def _rnn_recurrence(x_embd, h0, wx0, wh, bh, wxr, *, num_layers,
                    time_tile=None, num_tensorcores=1,
                    vmem_limit_bytes=48 * 1024 * 1024):
    S, B, E = x_embd.shape
    L, _, H = h0.shape
    compute_dtype = wh.dtype

    if time_tile is not None and S % time_tile == 0:
        ts = time_tile
    else:
        ts = _pick_tile(S, (128, 64, 32, 16, 8, 4, 2))
    nt = S // ts
    # Fully unroll short time blocks; cap the unroll factor for long ones so the
    # unrolled body does not spill vregs (prefer capping unroll over shrinking ts).
    unroll = True if ts <= 16 else 8

    # Batch split across TensorCores only when the chip actually has 2 TCs (v7x).
    # On v5e/v6e the 'parallel' axis is just a sequential loop: splitting would
    # halve the MXU LHS rows and double per-grid-step overhead for no gain.
    nb = 2 if (num_tensorcores >= 2 and B % 16 == 0) else 1
    bb = B // nb

    kernel = functools.partial(_rnn_recurrence_kernel, num_layers=L, ts=ts,
                               unroll=unroll)

    in_specs = [
        pl.BlockSpec((ts, bb, E), lambda b, t: (t, b, 0)),   # embedded tokens
        pl.BlockSpec((L, bb, H), lambda b, t: (0, b, 0)),    # h0 (aliased with hout)
        pl.BlockSpec((L, 1, H), lambda b, t: (0, 0, 0)),     # recurrent biases
        pl.BlockSpec(memory_space=pl.ANY),                   # wx0: manual single copy
        pl.BlockSpec(memory_space=pl.ANY),                   # wh : manual single copy
    ]
    args = [x_embd, h0, bh, wx0, wh]
    if L > 1:
        in_specs.append(pl.BlockSpec(memory_space=pl.ANY))   # wxr: manual single copy
        args.append(wxr)

    out_specs = [
        pl.BlockSpec((ts, bb, H), lambda b, t: (t, b, 0)),   # top-layer hidden
        pl.BlockSpec((L, bb, H), lambda b, t: (0, b, 0)),    # final hidden
    ]

    scratch_shapes = [
        pltpu.VMEM((E, H), compute_dtype),      # wx0, single-buffered resident copy
        pltpu.VMEM((L, H, H), compute_dtype),   # wh,  single-buffered resident copy
    ]
    if L > 1:
        scratch_shapes.append(pltpu.VMEM((L - 1, H, H), compute_dtype))
    scratch_shapes += [
        pltpu.VMEM((L, bb, H), jnp.float32),    # carried hidden state
        pltpu.VMEM((ts, bb, H), jnp.float32),   # fused input projection (per block)
        pltpu.SemaphoreType.DMA,                # weight-copy DMA semaphore
    ]

    htop, hout = pl.pallas_call(
        kernel,
        out_shape=(
            jax.ShapeDtypeStruct((S, B, H), compute_dtype),
            jax.ShapeDtypeStruct((L, B, H), jnp.float32),
        ),
        grid_spec=pltpu.PrefetchScalarGridSpec(
            num_scalar_prefetch=0,
            grid=(nb, nt),
            in_specs=in_specs,
            out_specs=out_specs,
            scratch_shapes=scratch_shapes,
        ),
        compiler_params=pltpu.CompilerParams(
            dimension_semantics=("parallel", "arbitrary"),
            vmem_limit_bytes=vmem_limit_bytes),
        # Valid because the time axis is innermost: the hout block is fully written
        # before its block index changes.
        input_output_aliases={1: 1},
    )(*args)
    return htop, hout


# ------------------------------- Python wrapper ----------------------------------------


def rnn_forward(tokens, hidden, params, *, num_layers,
                compute_dtype=jnp.float32, logits_dtype=jnp.float32,
                time_tile=None, num_tensorcores=1,
                vmem_limit_bytes=48 * 1024 * 1024):
    """tokens: (S, B) int32; hidden: (L, B, H) f32.

    Returns (logits (S, B, V) logits_dtype, hidden_out (L, B, H) f32).
    Production path on v6e/v7x: compute_dtype=bf16, logits_dtype=bf16,
    num_tensorcores=2 on v7x; raise vmem_limit_bytes on v5e/v6e (128 MiB physical).
    """
    emb = params["embeddings"]                       # (V, E)
    wx0 = params["wx0"].astype(compute_dtype)        # (E, H)
    wh = params["wh"].astype(compute_dtype)          # (L, H, H)
    bh = params["bh"].astype(jnp.float32)            # (L, 1, H)
    wout = params["wout"].astype(compute_dtype)      # (H, V)
    bout = params["bout"].astype(jnp.float32)        # (1, V)
    wxr = params["wxr"]                              # (L-1, H, H) or None

    S, B = tokens.shape
    L, _, H = hidden.shape
    V, E = emb.shape

    # Glue: embedding gather stays in plain JAX.
    x_embd = jnp.take(emb, tokens, axis=0).astype(compute_dtype)      # (S, B, E)

    wxr_c = None if (num_layers == 1 or wxr is None) else wxr.astype(compute_dtype)

    # Recurrence kernel (layer-0 input projection fused inside; only HxH matmuls on
    # the per-time-step path).
    htop, hidden_out = _rnn_recurrence(
        x_embd, hidden.astype(jnp.float32), wx0, wh, bh, wxr_c,
        num_layers=num_layers, time_tile=time_tile,
        num_tensorcores=num_tensorcores, vmem_limit_bytes=vmem_limit_bytes)

    # Hoisted output projection: one (S*B, H) @ (H, V) matmul, the (H, V) weight
    # kept resident across the inner grid axis.  (dropout == identity in eval mode)
    logits = matmul_bias(htop.reshape(S * B, H), wout, bout,
                         out_dtype=logits_dtype,
                         vmem_limit_bytes=vmem_limit_bytes).reshape(S, B, V)
    return logits, hidden_out


# ------------------------------- Parameter init ----------------------------------------


def init_params(key, *, emb_size, hidden_size, vocab_size, num_layers):
    """Init matching the PyTorch module's init_weights_uniform (weights stored transposed)."""
    k = (1.0 / hidden_size) ** 0.5
    keys = jax.random.split(key, 7)
    emb = jax.random.uniform(keys[0], (vocab_size, emb_size),
                             minval=-0.1, maxval=0.1, dtype=jnp.float32)
    wx0 = jax.random.uniform(keys[1], (emb_size, hidden_size),
                             minval=-k, maxval=k, dtype=jnp.float32)
    wxr = None
    if num_layers > 1:
        wxr = jax.random.uniform(keys[2], (num_layers - 1, hidden_size, hidden_size),
                                 minval=-k, maxval=k, dtype=jnp.float32)
    wh = jax.random.uniform(keys[3], (num_layers, hidden_size, hidden_size),
                            minval=-k, maxval=k, dtype=jnp.float32)
    bh = jax.random.uniform(keys[4], (num_layers, 1, hidden_size),
                            minval=-k, maxval=k, dtype=jnp.float32)
    wout = jax.random.uniform(keys[5], (hidden_size, vocab_size),
                              minval=-0.1, maxval=0.1, dtype=jnp.float32)
    bout = jax.random.uniform(keys[6], (1, vocab_size),
                              minval=-0.1, maxval=0.1, dtype=jnp.float32)
    return dict(embeddings=emb, wx0=wx0, wxr=wxr, wh=wh, bh=bh,
                wout=wout, bout=bout)


# ------------------------------- Pure-JAX reference ------------------------------------


def rnn_forward_ref(tokens, hidden, params, *, num_layers):
    hp = lax.Precision.HIGHEST
    emb = params["embeddings"]
    x_embd = jnp.take(emb, tokens, axis=0)
    S, _ = tokens.shape
    logits = []
    h = hidden
    for t in range(S):
        x = x_embd[t]
        new_h = []
        for l in range(num_layers):
            wx = params["wx0"] if l == 0 else params["wxr"][l - 1]
            hn = jnp.tanh(jnp.dot(x, wx, precision=hp)
                          + jnp.dot(h[l], params["wh"][l], precision=hp)
                          + params["bh"][l])
            new_h.append(hn)
            x = hn
        h = jnp.stack(new_h)
        logits.append(jnp.dot(x, params["wout"], precision=hp) + params["bout"])
    return jnp.stack(logits), h


# ------------------------------------- main ---------------------------------------------


if __name__ == "__main__":
    fwd = jax.jit(rnn_forward,
                  static_argnames=("num_layers", "compute_dtype", "logits_dtype",
                                   "time_tile", "num_tensorcores",
                                   "vmem_limit_bytes"))

    def run_case(emb_size, hidden_size, seq_len, batch_size, vocab_size,
                 num_layers, seed, check_bf16=False, check_two_cores=False):
        key = jax.random.PRNGKey(seed)
        pkey, tkey = jax.random.split(key)
        params = init_params(pkey, emb_size=emb_size, hidden_size=hidden_size,
                             vocab_size=vocab_size, num_layers=num_layers)
        tokens = jax.random.randint(tkey, (seq_len, batch_size), 0, vocab_size,
                                    dtype=jnp.int32)
        hidden0 = jnp.zeros((num_layers, batch_size, hidden_size), jnp.float32)

        logits_ref, hidden_ref = rnn_forward_ref(tokens, hidden0, params,
                                                 num_layers=num_layers)

        # f32 path: correctness check against the pure-JAX reference.
        logits, hidden_out = fwd(tokens, hidden0, params, num_layers=num_layers)
        logits = jax.block_until_ready(logits)
        hidden_out = jax.block_until_ready(hidden_out)
        assert logits.shape == (seq_len, batch_size, vocab_size)
        assert hidden_out.shape == (num_layers, batch_size, hidden_size)
        assert jnp.allclose(logits, logits_ref, atol=2e-2, rtol=2e-2), (
            "f32 logits mismatch, max abs err = "
            f"{float(jnp.max(jnp.abs(logits - logits_ref)))}")
        assert jnp.allclose(hidden_out, hidden_ref, atol=2e-2, rtol=2e-2)

        if check_two_cores:
            # Exercise the (v7x) 2-TensorCore batch-split path; on 1-TC chips the
            # 'parallel' axis runs sequentially, so results must still match.
            l2, h2 = fwd(tokens, hidden0, params, num_layers=num_layers,
                         num_tensorcores=2)
            l2 = jax.block_until_ready(l2)
            assert jnp.allclose(l2, logits_ref, atol=2e-2, rtol=2e-2)
            assert jnp.allclose(h2, hidden_ref, atol=2e-2, rtol=2e-2)

        if check_bf16:
            # bf16-weight production path: loose sanity check (bf16 rounding of the
            # carried hidden state compounds over the S recurrent steps).
            lb, hb = fwd(tokens, hidden0, params, num_layers=num_layers,
                         compute_dtype=jnp.bfloat16, logits_dtype=jnp.bfloat16)
            lb = jax.block_until_ready(lb)
            assert jnp.allclose(lb.astype(jnp.float32), logits_ref, atol=0.3)
            assert jnp.allclose(hb, hidden_ref, atol=0.3)

    # Main config: small but hardware-friendly shapes (B >= 8, E/H/V multiples of 128).
    run_case(emb_size=128, hidden_size=128, seq_len=16, batch_size=16,
             vocab_size=512, num_layers=2, seed=0,
             check_bf16=True, check_two_cores=True)
    # num_layers == 1 edge case.
    run_case(emb_size=128, hidden_size=128, seq_len=8, batch_size=8,
             vocab_size=256, num_layers=1, seed=1)

    print("KERNEL_OK")
</pallas_src>

<mosaic_0001>
module attributes {stable_mosaic.version = 11 : i64} {
  func.func @_matmul_bias_kernel(%arg0: i32, %arg1: i32, %arg2: memref<256x128xf32, #tpu.memory_space<vmem>>, %arg3: memref<128x512xf32, #tpu.memory_space<vmem>>, %arg4: memref<1x512xf32, #tpu.memory_space<vmem>>, %arg5: memref<256x512xf32, #tpu.memory_space<vmem>>) attributes {dimension_semantics = [#tpu.dimension_semantics<parallel>, #tpu.dimension_semantics<parallel>], iteration_bounds = array<i64: 1, 1>, scalar_prefetch = 0 : i64, scratch_operands = 0 : i64, tpu.core_type = #tpu.core_type<tc>, window_params = [{transform_indices = @transform_0, window_bounds = array<i64: 256, 128>}, {transform_indices = @transform_1, window_bounds = array<i64: 128, 512>}, {transform_indices = @transform_2, window_bounds = array<i64: 1, 512>}, {transform_indices = @transform_3, window_bounds = array<i64: 256, 512>}]} {
    %c0 = arith.constant 0 : index
    %c0_0 = arith.constant 0 : index
    %0 = vector.load %arg2[%c0, %c0_0] : memref<256x128xf32, #tpu.memory_space<vmem>>, vector<256x128xf32>
    %c0_1 = arith.constant 0 : index
    %c0_2 = arith.constant 0 : index
    %1 = vector.load %arg3[%c0_1, %c0_2] : memref<128x512xf32, #tpu.memory_space<vmem>>, vector<128x512xf32>
    %cst = arith.constant dense<0.000000e+00> : vector<256x512xf32>
    %2 = tpu.matmul %0, %1, %cst {dimension_numbers = #tpu.dot_dimension_numbers<[1], [0], [0], [1], [0, 0, 1, 1], [], []>} : vector<256x128xf32>, vector<128x512xf32>, vector<256x512xf32> -> vector<256x512xf32>
    %c0_3 = arith.constant 0 : index
    %c0_4 = arith.constant 0 : index
    %3 = vector.load %arg4[%c0_3, %c0_4] : memref<1x512xf32, #tpu.memory_space<vmem>>, vector<1x512xf32>
    %4 = vector.broadcast %3 : vector<1x512xf32> to vector<256x512xf32>
    %5 = arith.addf %2, %4 : vector<256x512xf32>
    %c0_5 = arith.constant 0 : index
    %c0_6 = arith.constant 0 : index
    %6 = vector.load %arg5[%c0_5, %c0_6] : memref<256x512xf32, #tpu.memory_space<vmem>>, vector<256x512xf32>
    tpu.vector_store %arg5[%c0_5, %c0_6], %5 {strides = array<i32>} : memref<256x512xf32, #tpu.memory_space<vmem>>, vector<256x512xf32>,
    return
  }
  func.func @transform_0(%arg0: i32, %arg1: i32) -> (i32, i32) {
    %c0_i32 = arith.constant 0 : i32
    %c0_i32_0 = arith.constant 0 : i32
    return %arg1, %c0_i32 : i32, i32
  }
  func.func @transform_1(%arg0: i32, %arg1: i32) -> (i32, i32) {
    %c0_i32 = arith.constant 0 : i32
    %c0_i32_0 = arith.constant 0 : i32
    return %c0_i32, %arg0 : i32, i32
  }
  func.func @transform_2(%arg0: i32, %arg1: i32) -> (i32, i32) {
    %c0_i32 = arith.constant 0 : i32
    %c0_i32_0 = arith.constant 0 : i32
    return %c0_i32, %arg0 : i32, i32
  }
  func.func @transform_3(%arg0: i32, %arg1: i32) -> (i32, i32) {
    %c0_i32 = arith.constant 0 : i32
    return %arg1, %arg0 : i32, i32
  }
}

module attributes {stable_mosaic.version = 11 : i64} {
  func.func @_rnn_recurrence_kernel(%arg0: i32, %arg1: i32, %arg2: memref<16x16x128xf32, #tpu.memory_space<vmem>>, %arg3: memref<2x16x128xf32, #tpu.memory_space<vmem>>, %arg4: memref<2x1x128xf32, #tpu.memory_space<vmem>>, %arg5: memref<128x128xf32, #tpu.memory_space<any>>, %arg6: memref<2x128x128xf32, #tpu.memory_space<any>>, %arg7: memref<1x128x128xf32, #tpu.memory_space<any>>, %arg8: memref<16x16x128xf32, #tpu.memory_space<vmem>>, %arg9: memref<2x16x128xf32, #tpu.memory_space<vmem>>, %arg10: memref<128x128xf32, #tpu.memory_space<vmem>>, %arg11: memref<2x128x128xf32, #tpu.memory_space<vmem>>, %arg12: memref<1x128x128xf32, #tpu.memory_space<vmem>>, %arg13: memref<2x16x128xf32, #tpu.memory_space<vmem>>, %arg14: memref<16x16x128xf32, #tpu.memory_space<vmem>>, %arg15: memref<!tpu.dma_semaphore, #tpu.memory_space<semaphore_mem>>) attributes {dimension_semantics = [#tpu.dimension_semantics<parallel>, #tpu.dimension_semantics<arbitrary>], iteration_bounds = array<i64: 1, 1>, scalar_prefetch = 0 : i64, scratch_operands = 6 : i64, tpu.core_type = #tpu.core_type<tc>, window_params = [{transform_indices = @transform_0, window_bounds = array<i64: 16, 16, 128>}, {transform_indices = @transform_1, window_bounds = array<i64: 2, 16, 128>}, {pipeline_mode = #tpu.pipeline_mode<synchronous>, transform_indices = @transform_2, window_bounds = array<i64: 2, 1, 128>}, {}, {}, {}, {transform_indices = @transform_6, window_bounds = array<i64: 16, 16, 128>}, {transform_indices = @transform_7, window_bounds = array<i64: 2, 16, 128>}]} {
    %c0_i32 = arith.constant 0 : i32
    %0 = arith.cmpi eq, %arg1, %c0_i32 : i32
    %1 = arith.extui %0 : i1 to i32
    %c0_i32_0 = arith.constant 0 : i32
    %2 = arith.cmpi ne, %1, %c0_i32_0 : i32
    scf.if %2 {
      tpu.enqueue_dma source(%arg5 : memref<128x128xf32, #tpu.memory_space<any>>) target(%arg10 : memref<128x128xf32, #tpu.memory_space<vmem>>) target_semaphore(%arg15 : memref<!tpu.dma_semaphore, #tpu.memory_space<semaphore_mem>>)
      tpu.wait_dma2 semaphore(%arg15 : memref<!tpu.dma_semaphore, #tpu.memory_space<semaphore_mem>>) src(%arg5 : memref<128x128xf32, #tpu.memory_space<any>>) dst(%arg10 : memref<128x128xf32, #tpu.memory_space<vmem>>)
      tpu.enqueue_dma source(%arg6 : memref<2x128x128xf32, #tpu.memory_space<any>>) target(%arg11 : memref<2x128x128xf32, #tpu.memory_space<vmem>>) target_semaphore(%arg15 : memref<!tpu.dma_semaphore, #tpu.memory_space<semaphore_mem>>)
      tpu.wait_dma2 semaphore(%arg15 : memref<!tpu.dma_semaphore, #tpu.memory_space<semaphore_mem>>) src(%arg6 : memref<2x128x128xf32, #tpu.memory_space<any>>) dst(%arg11 : memref<2x128x128xf32, #tpu.memory_space<vmem>>)
      tpu.enqueue_dma source(%arg7 : memref<1x128x128xf32, #tpu.memory_space<any>>) target(%arg12 : memref<1x128x128xf32, #tpu.memory_space<vmem>>) target_semaphore(%arg15 : memref<!tpu.dma_semaphore, #tpu.memory_space<semaphore_mem>>)
      tpu.wait_dma2 semaphore(%arg15 : memref<!tpu.dma_semaphore, #tpu.memory_space<semaphore_mem>>) src(%arg7 : memref<1x128x128xf32, #tpu.memory_space<any>>) dst(%arg12 : memref<1x128x128xf32, #tpu.memory_space<vmem>>)
      %c0_329 = arith.constant 0 : index
      %c0_330 = arith.constant 0 : index
      %c0_331 = arith.constant 0 : index
      %426 = vector.load %arg3[%c0_329, %c0_330, %c0_331] : memref<2x16x128xf32, #tpu.memory_space<vmem>>, vector<2x16x128xf32>
      %c0_332 = arith.constant 0 : index
      %c0_333 = arith.constant 0 : index
      %c0_334 = arith.constant 0 : index
      %427 = vector.load %arg13[%c0_332, %c0_333, %c0_334] : memref<2x16x128xf32, #tpu.memory_space<vmem>>, vector<2x16x128xf32>
      tpu.vector_store %arg13[%c0_332, %c0_333, %c0_334], %426 {strides = array<i32>} : memref<2x16x128xf32, #tpu.memory_space<vmem>>, vector<2x16x128xf32>,
    } else {
    }
    %c0 = arith.constant 0 : index
    %c0_1 = arith.constant 0 : index
    %c0_2 = arith.constant 0 : index
    %3 = vector.load %arg2[%c0, %c0_1, %c0_2] : memref<16x16x128xf32, #tpu.memory_space<vmem>>, vector<16x16x128xf32>
    %4 = vector.shape_cast %3 : vector<16x16x128xf32> to vector<256x128xf32>
    %c0_3 = arith.constant 0 : index
    %c0_4 = arith.constant 0 : index
    %5 = vector.load %arg10[%c0_3, %c0_4] : memref<128x128xf32, #tpu.memory_space<vmem>>, vector<128x128xf32>
    %cst = arith.constant dense<0.000000e+00> : vector<256x128xf32>
    %6 = tpu.matmul %4, %5, %cst {dimension_numbers = #tpu.dot_dimension_numbers<[1], [0], [0], [1], [0, 0, 1, 1], [], []>} : vector<256x128xf32>, vector<128x128xf32>, vector<256x128xf32> -> vector<256x128xf32>
    %c0_5 = arith.constant 0 : index
    %c0_6 = arith.constant 0 : index
    %c0_7 = arith.constant 0 : index
    %7 = vector.load %arg4[%c0_5, %c0_6, %c0_7] : memref<2x1x128xf32, #tpu.memory_space<vmem>>, vector<1x1x128xf32>
    %8 = vector.shape_cast %7 : vector<1x1x128xf32> to vector<1x128xf32>
    %9 = vector.broadcast %8 : vector<1x128xf32> to vector<256x128xf32>
    %10 = arith.addf %6, %9 : vector<256x128xf32>
    %11 = vector.shape_cast %10 : vector<256x128xf32> to vector<16x16x128xf32>
    %c0_8 = arith.constant 0 : index
    %c0_9 = arith.constant 0 : index
    %c0_10 = arith.constant 0 : index
    %12 = vector.load %arg14[%c0_8, %c0_9, %c0_10] : memref<16x16x128xf32, #tpu.memory_space<vmem>>, vector<16x16x128xf32>
    tpu.vector_store %arg14[%c0_8, %c0_9, %c0_10], %11 {strides = array<i32>} : memref<16x16x128xf32, #tpu.memory_space<vmem>>, vector<16x16x128xf32>,
    %c0_11 = arith.constant 0 : index
    %c0_12 = arith.constant 0 : index
    %c0_13 = arith.constant 0 : index
    %13 = vector.load %arg11[%c0_11, %c0_12, %c0_13] : memref<2x128x128xf32, #tpu.memory_space<vmem>>, vector<1x128x128xf32>
    %14 = vector.shape_cast %13 : vector<1x128x128xf32> to vector<128x128xf32>
    %c1 = arith.constant 1 : index
    %c0_14 = arith.constant 0 : index
    %c0_15 = arith.constant 0 : index
    %15 = vector.load %arg11[%c1, %c0_14, %c0_15] : memref<2x128x128xf32, #tpu.memory_space<vmem>>, vector<1x128x128xf32>
    %16 = vector.shape_cast %15 : vector<1x128x128xf32> to vector<128x128xf32>
    %c0_16 = arith.constant 0 : index
    %c0_17 = arith.constant 0 : index
    %c0_18 = arith.constant 0 : index
    %17 = vector.load %arg12[%c0_16, %c0_17, %c0_18] : memref<1x128x128xf32, #tpu.memory_space<vmem>>, vector<1x128x128xf32>
    %18 = vector.shape_cast %17 : vector<1x128x128xf32> to vector<128x128xf32>
    %c1_19 = arith.constant 1 : index
    %c0_20 = arith.constant 0 : index
    %c0_21 = arith.constant 0 : index
    %19 = vector.load %arg4[%c1_19, %c0_20, %c0_21] : memref<2x1x128xf32, #tpu.memory_space<vmem>>, vector<1x1x128xf32>
    %20 = vector.shape_cast %19 : vector<1x1x128xf32> to vector<1x128xf32>
    %21 = vector.shape_cast %20 : vector<1x128xf32> to vector<1x128xf32>
    %22 = vector.broadcast %21 : vector<1x128xf32> to vector<16x128xf32>
    %c0_i32_22 = arith.constant 0 : i32
    %23 = arith.index_cast %c0_i32_22 : i32 to index
    %c0_23 = arith.constant 0 : index
    %c0_24 = arith.constant 0 : index
    %24 = vector.load %arg14[%23, %c0_23, %c0_24] : memref<16x16x128xf32, #tpu.memory_space<vmem>>, vector<1x16x128xf32>
    %25 = vector.shape_cast %24 : vector<1x16x128xf32> to vector<16x128xf32>
    %c0_25 = arith.constant 0 : index
    %c0_26 = arith.constant 0 : index
    %c0_27 = arith.constant 0 : index
    %26 = vector.load %arg13[%c0_25, %c0_26, %c0_27] : memref<2x16x128xf32, #tpu.memory_space<vmem>>, vector<1x16x128xf32>
    %27 = vector.shape_cast %26 : vector<1x16x128xf32> to vector<16x128xf32>
    %cst_28 = arith.constant dense<0.000000e+00> : vector<16x128xf32>
    %28 = tpu.matmul %27, %14, %cst_28 {dimension_numbers = #tpu.dot_dimension_numbers<[1], [0], [0], [1], [0, 0, 1, 1], [], []>} : vector<16x128xf32>, vector<128x128xf32>, vector<16x128xf32> -> vector<16x128xf32>
    %29 = arith.addf %25, %28 : vector<16x128xf32>
    %30 = math.tanh %29 : vector<16x128xf32>
    %c0_29 = arith.constant 0 : index
    %c0_30 = arith.constant 0 : index
    %c0_31 = arith.constant 0 : index
    %31 = vector.load %arg13[%c0_29, %c0_30, %c0_31] : memref<2x16x128xf32, #tpu.memory_space<vmem>>, vector<1x16x128xf32>
    %32 = vector.shape_cast %31 : vector<1x16x128xf32> to vector<16x128xf32>
    %33 = vector.shape_cast %30 : vector<16x128xf32> to vector<1x16x128xf32>
    tpu.vector_store %arg13[%c0_29, %c0_30, %c0_31], %33 {strides = array<i32>} : memref<2x16x128xf32, #tpu.memory_space<vmem>>, vector<1x16x128xf32>,
    %cst_32 = arith.constant dense<0.000000e+00> : vector<16x128xf32>
    %34 = tpu.matmul %30, %18, %cst_32 {dimension_numbers = #tpu.dot_dimension_numbers<[1], [0], [0], [1], [0, 0, 1, 1], [], []>} : vector<16x128xf32>, vector<128x128xf32>, vector<16x128xf32> -> vector<16x128xf32>
    %c1_33 = arith.constant 1 : index
    %c0_34 = arith.constant 0 : index
    %c0_35 = arith.constant 0 : index
    %35 = vector.load %arg13[%c1_33, %c0_34, %c0_35] : memref<2x16x128xf32, #tpu.memory_space<vmem>>, vector<1x16x128xf32>
    %36 = vector.shape_cast %35 : vector<1x16x128xf32> to vector<16x128xf32>
    %cst_36 = arith.constant dense<0.000000e+00> : vector<16x128xf32>
    %37 = tpu.matmul %36, %16, %cst_36 {dimension_numbers = #tpu.dot_dimension_numbers<[1], [0], [0], [1], [0, 0, 1, 1], [], []>} : vector<16x128xf32>, vector<128x128xf32>, vector<16x128xf32> -> vector<16x128xf32>
    %38 = arith.addf %34, %37 : vector<16x128xf32>
    %39 = arith.addf %38, %22 : vector<16x128xf32>
    %40 = math.tanh %39 : vector<16x128xf32>
    %c1_37 = arith.constant 1 : index
    %c0_38 = arith.constant 0 : index
    %c0_39 = arith.constant 0 : index
    %41 = vector.load %arg13[%c1_37, %c0_38, %c0_39] : memref<2x16x128xf32, #tpu.memory_space<vmem>>, vector<1x16x128xf32>
    %42 = vector.shape_cast %41 : vector<1x16x128xf32> to vector<16x128xf32>
    %43 = vector.shape_cast %40 : vector<16x128xf32> to vector<1x16x128xf32>
    tpu.vector_store %arg13[%c1_37, %c0_38, %c0_39], %43 {strides = array<i32>} : memref<2x16x128xf32, #tpu.memory_space<vmem>>, vector<1x16x128xf32>,
    %44 = arith.index_cast %c0_i32_22 : i32 to index
    %c0_40 = arith.constant 0 : index
    %c0_41 = arith.constant 0 : index
    %45 = vector.load %arg8[%44, %c0_40, %c0_41] : memref<16x16x128xf32, #tpu.memory_space<vmem>>, vector<1x16x128xf32>
    %46 = vector.shape_cast %45 : vector<1x16x128xf32> to vector<16x128xf32>
    %47 = vector.shape_cast %40 : vector<16x128xf32> to vector<1x16x128xf32>
    tpu.vector_store %arg8[%44, %c0_40, %c0_41], %47 {strides = array<i32>} : memref<16x16x128xf32, #tpu.memory_space<vmem>>, vector<1x16x128xf32>,
    %c1_i32 = arith.constant 1 : i32
    %48 = arith.index_cast %c1_i32 : i32 to index
    %c0_42 = arith.constant 0 : index
    %c0_43 = arith.constant 0 : index
    %49 = vector.load %arg14[%48, %c0_42, %c0_43] : memref<16x16x128xf32, #tpu.memory_space<vmem>>, vector<1x16x128xf32>
    %50 = vector.shape_cast %49 : vector<1x16x128xf32> to vector<16x128xf32>
    %c0_44 = arith.constant 0 : index
    %c0_45 = arith.constant 0 : index
    %c0_46 = arith.constant 0 : index
    %51 = vector.load %arg13[%c0_44, %c0_45, %c0_46] : memref<2x16x128xf32, #tpu.memory_space<vmem>>, vector<1x16x128xf32>
    %52 = vector.shape_cast %51 : vector<1x16x128xf32> to vector<16x128xf32>
    %cst_47 = arith.constant dense<0.000000e+00> : vector<16x128xf32>
    %53 = tpu.matmul %52, %14, %cst_47 {dimension_numbers = #tpu.dot_dimension_numbers<[1], [0], [0], [1], [0, 0, 1, 1], [], []>} : vector<16x128xf32>, vector<128x128xf32>, vector<16x128xf32> -> vector<16x128xf32>
    %54 = arith.addf %50, %53 : vector<16x128xf32>
    %55 = math.tanh %54 : vector<16x128xf32>
    %c0_48 = arith.constant 0 : index
    %c0_49 = arith.constant 0 : index
    %c0_50 = arith.constant 0 : index
    %56 = vector.load %arg13[%c0_48, %c0_49, %c0_50] : memref<2x16x128xf32, #tpu.memory_space<vmem>>, vector<1x16x128xf32>
    %57 = vector.shape_cast %56 : vector<1x16x128xf32> to vector<16x128xf32>
    %58 = vector.shape_cast %55 : vector<16x128xf32> to vector<1x16x128xf32>
    tpu.vector_store %arg13[%c0_48, %c0_49, %c0_50], %58 {strides = array<i32>} : memref<2x16x128xf32, #tpu.memory_space<vmem>>, vector<1x16x128xf32>,
    %cst_51 = arith.constant dense<0.000000e+00> : vector<16x128xf32>
    %59 = tpu.matmul %55, %18, %cst_51 {dimension_numbers = #tpu.dot_dimension_numbers<[1], [0], [0], [1], [0, 0, 1, 1], [], []>} : vector<16x128xf32>, vector<128x128xf32>, vector<16x128xf32> -> vector<16x128xf32>
    %c1_52 = arith.constant 1 : index
    %c0_53 = arith.constant 0 : index
    %c0_54 = arith.constant 0 : index
    %60 = vector.load %arg13[%c1_52, %c0_53, %c0_54] : memref<2x16x128xf32, #tpu.memory_space<vmem>>, vector<1x16x128xf32>
    %61 = vector.shape_cast %60 : vector<1x16x128xf32> to vector<16x128xf32>
    %cst_55 = arith.constant dense<0.000000e+00> : vector<16x128xf32>
    %62 = tpu.matmul %61, %16, %cst_55 {dimension_numbers = #tpu.dot_dimension_numbers<[1], [0], [0], [1], [0, 0, 1, 1], [], []>} : vector<16x128xf32>, vector<128x128xf32>, vector<16x128xf32> -> vector<16x128xf32>
    %63 = arith.addf %59, %62 : vector<16x128xf32>
    %64 = arith.addf %63, %22 : vector<16x128xf32>
    %65 = math.tanh %64 : vector<16x128xf32>
    %c1_56 = arith.constant 1 : index
    %c0_57 = arith.constant 0 : index
    %c0_58 = arith.constant 0 : index
    %66 = vector.load %arg13[%c1_56, %c0_57, %c0_58] : memref<2x16x128xf32, #tpu.memory_space<vmem>>, vector<1x16x128xf32>
    %67 = vector.shape_cast %66 : vector<1x16x128xf32> to vector<16x128xf32>
    %68 = vector.shape_cast %65 : vector<16x128xf32> to vector<1x16x128xf32>
    tpu.vector_store %arg13[%c1_56, %c0_57, %c0_58], %68 {strides = array<i32>} : memref<2x16x128xf32, #tpu.memory_space<vmem>>, vector<1x16x128xf32>,
    %69 = arith.index_cast %c1_i32 : i32 to index
    %c0_59 = arith.constant 0 : index
    %c0_60 = arith.constant 0 : index
    %70 = vector.load %arg8[%69, %c0_59, %c0_60] : memref<16x16x128xf32, #tpu.memory_space<vmem>>, vector<1x16x128xf32>
    %71 = vector.shape_cast %70 : vector<1x16x128xf32> to vector<16x128xf32>
    %72 = vector.shape_cast %65 : vector<16x128xf32> to vector<1x16x128xf32>
    tpu.vector_store %arg8[%69, %c0_59, %c0_60], %72 {strides = array<i32>} : memref<16x16x128xf32, #tpu.memory_space<vmem>>, vector<1x16x128xf32>,
    %c2_i32 = arith.constant 2 : i32
    %73 = arith.index_cast %c2_i32 : i32 to index
    %c0_61 = arith.constant 0 : index
    %c0_62 = arith.constant 0 : index
    %74 = vector.load %arg14[%73, %c0_61, %c0_62] : memref<16x16x128xf32, #tpu.memory_space<vmem>>, vector<1x16x128xf32>
    %75 = vector.shape_cast %74 : vector<1x16x128xf32> to vector<16x128xf32>
    %c0_63 = arith.constant 0 : index
    %c0_64 = arith.constant 0 : index
    %c0_65 = arith.constant 0 : index
    %76 = vector.load %arg13[%c0_63, %c0_64, %c0_65] : memref<2x16x128xf32, #tpu.memory_space<vmem>>, vector<1x16x128xf32>
    %77 = vector.shape_cast %76 : vector<1x16x128xf32> to vector<16x128xf32>
    %cst_66 = arith.constant dense<0.000000e+00> : vector<16x128xf32>
    %78 = tpu.matmul %77, %14, %cst_66 {dimension_numbers = #tpu.dot_dimension_numbers<[1], [0], [0], [1], [0, 0, 1, 1], [], []>} : vector<16x128xf32>, vector<128x128xf32>, vector<16x128xf32> -> vector<16x128xf32>
    %79 = arith.addf %75, %78 : vector<16x128xf32>
    %80 = math.tanh %79 : vector<16x128xf32>
    %c0_67 = arith.constant 0 : index
    %c0_68 = arith.constant 0 : index
    %c0_69 = arith.constant 0 : index
    %81 = vector.load %arg13[%c0_67, %c0_68, %c0_69] : memref<2x16x128xf32, #tpu.memory_space<vmem>>, vector<1x16x128xf32>
    %82 = vector.shape_cast %81 : vector<1x16x128xf32> to vector<16x128xf32>
    %83 = vector.shape_cast %80 : vector<16x128xf32> to vector<1x16x128xf32>
    tpu.vector_store %arg13[%c0_67, %c0_68, %c0_69], %83 {strides = array<i32>} : memref<2x16x128xf32, #tpu.memory_space<vmem>>, vector<1x16x128xf32>,
    %cst_70 = arith.constant dense<0.000000e+00> : vector<16x128xf32>
    %84 = tpu.matmul %80, %18, %cst_70 {dimension_numbers = #tpu.dot_dimension_numbers<[1], [0], [0], [1], [0, 0, 1, 1], [], []>} : vector<16x128xf32>, vector<128x128xf32>, vector<16x128xf32> -> vector<16x128xf32>
    %c1_71 = arith.constant 1 : index
    %c0_72 = arith.constant 0 : index
    %c0_73 = arith.constant 0 : index
    %85 = vector.load %arg13[%c1_71, %c0_72, %c0_73] : memref<2x16x128xf32, #tpu.memory_space<vmem>>, vector<1x16x128xf32>
    %86 = vector.shape_cast %85 : vector<1x16x128xf32> to vector<16x128xf32>
    %cst_74 = arith.constant dense<0.000000e+00> : vector<16x128xf32>
    %87 = tpu.matmul %86, %16, %cst_74 {dimension_numbers = #tpu.dot_dimension_numbers<[1], [0], [0], [1], [0, 0, 1, 1], [], []>} : vector<16x128xf32>, vector<128x128xf32>, vector<16x128xf32> -> vector<16x128xf32>
    %88 = arith.addf %84, %87 : vector<16x128xf32>
    %89 = arith.addf %88, %22 : vector<16x128xf32>
    %90 = math.tanh %89 : vector<16x128xf32>
    %c1_75 = arith.constant 1 : index
    %c0_76 = arith.constant 0 : index
    %c0_77 = arith.constant 0 : index
    %91 = vector.load %arg13[%c1_75, %c0_76, %c0_77] : memref<2x16x128xf32, #tpu.memory_space<vmem>>, vector<1x16x128xf32>
    %92 = vector.shape_cast %91 : vector<1x16x128xf32> to vector<16x128xf32>
    %93 = vector.shape_cast %90 : vector<16x128xf32> to vector<1x16x128xf32>
    tpu.vector_store %arg13[%c1_75, %c0_76, %c0_77], %93 {strides = array<i32>} : memref<2x16x128xf32, #tpu.memory_space<vmem>>, vector<1x16x128xf32>,
    %94 = arith.index_cast %c2_i32 : i32 to index
    %c0_78 = arith.constant 0 : index
    %c0_79 = arith.constant 0 : index
    %95 = vector.load %arg8[%94, %c0_78, %c0_79] : memref<16x16x128xf32, #tpu.memory_space<vmem>>, vector<1x16x128xf32>
    %96 = vector.shape_cast %95 : vector<1x16x128xf32> to vector<16x128xf32>
    %97 = vector.shape_cast %90 : vector<16x128xf32> to vector<1x16x128xf32>
    tpu.vector_store %arg8[%94, %c0_78, %c0_79], %97 {strides = array<i32>} : memref<16x16x128xf32, #tpu.memory_space<vmem>>, vector<1x16x128xf32>,
    %c3_i32 = arith.constant 3 : i32
    %98 = arith.index_cast %c3_i32 : i32 to index
    %c0_80 = arith.constant 0 : index
    %c0_81 = arith.constant 0 : index
    %99 = vector.load %arg14[%98, %c0_80, %c0_81] : memref<16x16x128xf32, #tpu.memory_space<vmem>>, vector<1x16x128xf32>
    %100 = vector.shape_cast %99 : vector<1x16x128xf32> to vector<16x128xf32>
    %c0_82 = arith.constant 0 : index
    %c0_83 = arith.constant 0 : index
    %c0_84 = arith.constant 0 : index
    %101 = vector.load %arg13[%c0_82, %c0_83, %c0_84] : memref<2x16x128xf32, #tpu.memory_space<vmem>>, vector<1x16x128xf32>
    %102 = vector.shape_cast %101 : vector<1x16x128xf32> to vector<16x128xf32>
    %cst_85 = arith.constant dense<0.000000e+00> : vector<16x128xf32>
    %103 = tpu.matmul %102, %14, %cst_85 {dimension_numbers = #tpu.dot_dimension_numbers<[1], [0], [0], [1], [0, 0, 1, 1], [], []>} : vector<16x128xf32>, vector<128x128xf32>, vector<16x128xf32> -> vector<16x128xf32>
    %104 = arith.addf %100, %103 : vector<16x128xf32>
    %105 = math.tanh %104 : vector<16x128xf32>
    %c0_86 = arith.constant 0 : index
    %c0_87 = arith.constant 0 : index
    %c0_88 = arith.constant 0 : index
    %106 = vector.load %arg13[%c0_86, %c0_87, %c0_88] : memref<2x16x128xf32, #tpu.memory_space<vmem>>, vector<1x16x128xf32>
    %107 = vector.shape_cast %106 : vector<1x16x128xf32> to vector<16x128xf32>
    %108 = vector.shape_cast %105 : vector<16x128xf32> to vector<1x16x128xf32>
    tpu.vector_store %arg13[%c0_86, %c0_87, %c0_88], %108 {strides = array<i32>} : memref<2x16x128xf32, #tpu.memory_space<vmem>>, vector<1x16x128xf32>,
    %cst_89 = arith.constant dense<0.000000e+00> : vector<16x128xf32>
    %109 = tpu.matmul %105, %18, %cst_89 {dimension_numbers = #tpu.dot_dimension_numbers<[1], [0], [0], [1], [0, 0, 1, 1], [], []>} : vector<16x128xf32>, vector<128x128xf32>, vector<16x128xf32> -> vector<16x128xf32>
    %c1_90 = arith.constant 1 : index
    %c0_91 = arith.constant 0 : index
    %c0_92 = arith.constant 0 : index
    %110 = vector.load %arg13[%c1_90, %c0_91, %c0_92] : memref<2x16x128xf32, #tpu.memory_space<vmem>>, vector<1x16x128xf32>
    %111 = vector.shape_cast %110 : vector<1x16x128xf32> to vector<16x128xf32>
    %cst_93 = arith.constant dense<0.000000e+00> : vector<16x128xf32>
    %112 = tpu.matmul %111, %16, %cst_93 {dimension_numbers = #tpu.dot_dimension_numbers<[1], [0], [0], [1], [0, 0, 1, 1], [], []>} : vector<16x128xf32>, vector<128x128xf32>, vector<16x128xf32> -> vector<16x128xf32>
    %113 = arith.addf %109, %112 : vector<16x128xf32>
    %114 = arith.addf %113, %22 : vector<16x128xf32>
    %115 = math.tanh %114 : vector<16x128xf32>
    %c1_94 = arith.constant 1 : index
    %c0_95 = arith.constant 0 : index
    %c0_96 = arith.constant 0 : index
    %116 = vector.load %arg13[%c1_94, %c0_95, %c0_96] : memref<2x16x128xf32, #tpu.memory_space<vmem>>, vector<1x16x128xf32>
    %117 = vector.shape_cast %116 : vector<1x16x128xf32> to vector<16x128xf32>
    %118 = vector.shape_cast %115 : vector<16x128xf32> to vector<1x16x128xf32>
    tpu.vector_store %arg13[%c1_94, %c0_95, %c0_96], %118 {strides = array<i32>} : memref<2x16x128xf32, #tpu.memory_space<vmem>>, vector<1x16x128xf32>,
    %119 = arith.index_cast %c3_i32 : i32 to index
    %c0_97 = arith.constant 0 : index
    %c0_98 = arith.constant 0 : index
    %120 = vector.load %arg8[%119, %c0_97, %c0_98] : memref<16x16x128xf32, #tpu.memory_space<vmem>>, vector<1x16x128xf32>
    %121 = vector.shape_cast %120 : vector<1x16x128xf32> to vector<16x128xf32>
    %122 = vector.shape_cast %115 : vector<16x128xf32> to vector<1x16x128xf32>
    tpu.vector_store %arg8[%119, %c0_97, %c0_98], %122 {strides = array<i32>} : memref<16x16x128xf32, #tpu.memory_space<vmem>>, vector<1x16x128xf32>,
    %c4_i32 = arith.constant 4 : i32
    %123 = arith.index_cast %c4_i32 : i32 to index
    %c0_99 = arith.constant 0 : index
    %c0_100 = arith.constant 0 : index
    %124 = vector.load %arg14[%123, %c0_99, %c0_100] : memref<16x16x128xf32, #tpu.memory_space<vmem>>, vector<1x16x128xf32>
    %125 = vector.shape_cast %124 : vector<1x16x128xf32> to vector<16x128xf32>
    %c0_101 = arith.constant 0 : index
    %c0_102 = arith.constant 0 : index
    %c0_103 = arith.constant 0 : index
    %126 = vector.load %arg13[%c0_101, %c0_102, %c0_103] : memref<2x16x128xf32, #tpu.memory_space<vmem>>, vector<1x16x128xf32>
    %127 = vector.shape_cast %126 : vector<1x16x128xf32> to vector<16x128xf32>
    %cst_104 = arith.constant dense<0.000000e+00> : vector<16x128xf32>
    %128 = tpu.matmul %127, %14, %cst_104 {dimension_numbers = #tpu.dot_dimension_numbers<[1], [0], [0], [1], [0, 0, 1, 1], [], []>} : vector<16x128xf32>, vector<128x128xf32>, vector<16x128xf32> -> vector<16x128xf32>
    %129 = arith.addf %125, %128 : vector<16x128xf32>
    %130 = math.tanh %129 : vector<16x128xf32>
    %c0_105 = arith.constant 0 : index
    %c0_106 = arith.constant 0 : index
    %c0_107 = arith.constant 0 : index
    %131 = vector.load %arg13[%c0_105, %c0_106, %c0_107] : memref<2x16x128xf32, #tpu.memory_space<vmem>>, vector<1x16x128xf32>
    %132 = vector.shape_cast %131 : vector<1x16x128xf32> to vector<16x128xf32>
    %133 = vector.shape_cast %130 : vector<16x128xf32> to vector<1x16x128xf32>
    tpu.vector_store %arg13[%c0_105, %c0_106, %c0_107], %133 {strides = array<i32>} : memref<2x16x128xf32, #tpu.memory_space<vmem>>, vector<1x16x128xf32>,
    %cst_108 = arith.constant dense<0.000000e+00> : vector<16x128xf32>
    %134 = tpu.matmul %130, %18, %cst_108 {dimension_numbers = #tpu.dot_dimension_numbers<[1], [0], [0], [1], [0, 0, 1, 1], [], []>} : vector<16x128xf32>, vector<128x128xf32>, vector<16x128xf32> -> vector<16x128xf32>
    %c1_109 = arith.constant 1 : index
    %c0_110 = arith.constant 0 : index
    %c0_111 = arith.constant 0 : index
    %135 = vector.load %arg13[%c1_109, %c0_110, %c0_111] : memref<2x16x128xf32, #tpu.memory_space<vmem>>, vector<1x16x128xf32>
    %136 = vector.shape_cast %135 : vector<1x16x128xf32> to vector<16x128xf32>
    %cst_112 = arith.constant dense<0.000000e+00> : vector<16x128xf32>
    %137 = tpu.matmul %136, %16, %cst_112 {dimension_numbers = #tpu.dot_dimension_numbers<[1], [0], [0], [1], [0, 0, 1, 1], [], []>} : vector<16x128xf32>, vector<128x128xf32>, vector<16x128xf32> -> vector<16x128xf32>
    %138 = arith.addf %134, %137 : vector<16x128xf32>
    %139 = arith.addf %138, %22 : vector<16x128xf32>
    %140 = math.tanh %139 : vector<16x128xf32>
    %c1_113 = arith.constant 1 : index
    %c0_114 = arith.constant 0 : index
    %c0_115 = arith.constant 0 : index
    %141 = vector.load %arg13[%c1_113, %c0_114, %c0_115] : memref<2x16x128xf32, #tpu.memory_space<vmem>>, vector<1x16x128xf32>
    %142 = vector.shape_cast %141 : vector<1x16x128xf32> to vector<16x128xf32>
    %143 = vector.shape_cast %140 : vector<16x128xf32> to vector<1x16x128xf32>
    tpu.vector_store %arg13[%c1_113, %c0_114, %c0_115], %143 {strides = array<i32>} : memref<2x16x128xf32, #tpu.memory_space<vmem>>, vector<1x16x128xf32>,
    %144 = arith.index_cast %c4_i32 : i32 to index
    %c0_116 = arith.constant 0 : index
    %c0_117 = arith.constant 0 : index
    %145 = vector.load %arg8[%144, %c0_116, %c0_117] : memref<16x16x128xf32, #tpu.memory_space<vmem>>, vector<1x16x128xf32>
    %146 = vector.shape_cast %145 : vector<1x16x128xf32> to vector<16x128xf32>
    %147 = vector.shape_cast %140 : vector<16x128xf32> to vector<1x16x128xf32>
    tpu.vector_store %arg8[%144, %c0_116, %c0_117], %147 {strides = array<i32>} : memref<16x16x128xf32, #tpu.memory_space<vmem>>, vector<1x16x128xf32>,
    %c5_i32 = arith.constant 5 : i32
    %148 = arith.index_cast %c5_i32 : i32 to index
    %c0_118 = arith.constant 0 : index
    %c0_119 = arith.constant 0 : index
    %149 = vector.load %arg14[%148, %c0_118, %c0_119] : memref<16x16x128xf32, #tpu.memory_space<vmem>>, vector<1x16x128xf32>
    %150 = vector.shape_cast %149 : vector<1x16x128xf32> to vector<16x128xf32>
    %c0_120 = arith.constant 0 : index
    %c0_121 = arith.constant 0 : index
    %c0_122 = arith.constant 0 : index
    %151 = vector.load %arg13[%c0_120, %c0_121, %c0_122] : memref<2x16x128xf32, #tpu.memory_space<vmem>>, vector<1x16x128xf32>
    %152 = vector.shape_cast %151 : vector<1x16x128xf32> to vector<16x128xf32>
    %cst_123 = arith.constant dense<0.000000e+00> : vector<16x128xf32>
    %153 = tpu.matmul %152, %14, %cst_123 {dimension_numbers = #tpu.dot_dimension_numbers<[1], [0], [0], [1], [0, 0, 1, 1], [], []>} : vector<16x128xf32>, vector<128x128xf32>, vector<16x128xf32> -> vector<16x128xf32>
    %154 = arith.addf %150, %153 : vector<16x128xf32>
    %155 = math.tanh %154 : vector<16x128xf32>
    %c0_124 = arith.constant 0 : index
    %c0_125 = arith.constant 0 : index
    %c0_126 = arith.constant 0 : index
    %156 = vector.load %arg13[%c0_124, %c0_125, %c0_126] : memref<2x16x128xf32, #tpu.memory_space<vmem>>, vector<1x16x128xf32>
    %157 = vector.shape_cast %156 : vector<1x16x128xf32> to vector<16x128xf32>
    %158 = vector.shape_cast %155 : vector<16x128xf32> to vector<1x16x128xf32>
    tpu.vector_store %arg13[%c0_124, %c0_125, %c0_126], %158 {strides = array<i32>} : memref<2x16x128xf32, #tpu.memory_space<vmem>>, vector<1x16x128xf32>,
    %cst_127 = arith.constant dense<0.000000e+00> : vector<16x128xf32>
    %159 = tpu.matmul %155, %18, %cst_127 {dimension_numbers = #tpu.dot_dimension_numbers<[1], [0], [0], [1], [0, 0, 1, 1], [], []>} : vector<16x128xf32>, vector<128x128xf32>, vector<16x128xf32> -> vector<16x128xf32>
    %c1_128 = arith.constant 1 : index
    %c0_129 = arith.constant 0 : index
    %c0_130 = arith.constant 0 : index
    %160 = vector.load %arg13[%c1_128, %c0_129, %c0_130] : memref<2x16x128xf32, #tpu.memory_space<vmem>>, vector<1x16x128xf32>
    %161 = vector.shape_cast %160 : vector<1x16x128xf32> to vector<16x128xf32>
    %cst_131 = arith.constant dense<0.000000e+00> : vector<16x128xf32>
    %162 = tpu.matmul %161, %16, %cst_131 {dimension_numbers = #tpu.dot_dimension_numbers<[1], [0], [0], [1], [0, 0, 1, 1], [], []>} : vector<16x128xf32>, vector<128x128xf32>, vector<16x128xf32> -> vector<16x128xf32>
    %163 = arith.addf %159, %162 : vector<16x128xf32>
    %164 = arith.addf %163, %22 : vector<16x128xf32>
    %165 = math.tanh %164 : vector<16x128xf32>
    %c1_132 = arith.constant 1 : index
    %c0_133 = arith.constant 0 : index
    %c0_134 = arith.constant 0 : index
    %166 = vector.load %arg13[%c1_132, %c0_133, %c0_134] : memref<2x16x128xf32, #tpu.memory_space<vmem>>, vector<1x16x128xf32>
    %167 = vector.shape_cast %166 : vector<1x16x128xf32> to vector<16x128xf32>
    %168 = vector.shape_cast %165 : vector<16x128xf32> to vector<1x16x128xf32>
    tpu.vector_store %arg13[%c1_132, %c0_133, %c0_134], %168 {strides = array<i32>} : memref<2x16x128xf32, #tpu.memory_space<vmem>>, vector<1x16x128xf32>,
    %169 = arith.index_cast %c5_i32 : i32 to index
    %c0_135 = arith.constant 0 : index
    %c0_136 = arith.constant 0 : index
    %170 = vector.load %arg8[%169, %c0_135, %c0_136] : memref<16x16x128xf32, #tpu.memory_space<vmem>>, vector<1x16x128xf32>
    %171 = vector.shape_cast %170 : vector<1x16x128xf32> to vector<16x128xf32>
    %172 = vector.shape_cast %165 : vector<16x128xf32> to vector<1x16x128xf32>
    tpu.vector_store %arg8[%169, %c0_135, %c0_136], %172 {strides = array<i32>} : memref<16x16x128xf32, #tpu.memory_space<vmem>>, vector<1x16x128xf32>,
    %c6_i32 = arith.constant 6 : i32
    %173 = arith.index_cast %c6_i32 : i32 to index
    %c0_137 = arith.constant 0 : index
    %c0_138 = arith.constant 0 : index
    %174 = vector.load %arg14[%173, %c0_137, %c0_138] : memref<16x16x128xf32, #tpu.memory_space<vmem>>, vector<1x16x128xf32>
    %175 = vector.shape_cast %174 : vector<1x16x128xf32> to vector<16x128xf32>
    %c0_139 = arith.constant 0 : index
    %c0_140 = arith.constant 0 : index
    %c0_141 = arith.constant 0 : index
    %176 = vector.load %arg13[%c0_139, %c0_140, %c0_141] : memref<2x16x128xf32, #tpu.memory_space<vmem>>, vector<1x16x128xf32>
    %177 = vector.shape_cast %176 : vector<1x16x128xf32> to vector<16x128xf32>
    %cst_142 = arith.constant dense<0.000000e+00> : vector<16x128xf32>
    %178 = tpu.matmul %177, %14, %cst_142 {dimension_numbers = #tpu.dot_dimension_numbers<[1], [0], [0], [1], [0, 0, 1, 1], [], []>} : vector<16x128xf32>, vector<128x128xf32>, vector<16x128xf32> -> vector<16x128xf32>
    %179 = arith.addf %175, %178 : vector<16x128xf32>
    %180 = math.tanh %179 : vector<16x128xf32>
    %c0_143 = arith.constant 0 : index
    %c0_144 = arith.constant 0 : index
    %c0_145 = arith.constant 0 : index
    %181 = vector.load %arg13[%c0_143, %c0_144, %c0_145] : memref<2x16x128xf32, #tpu.memory_space<vmem>>, vector<1x16x128xf32>
    %182 = vector.shape_cast %181 : vector<1x16x128xf32> to vector<16x128xf32>
    %183 = vector.shape_cast %180 : vector<16x128xf32> to vector<1x16x128xf32>
    tpu.vector_store %arg13[%c0_143, %c0_144, %c0_145], %183 {strides = array<i32>} : memref<2x16x128xf32, #tpu.memory_space<vmem>>, vector<1x16x128xf32>,
    %cst_146 = arith.constant dense<0.000000e+00> : vector<16x128xf32>
    %184 = tpu.matmul %180, %18, %cst_146 {dimension_numbers = #tpu.dot_dimension_numbers<[1], [0], [0], [1], [0, 0, 1, 1], [], []>} : vector<16x128xf32>, vector<128x128xf32>, vector<16x128xf32> -> vector<16x128xf32>
    %c1_147 = arith.constant 1 : index
    %c0_148 = arith.constant 0 : index
    %c0_149 = arith.constant 0 : index
    %185 = vector.load %arg13[%c1_147, %c0_148, %c0_149] : memref<2x16x128xf32, #tpu.memory_space<vmem>>, vector<1x16x128xf32>
    %186 = vector.shape_cast %185 : vector<1x16x128xf32> to vector<16x128xf32>
    %cst_150 = arith.constant dense<0.000000e+00> : vector<16x128xf32>
    %187 = tpu.matmul %186, %16, %cst_150 {dimension_numbers = #tpu.dot_dimension_numbers<[1], [0], [0], [1], [0, 0, 1, 1], [], []>} : vector<16x128xf32>, vector<128x128xf32>, vector<16x128xf32> -> vector<16x128xf32>
    %188 = arith.addf %184, %187 : vector<16x128xf32>
    %189 = arith.addf %188, %22 : vector<16x128xf32>
    %190 = math.tanh %189 : vector<16x128xf32>
    %c1_151 = arith.constant 1 : index
    %c0_152 = arith.constant 0 : index
    %c0_153 = arith.constant 0 : index
    %191 = vector.load %arg13[%c1_151, %c0_152, %c0_153] : memref<2x16x128xf32, #tpu.memory_space<vmem>>, vector<1x16x128xf32>
    %192 = vector.shape_cast %191 : vector<1x16x128xf32> to vector<16x128xf32>
    %193 = vector.shape_cast %190 : vector<16x128xf32> to vector<1x16x128xf32>
    tpu.vector_store %arg13[%c1_151, %c0_152, %c0_153], %193 {strides = array<i32>} : memref<2x16x128xf32, #tpu.memory_space<vmem>>, vector<1x16x128xf32>,
    %194 = arith.index_cast %c6_i32 : i32 to index
    %c0_154 = arith.constant 0 : index
    %c0_155 = arith.constant 0 : index
    %195 = vector.load %arg8[%194, %c0_154, %c0_155] : memref<16x16x128xf32, #tpu.memory_space<vmem>>, vector<1x16x128xf32>
    %196 = vector.shape_cast %195 : vector<1x16x128xf32> to vector<16x128xf32>
    %197 = vector.shape_cast %190 : vector<16x128xf32> to vector<1x16x128xf32>
    tpu.vector_store %arg8[%194, %c0_154, %c0_155], %197 {strides = array<i32>} : memref<16x16x128xf32, #tpu.memory_space<vmem>>, vector<1x16x128xf32>,
    %c7_i32 = arith.constant 7 : i32
    %198 = arith.index_cast %c7_i32 : i32 to index
    %c0_156 = arith.constant 0 : index
    %c0_157 = arith.constant 0 : index
    %199 = vector.load %arg14[%198, %c0_156, %c0_157] : memref<16x16x128xf32, #tpu.memory_space<vmem>>, vector<1x16x128xf32>
    %200 = vector.shape_cast %199 : vector<1x16x128xf32> to vector<16x128xf32>
    %c0_158 = arith.constant 0 : index
    %c0_159 = arith.constant 0 : index
    %c0_160 = arith.constant 0 : index
    %201 = vector.load %arg13[%c0_158, %c0_159, %c0_160] : memref<2x16x128xf32, #tpu.memory_space<vmem>>, vector<1x16x128xf32>
    %202 = vector.shape_cast %201 : vector<1x16x128xf32> to vector<16x128xf32>
    %cst_161 = arith.constant dense<0.000000e+00> : vector<16x128xf32>
    %203 = tpu.matmul %202, %14, %cst_161 {dimension_numbers = #tpu.dot_dimension_numbers<[1], [0], [0], [1], [0, 0, 1, 1], [], []>} : vector<16x128xf32>, vector<128x128xf32>, vector<16x128xf32> -> vector<16x128xf32>
    %204 = arith.addf %200, %203 : vector<16x128xf32>
    %205 = math.tanh %204 : vector<16x128xf32>
    %c0_162 = arith.constant 0 : index
    %c0_163 = arith.constant 0 : index
    %c0_164 = arith.constant 0 : index
    %206 = vector.load %arg13[%c0_162, %c0_163, %c0_164] : memref<2x16x128xf32, #tpu.memory_space<vmem>>, vector<1x16x128xf32>
    %207 = vector.shape_cast %206 : vector<1x16x128xf32> to vector<16x128xf32>
    %208 = vector.shape_cast %205 : vector<16x128xf32> to vector<1x16x128xf32>
    tpu.vector_store %arg13[%c0_162, %c0_163, %c0_164], %208 {strides = array<i32>} : memref<2x16x128xf32, #tpu.memory_space<vmem>>, vector<1x16x128xf32>,
    %cst_165 = arith.constant dense<0.000000e+00> : vector<16x128xf32>
    %209 = tpu.matmul %205, %18, %cst_165 {dimension_numbers = #tpu.dot_dimension_numbers<[1], [0], [0], [1], [0, 0, 1, 1], [], []>} : vector<16x128xf32>, vector<128x128xf32>, vector<16x128xf32> -> vector<16x128xf32>
    %c1_166 = arith.constant 1 : index
    %c0_167 = arith.constant 0 : index
    %c0_168 = arith.constant 0 : index
    %210 = vector.load %arg13[%c1_166, %c0_167, %c0_168] : memref<2x16x128xf32, #tpu.memory_space<vmem>>, vector<1x16x128xf32>
    %211 = vector.shape_cast %210 : vector<1x16x128xf32> to vector<16x128xf32>
    %cst_169 = arith.constant dense<0.000000e+00> : vector<16x128xf32>
    %212 = tpu.matmul %211, %16, %cst_169 {dimension_numbers = #tpu.dot_dimension_numbers<[1], [0], [0], [1], [0, 0, 1, 1], [], []>} : vector<16x128xf32>, vector<128x128xf32>, vector<16x128xf32> -> vector<16x128xf32>
    %213 = arith.addf %209, %212 : vector<16x128xf32>
    %214 = arith.addf %213, %22 : vector<16x128xf32>
    %215 = math.tanh %214 : vector<16x128xf32>
    %c1_170 = arith.constant 1 : index
    %c0_171 = arith.constant 0 : index
    %c0_172 = arith.constant 0 : index
    %216 = vector.load %arg13[%c1_170, %c0_171, %c0_172] : memref<2x16x128xf32, #tpu.memory_space<vmem>>, vector<1x16x128xf32>
    %217 = vector.shape_cast %216 : vector<1x16x128xf32> to vector<16x128xf32>
    %218 = vector.shape_cast %215 : vector<16x128xf32> to vector<1x16x128xf32>
    tpu.vector_store %arg13[%c1_170, %c0_171, %c0_172], %218 {strides = array<i32>} : memref<2x16x128xf32, #tpu.memory_space<vmem>>, vector<1x16x128xf32>,
    %219 = arith.index_cast %c7_i32 : i32 to index
    %c0_173 = arith.constant 0 : index
    %c0_174 = arith.constant 0 : index
    %220 = vector.load %arg8[%219, %c0_173, %c0_174] : memref<16x16x128xf32, #tpu.memory_space<vmem>>, vector<1x16x128xf32>
    %221 = vector.shape_cast %220 : vector<1x16x128xf32> to vector<16x128xf32>
    %222 = vector.shape_cast %215 : vector<16x128xf32> to vector<1x16x128xf32>
    tpu.vector_store %arg8[%219, %c0_173, %c0_174], %222 {strides = array<i32>} : memref<16x16x128xf32, #tpu.memory_space<vmem>>, vector<1x16x128xf32>,
    %c8_i32 = arith.constant 8 : i32
    %223 = arith.index_cast %c8_i32 : i32 to index
    %c0_175 = arith.constant 0 : index
    %c0_176 = arith.constant 0 : index
    %224 = vector.load %arg14[%223, %c0_175, %c0_176] : memref<16x16x128xf32, #tpu.memory_space<vmem>>, vector<1x16x128xf32>
    %225 = vector.shape_cast %224 : vector<1x16x128xf32> to vector<16x128xf32>
    %c0_177 = arith.constant 0 : index
    %c0_178 = arith.constant 0 : index
    %c0_179 = arith.constant 0 : index
    %226 = vector.load %arg13[%c0_177, %c0_178, %c0_179] : memref<2x16x128xf32, #tpu.memory_space<vmem>>, vector<1x16x128xf32>
    %227 = vector.shape_cast %226 : vector<1x16x128xf32> to vector<16x128xf32>
    %cst_180 = arith.constant dense<0.000000e+00> : vector<16x128xf32>
    %228 = tpu.matmul %227, %14, %cst_180 {dimension_numbers = #tpu.dot_dimension_numbers<[1], [0], [0], [1], [0, 0, 1, 1], [], []>} : vector<16x128xf32>, vector<128x128xf32>, vector<16x128xf32> -> vector<16x128xf32>
    %229 = arith.addf %225, %228 : vector<16x128xf32>
    %230 = math.tanh %229 : vector<16x128xf32>
    %c0_181 = arith.constant 0 : index
    %c0_182 = arith.constant 0 : index
    %c0_183 = arith.constant 0 : index
    %231 = vector.load %arg13[%c0_181, %c0_182, %c0_183] : memref<2x16x128xf32, #tpu.memory_space<vmem>>, vector<1x16x128xf32>
    %232 = vector.shape_cast %231 : vector<1x16x128xf32> to vector<16x128xf32>
    %233 = vector.shape_cast %230 : vector<16x128xf32> to vector<1x16x128xf32>
    tpu.vector_store %arg13[%c0_181, %c0_182, %c0_183], %233 {strides = array<i32>} : memref<2x16x128xf32, #tpu.memory_space<vmem>>, vector<1x16x128xf32>,
    %cst_184 = arith.constant dense<0.000000e+00> : vector<16x128xf32>
    %234 = tpu.matmul %230, %18, %cst_184 {dimension_numbers = #tpu.dot_dimension_numbers<[1], [0], [0], [1], [0, 0, 1, 1], [], []>} : vector<16x128xf32>, vector<128x128xf32>, vector<16x128xf32> -> vector<16x128xf32>
    %c1_185 = arith.constant 1 : index
    %c0_186 = arith.constant 0 : index
    %c0_187 = arith.constant 0 : index
    %235 = vector.load %arg13[%c1_185, %c0_186, %c0_187] : memref<2x16x128xf32, #tpu.memory_space<vmem>>, vector<1x16x128xf32>
    %236 = vector.shape_cast %235 : vector<1x16x128xf32> to vector<16x128xf32>
    %cst_188 = arith.constant dense<0.000000e+00> : vector<16x128xf32>
    %237 = tpu.matmul %236, %16, %cst_188 {dimension_numbers = #tpu.dot_dimension_numbers<[1], [0], [0], [1], [0, 0, 1, 1], [], []>} : vector<16x128xf32>, vector<128x128xf32>, vector<16x128xf32> -> vector<16x128xf32>
    %238 = arith.addf %234, %237 : vector<16x128xf32>
    %239 = arith.addf %238, %22 : vector<16x128xf32>
    %240 = math.tanh %239 : vector<16x128xf32>
    %c1_189 = arith.constant 1 : index
    %c0_190 = arith.constant 0 : index
    %c0_191 = arith.constant 0 : index
    %241 = vector.load %arg13[%c1_189, %c0_190, %c0_191] : memref<2x16x128xf32, #tpu.memory_space<vmem>>, vector<1x16x128xf32>
    %242 = vector.shape_cast %241 : vector<1x16x128xf32> to vector<16x128xf32>
    %243 = vector.shape_cast %240 : vector<16x128xf32> to vector<1x16x128xf32>
    tpu.vector_store %arg13[%c1_189, %c0_190, %c0_191], %243 {strides = array<i32>} : memref<2x16x128xf32, #tpu.memory_space<vmem>>, vector<1x16x128xf32>,
    %244 = arith.index_cast %c8_i32 : i32 to index
    %c0_192 = arith.constant 0 : index
    %c0_193 = arith.constant 0 : index
    %245 = vector.load %arg8[%244, %c0_192, %c0_193] : memref<16x16x128xf32, #tpu.memory_space<vmem>>, vector<1x16x128xf32>
    %246 = vector.shape_cast %245 : vector<1x16x128xf32> to vector<16x128xf32>
    %247 = vector.shape_cast %240 : vector<16x128xf32> to vector<1x16x128xf32>
    tpu.vector_store %arg8[%244, %c0_192, %c0_193], %247 {strides = array<i32>} : memref<16x16x128xf32, #tpu.memory_space<vmem>>, vector<1x16x128xf32>,
    %c9_i32 = arith.constant 9 : i32
    %248 = arith.index_cast %c9_i32 : i32 to index
    %c0_194 = arith.constant 0 : index
    %c0_195 = arith.constant 0 : index
    %249 = vector.load %arg14[%248, %c0_194, %c0_195] : memref<16x16x128xf32, #tpu.memory_space<vmem>>, vector<1x16x128xf32>
    %250 = vector.shape_cast %249 : vector<1x16x128xf32> to vector<16x128xf32>
    %c0_196 = arith.constant 0 : index
    %c0_197 = arith.constant 0 : index
    %c0_198 = arith.constant 0 : index
    %251 = vector.load %arg13[%c0_196, %c0_197, %c0_198] : memref<2x16x128xf32, #tpu.memory_space<vmem>>, vector<1x16x128xf32>
    %252 = vector.shape_cast %251 : vector<1x16x128xf32> to vector<16x128xf32>
    %cst_199 = arith.constant dense<0.000000e+00> : vector<16x128xf32>
    %253 = tpu.matmul %252, %14, %cst_199 {dimension_numbers = #tpu.dot_dimension_numbers<[1], [0], [0], [1], [0, 0, 1, 1], [], []>} : vector<16x128xf32>, vector<128x128xf32>, vector<16x128xf32> -> vector<16x128xf32>
    %254 = arith.addf %250, %253 : vector<16x128xf32>
    %255 = math.tanh %254 : vector<16x128xf32>
    %c0_200 = arith.constant 0 : index
    %c0_201 = arith.constant 0 : index
    %c0_202 = arith.constant 0 : index
    %256 = vector.load %arg13[%c0_200, %c0_201, %c0_202] : memref<2x16x128xf32, #tpu.memory_space<vmem>>, vector<1x16x128xf32>
    %257 = vector.shape_cast %256 : vector<1x16x128xf32> to vector<16x128xf32>
    %258 = vector.shape_cast %255 : vector<16x128xf32> to vector<1x16x128xf32>
    tpu.vector_store %arg13[%c0_200, %c0_201, %c0_202], %258 {strides = array<i32>} : memref<2x16x128xf32, #tpu.memory_space<vmem>>, vector<1x16x128xf32>,
    %cst_203 = arith.constant dense<0.000000e+00> : vector<16x128xf32>
    %259 = tpu.matmul %255, %18, %cst_203 {dimension_numbers = #tpu.dot_dimension_numbers<[1], [0], [0], [1], [0, 0, 1, 1], [], []>} : vector<16x128xf32>, vector<128x128xf32>, vector<16x128xf32> -> vector<16x128xf32>
    %c1_204 = arith.constant 1 : index
    %c0_205 = arith.constant 0 : index
    %c0_206 = arith.constant 0 : index
    %260 = vector.load %arg13[%c1_204, %c0_205, %c0_206] : memref<2x16x128xf32, #tpu.memory_space<vmem>>, vector<1x16x128xf32>
    %261 = vector.shape_cast %260 : vector<1x16x128xf32> to vector<16x128xf32>
    %cst_207 = arith.constant dense<0.000000e+00> : vector<16x128xf32>
    %262 = tpu.matmul %261, %16, %cst_207 {dimension_numbers = #tpu.dot_dimension_numbers<[1], [0], [0], [1], [0, 0, 1, 1], [], []>} : vector<16x128xf32>, vector<128x128xf32>, vector<16x128xf32> -> vector<16x128xf32>
    %263 = arith.addf %259, %262 : vector<16x128xf32>
    %264 = arith.addf %263, %22 : vector<16x128xf32>
    %265 = math.tanh %264 : vector<16x128xf32>
    %c1_208 = arith.constant 1 : index
    %c0_209 = arith.constant 0 : index
    %c0_210 = arith.constant 0 : index
    %266 = vector.load %arg13[%c1_208, %c0_209, %c0_210] : memref<2x16x128xf32, #tpu.memory_space<vmem>>, vector<1x16x128xf32>
    %267 = vector.shape_cast %266 : vector<1x16x128xf32> to vector<16x128xf32>
    %268 = vector.shape_cast %265 : vector<16x128xf32> to vector<1x16x128xf32>
    tpu.vector_store %arg13[%c1_208, %c0_209, %c0_210], %268 {strides = array<i32>} : memref<2x16x128xf32, #tpu.memory_space<vmem>>, vector<1x16x128xf32>,
    %269 = arith.index_cast %c9_i32 : i32 to index
    %c0_211 = arith.constant 0 : index
    %c0_212 = arith.constant 0 : index
    %270 = vector.load %arg8[%269, %c0_211, %c0_212] : memref<16x16x128xf32, #tpu.memory_space<vmem>>, vector<1x16x128xf32>
    %271 = vector.shape_cast %270 : vector<1x16x128xf32> to vector<16x128xf32>
    %272 = vector.shape_cast %265 : vector<16x128xf32> to vector<1x16x128xf32>
    tpu.vector_store %arg8[%269, %c0_211, %c0_212], %272 {strides = array<i32>} : memref<16x16x128xf32, #tpu.memory_space<vmem>>, vector<1x16x128xf32>,
    %c10_i32 = arith.constant 10 : i32
    %273 = arith.index_cast %c10_i32 : i32 to index
    %c0_213 = arith.constant 0 : index
    %c0_214 = arith.constant 0 : index
    %274 = vector.load %arg14[%273, %c0_213, %c0_214] : memref<16x16x128xf32, #tpu.memory_space<vmem>>, vector<1x16x128xf32>
    %275 = vector.shape_cast %274 : vector<1x16x128xf32> to vector<16x128xf32>
    %c0_215 = arith.constant 0 : index
    %c0_216 = arith.constant 0 : index
    %c0_217 = arith.constant 0 : index
    %276 = vector.load %arg13[%c0_215, %c0_216, %c0_217] : memref<2x16x128xf32, #tpu.memory_space<vmem>>, vector<1x16x128xf32>
    %277 = vector.shape_cast %276 : vector<1x16x128xf32> to vector<16x128xf32>
    %cst_218 = arith.constant dense<0.000000e+00> : vector<16x128xf32>
    %278 = tpu.matmul %277, %14, %cst_218 {dimension_numbers = #tpu.dot_dimension_numbers<[1], [0], [0], [1], [0, 0, 1, 1], [], []>} : vector<16x128xf32>, vector<128x128xf32>, vector<16x128xf32> -> vector<16x128xf32>
    %279 = arith.addf %275, %278 : vector<16x128xf32>
    %280 = math.tanh %279 : vector<16x128xf32>
    %c0_219 = arith.constant 0 : index
    %c0_220 = arith.constant 0 : index
    %c0_221 = arith.constant 0 : index
    %281 = vector.load %arg13[%c0_219, %c0_220, %c0_221] : memref<2x16x128xf32, #tpu.memory_space<vmem>>, vector<1x16x128xf32>
    %282 = vector.shape_cast %281 : vector<1x16x128xf32> to vector<16x128xf32>
    %283 = vector.shape_cast %280 : vector<16x128xf32> to vector<1x16x128xf32>
    tpu.vector_store %arg13[%c0_219, %c0_220, %c0_221], %283 {strides = array<i32>} : memref<2x16x128xf32, #tpu.memory_space<vmem>>, vector<1x16x128xf32>,
    %cst_222 = arith.constant dense<0.000000e+00> : vector<16x128xf32>
    %284 = tpu.matmul %280, %18, %cst_222 {dimension_numbers = #tpu.dot_dimension_numbers<[1], [0], [0], [1], [0, 0, 1, 1], [], []>} : vector<16x128xf32>, vector<128x128xf32>, vector<16x128xf32> -> vector<16x128xf32>
    %c1_223 = arith.constant 1 : index
    %c0_224 = arith.constant 0 : index
    %c0_225 = arith.constant 0 : index
    %285 = vector.load %arg13[%c1_223, %c0_224, %c0_225] : memref<2x16x128xf32, #tpu.memory_space<vmem>>, vector<1x16x128xf32>
    %286 = vector.shape_cast %285 : vector<1x16x128xf32> to vector<16x128xf32>
    %cst_226 = arith.constant dense<0.000000e+00> : vector<16x128xf32>
    %287 = tpu.matmul %286, %16, %cst_226 {dimension_numbers = #tpu.dot_dimension_numbers<[1], [0], [0], [1], [0, 0, 1, 1], [], []>} : vector<16x128xf32>, vector<128x128xf32>, vector<16x128xf32> -> vector<16x128xf32>
    %288 = arith.addf %284, %287 : vector<16x128xf32>
    %289 = arith.addf %288, %22 : vector<16x128xf32>
    %290 = math.tanh %289 : vector<16x128xf32>
    %c1_227 = arith.constant 1 : index
    %c0_228 = arith.constant 0 : index
    %c0_229 = arith.constant 0 : index
    %291 = vector.load %arg13[%c1_227, %c0_228, %c0_229] : memref<2x16x128xf32, #tpu.memory_space<vmem>>, vector<1x16x128xf32>
    %292 = vector.shape_cast %291 : vector<1x16x128xf32> to vector<16x128xf32>
    %293 = vector.shape_cast %290 : vector<16x128xf32> to vector<1x16x128xf32>
    tpu.vector_store %arg13[%c1_227, %c0_228, %c0_229], %293 {strides = array<i32>} : memref<2x16x128xf32, #tpu.memory_space<vmem>>, vector<1x16x128xf32>,
    %294 = arith.index_cast %c10_i32 : i32 to index
    %c0_230 = arith.constant 0 : index
    %c0_231 = arith.constant 0 : index
    %295 = vector.load %arg8[%294, %c0_230, %c0_231] : memref<16x16x128xf32, #tpu.memory_space<vmem>>, vector<1x16x128xf32>
    %296 = vector.shape_cast %295 : vector<1x16x128xf32> to vector<16x128xf32>
    %297 = vector.shape_cast %290 : vector<16x128xf32> to vector<1x16x128xf32>
    tpu.vector_store %arg8[%294, %c0_230, %c0_231], %297 {strides = array<i32>} : memref<16x16x128xf32, #tpu.memory_space<vmem>>, vector<1x16x128xf32>,
    %c11_i32 = arith.constant 11 : i32
    %298 = arith.index_cast %c11_i32 : i32 to index
    %c0_232 = arith.constant 0 : index
    %c0_233 = arith.constant 0 : index
    %299 = vector.load %arg14[%298, %c0_232, %c0_233] : memref<16x16x128xf32, #tpu.memory_space<vmem>>, vector<1x16x128xf32>
    %300 = vector.shape_cast %299 : vector<1x16x128xf32> to vector<16x128xf32>
    %c0_234 = arith.constant 0 : index
    %c0_235 = arith.constant 0 : index
    %c0_236 = arith.constant 0 : index
    %301 = vector.load %arg13[%c0_234, %c0_235, %c0_236] : memref<2x16x128xf32, #tpu.memory_space<vmem>>, vector<1x16x128xf32>
    %302 = vector.shape_cast %301 : vector<1x16x128xf32> to vector<16x128xf32>
    %cst_237 = arith.constant dense<0.000000e+00> : vector<16x128xf32>
    %303 = tpu.matmul %302, %14, %cst_237 {dimension_numbers = #tpu.dot_dimension_numbers<[1], [0], [0], [1], [0, 0, 1, 1], [], []>} : vector<16x128xf32>, vector<128x128xf32>, vector<16x128xf32> -> vector<16x128xf32>
    %304 = arith.addf %300, %303 : vector<16x128xf32>
    %305 = math.tanh %304 : vector<16x128xf32>
    %c0_238 = arith.constant 0 : index
    %c0_239 = arith.constant 0 : index
    %c0_240 = arith.constant 0 : index
    %306 = vector.load %arg13[%c0_238, %c0_239, %c0_240] : memref<2x16x128xf32, #tpu.memory_space<vmem>>, vector<1x16x128xf32>
    %307 = vector.shape_cast %306 : vector<1x16x128xf32> to vector<16x128xf32>
    %308 = vector.shape_cast %305 : vector<16x128xf32> to vector<1x16x128xf32>
    tpu.vector_store %arg13[%c0_238, %c0_239, %c0_240], %308 {strides = array<i32>} : memref<2x16x128xf32, #tpu.memory_space<vmem>>, vector<1x16x128xf32>,
    %cst_241 = arith.constant dense<0.000000e+00> : vector<16x128xf32>
    %309 = tpu.matmul %305, %18, %cst_241 {dimension_numbers = #tpu.dot_dimension_numbers<[1], [0], [0], [1], [0, 0, 1, 1], [], []>} : vector<16x128xf32>, vector<128x128xf32>, vector<16x128xf32> -> vector<16x128xf32>
    %c1_242 = arith.constant 1 : index
    %c0_243 = arith.constant 0 : index
    %c0_244 = arith.constant 0 : index
    %310 = vector.load %arg13[%c1_242, %c0_243, %c0_244] : memref<2x16x128xf32, #tpu.memory_space<vmem>>, vector<1x16x128xf32>
    %311 = vector.shape_cast %310 : vector<1x16x128xf32> to vector<16x128xf32>
    %cst_245 = arith.constant dense<0.000000e+00> : vector<16x128xf32>
    %312 = tpu.matmul %311, %16, %cst_245 {dimension_numbers = #tpu.dot_dimension_numbers<[1], [0], [0], [1], [0, 0, 1, 1], [], []>} : vector<16x128xf32>, vector<128x128xf32>, vector<16x128xf32> -> vector<16x128xf32>
    %313 = arith.addf %309, %312 : vector<16x128xf32>
    %314 = arith.addf %313, %22 : vector<16x128xf32>
    %315 = math.tanh %314 : vector<16x128xf32>
    %c1_246 = arith.constant 1 : index
    %c0_247 = arith.constant 0 : index
    %c0_248 = arith.constant 0 : index
    %316 = vector.load %arg13[%c1_246, %c0_247, %c0_248] : memref<2x16x128xf32, #tpu.memory_space<vmem>>, vector<1x16x128xf32>
    %317 = vector.shape_cast %316 : vector<1x16x128xf32> to vector<16x128xf32>
    %318 = vector.shape_cast %315 : vector<16x128xf32> to vector<1x16x128xf32>
    tpu.vector_store %arg13[%c1_246, %c0_247, %c0_248], %318 {strides = array<i32>} : memref<2x16x128xf32, #tpu.memory_space<vmem>>, vector<1x16x128xf32>,
    %319 = arith.index_cast %c11_i32 : i32 to index
    %c0_249 = arith.constant 0 : index
    %c0_250 = arith.constant 0 : index
    %320 = vector.load %arg8[%319, %c0_249, %c0_250] : memref<16x16x128xf32, #tpu.memory_space<vmem>>, vector<1x16x128xf32>
    %321 = vector.shape_cast %320 : vector<1x16x128xf32> to vector<16x128xf32>
    %322 = vector.shape_cast %315 : vector<16x128xf32> to vector<1x16x128xf32>
    tpu.vector_store %arg8[%319, %c0_249, %c0_250], %322 {strides = array<i32>} : memref<16x16x128xf32, #tpu.memory_space<vmem>>, vector<1x16x128xf32>,
    %c12_i32 = arith.constant 12 : i32
    %323 = arith.index_cast %c12_i32 : i32 to index
    %c0_251 = arith.constant 0 : index
    %c0_252 = arith.constant 0 : index
    %324 = vector.load %arg14[%323, %c0_251, %c0_252] : memref<16x16x128xf32, #tpu.memory_space<vmem>>, vector<1x16x128xf32>
    %325 = vector.shape_cast %324 : vector<1x16x128xf32> to vector<16x128xf32>
    %c0_253 = arith.constant 0 : index
    %c0_254 = arith.constant 0 : index
    %c0_255 = arith.constant 0 : index
    %326 = vector.load %arg13[%c0_253, %c0_254, %c0_255] : memref<2x16x128xf32, #tpu.memory_space<vmem>>, vector<1x16x128xf32>
    %327 = vector.shape_cast %326 : vector<1x16x128xf32> to vector<16x128xf32>
    %cst_256 = arith.constant dense<0.000000e+00> : vector<16x128xf32>
    %328 = tpu.matmul %327, %14, %cst_256 {dimension_numbers = #tpu.dot_dimension_numbers<[1], [0], [0], [1], [0, 0, 1, 1], [], []>} : vector<16x128xf32>, vector<128x128xf32>, vector<16x128xf32> -> vector<16x128xf32>
    %329 = arith.addf %325, %328 : vector<16x128xf32>
    %330 = math.tanh %329 : vector<16x128xf32>
    %c0_257 = arith.constant 0 : index
    %c0_258 = arith.constant 0 : index
    %c0_259 = arith.constant 0 : index
    %331 = vector.load %arg13[%c0_257, %c0_258, %c0_259] : memref<2x16x128xf32, #tpu.memory_space<vmem>>, vector<1x16x128xf32>
    %332 = vector.shape_cast %331 : vector<1x16x128xf32> to vector<16x128xf32>
    %333 = vector.shape_cast %330 : vector<16x128xf32> to vector<1x16x128xf32>
    tpu.vector_store %arg13[%c0_257, %c0_258, %c0_259], %333 {strides = array<i32>} : memref<2x16x128xf32, #tpu.memory_space<vmem>>, vector<1x16x128xf32>,
    %cst_260 = arith.constant dense<0.000000e+00> : vector<16x128xf32>
    %334 = tpu.matmul %330, %18, %cst_260 {dimension_numbers = #tpu.dot_dimension_numbers<[1], [0], [0], [1], [0, 0, 1, 1], [], []>} : vector<16x128xf32>, vector<128x128xf32>, vector<16x128xf32> -> vector<16x128xf32>
    %c1_261 = arith.constant 1 : index
    %c0_262 = arith.constant 0 : index
    %c0_263 = arith.constant 0 : index
    %335 = vector.load %arg13[%c1_261, %c0_262, %c0_263] : memref<2x16x128xf32, #tpu.memory_space<vmem>>, vector<1x16x128xf32>
    %336 = vector.shape_cast %335 : vector<1x16x128xf32> to vector<16x128xf32>
    %cst_264 = arith.constant dense<0.000000e+00> : vector<16x128xf32>
    %337 = tpu.matmul %336, %16, %cst_264 {dimension_numbers = #tpu.dot_dimension_numbers<[1], [0], [0], [1], [0, 0, 1, 1], [], []>} : vector<16x128xf32>, vector<128x128xf32>, vector<16x128xf32> -> vector<16x128xf32>
    %338 = arith.addf %334, %337 : vector<16x128xf32>
    %339 = arith.addf %338, %22 : vector<16x128xf32>
    %340 = math.tanh %339 : vector<16x128xf32>
    %c1_265 = arith.constant 1 : index
    %c0_266 = arith.constant 0 : index
    %c0_267 = arith.constant 0 : index
    %341 = vector.load %arg13[%c1_265, %c0_266, %c0_267] : memref<2x16x128xf32, #tpu.memory_space<vmem>>, vector<1x16x128xf32>
    %342 = vector.shape_cast %341 : vector<1x16x128xf32> to vector<16x128xf32>
    %343 = vector.shape_cast %340 : vector<16x128xf32> to vector<1x16x128xf32>
    tpu.vector_store %arg13[%c1_265, %c0_266, %c0_267], %343 {strides = array<i32>} : memref<2x16x128xf32, #tpu.memory_space<vmem>>, vector<1x16x128xf32>,
    %344 = arith.index_cast %c12_i32 : i32 to index
    %c0_268 = arith.constant 0 : index
    %c0_269 = arith.constant 0 : index
    %345 = vector.load %arg8[%344, %c0_268, %c0_269] : memref<16x16x128xf32, #tpu.memory_space<vmem>>, vector<1x16x128xf32>
    %346 = vector.shape_cast %345 : vector<1x16x128xf32> to vector<16x128xf32>
    %347 = vector.shape_cast %340 : vector<16x128xf32> to vector<1x16x128xf32>
    tpu.vector_store %arg8[%344, %c0_268, %c0_269], %347 {strides = array<i32>} : memref<16x16x128xf32, #tpu.memory_space<vmem>>, vector<1x16x128xf32>,
    %c13_i32 = arith.constant 13 : i32
    %348 = arith.index_cast %c13_i32 : i32 to index
    %c0_270 = arith.constant 0 : index
    %c0_271 = arith.constant 0 : index
    %349 = vector.load %arg14[%348, %c0_270, %c0_271] : memref<16x16x128xf32, #tpu.memory_space<vmem>>, vector<1x16x128xf32>
    %350 = vector.shape_cast %349 : vector<1x16x128xf32> to vector<16x128xf32>
    %c0_272 = arith.constant 0 : index
    %c0_273 = arith.constant 0 : index
    %c0_274 = arith.constant 0 : index
    %351 = vector.load %arg13[%c0_272, %c0_273, %c0_274] : memref<2x16x128xf32, #tpu.memory_space<vmem>>, vector<1x16x128xf32>
    %352 = vector.shape_cast %351 : vector<1x16x128xf32> to vector<16x128xf32>
    %cst_275 = arith.constant dense<0.000000e+00> : vector<16x128xf32>
    %353 = tpu.matmul %352, %14, %cst_275 {dimension_numbers = #tpu.dot_dimension_numbers<[1], [0], [0], [1], [0, 0, 1, 1], [], []>} : vector<16x128xf32>, vector<128x128xf32>, vector<16x128xf32> -> vector<16x128xf32>
    %354 = arith.addf %350, %353 : vector<16x128xf32>
    %355 = math.tanh %354 : vector<16x128xf32>
    %c0_276 = arith.constant 0 : index
    %c0_277 = arith.constant 0 : index
    %c0_278 = arith.constant 0 : index
    %356 = vector.load %arg13[%c0_276, %c0_277, %c0_278] : memref<2x16x128xf32, #tpu.memory_space<vmem>>, vector<1x16x128xf32>
    %357 = vector.shape_cast %356 : vector<1x16x128xf32> to vector<16x128xf32>
    %358 = vector.shape_cast %355 : vector<16x128xf32> to vector<1x16x128xf32>
    tpu.vector_store %arg13[%c0_276, %c0_277, %c0_278], %358 {strides = array<i32>} : memref<2x16x128xf32, #tpu.memory_space<vmem>>, vector<1x16x128xf32>,
    %cst_279 = arith.constant dense<0.000000e+00> : vector<16x128xf32>
    %359 = tpu.matmul %355, %18, %cst_279 {dimension_numbers = #tpu.dot_dimension_numbers<[1], [0], [0], [1], [0, 0, 1, 1], [], []>} : vector<16x128xf32>, vector<128x128xf32>, vector<16x128xf32> -> vector<16x128xf32>
    %c1_280 = arith.constant 1 : index
    %c0_281 = arith.constant 0 : index
    %c0_282 = arith.constant 0 : index
    %360 = vector.load %arg13[%c1_280, %c0_281, %c0_282] : memref<2x16x128xf32, #tpu.memory_space<vmem>>, vector<1x16x128xf32>
    %361 = vector.shape_cast %360 : vector<1x16x128xf32> to vector<16x128xf32>
    %cst_283 = arith.constant dense<0.000000e+00> : vector<16x128xf32>
    %362 = tpu.matmul %361, %16, %cst_283 {dimension_numbers = #tpu.dot_dimension_numbers<[1], [0], [0], [1], [0, 0, 1, 1], [], []>} : vector<16x128xf32>, vector<128x128xf32>, vector<16x128xf32> -> vector<16x128xf32>
    %363 = arith.addf %359, %362 : vector<16x128xf32>
    %364 = arith.addf %363, %22 : vector<16x128xf32>
    %365 = math.tanh %364 : vector<16x128xf32>
    %c1_284 = arith.constant 1 : index
    %c0_285 = arith.constant 0 : index
    %c0_286 = arith.constant 0 : index
    %366 = vector.load %arg13[%c1_284, %c0_285, %c0_286] : memref<2x16x128xf32, #tpu.memory_space<vmem>>, vector<1x16x128xf32>
    %367 = vector.shape_cast %366 : vector<1x16x128xf32> to vector<16x128xf32>
    %368 = vector.shape_cast %365 : vector<16x128xf32> to vector<1x16x128xf32>
    tpu.vector_store %arg13[%c1_284, %c0_285, %c0_286], %368 {strides = array<i32>} : memref<2x16x128xf32, #tpu.memory_space<vmem>>, vector<1x16x128xf32>,
    %369 = arith.index_cast %c13_i32 : i32 to index
    %c0_287 = arith.constant 0 : index
    %c0_288 = arith.constant 0 : index
    %370 = vector.load %arg8[%369, %c0_287, %c0_288] : memref<16x16x128xf32, #tpu.memory_space<vmem>>, vector<1x16x128xf32>
    %371 = vector.shape_cast %370 : vector<1x16x128xf32> to vector<16x128xf32>
    %372 = vector.shape_cast %365 : vector<16x128xf32> to vector<1x16x128xf32>
    tpu.vector_store %arg8[%369, %c0_287, %c0_288], %372 {strides = array<i32>} : memref<16x16x128xf32, #tpu.memory_space<vmem>>, vector<1x16x128xf32>,
    %c14_i32 = arith.constant 14 : i32
    %373 = arith.index_cast %c14_i32 : i32 to index
    %c0_289 = arith.constant 0 : index
    %c0_290 = arith.constant 0 : index
    %374 = vector.load %arg14[%373, %c0_289, %c0_290] : memref<16x16x128xf32, #tpu.memory_space<vmem>>, vector<1x16x128xf32>
    %375 = vector.shape_cast %374 : vector<1x16x128xf32> to vector<16x128xf32>
    %c0_291 = arith.constant 0 : index
    %c0_292 = arith.constant 0 : index
    %c0_293 = arith.constant 0 : index
    %376 = vector.load %arg13[%c0_291, %c0_292, %c0_293] : memref<2x16x128xf32, #tpu.memory_space<vmem>>, vector<1x16x128xf32>
    %377 = vector.shape_cast %376 : vector<1x16x128xf32> to vector<16x128xf32>
    %cst_294 = arith.constant dense<0.000000e+00> : vector<16x128xf32>
    %378 = tpu.matmul %377, %14, %cst_294 {dimension_numbers = #tpu.dot_dimension_numbers<[1], [0], [0], [1], [0, 0, 1, 1], [], []>} : vector<16x128xf32>, vector<128x128xf32>, vector<16x128xf32> -> vector<16x128xf32>
    %379 = arith.addf %375, %378 : vector<16x128xf32>
    %380 = math.tanh %379 : vector<16x128xf32>
    %c0_295 = arith.constant 0 : index
    %c0_296 = arith.constant 0 : index
    %c0_297 = arith.constant 0 : index
    %381 = vector.load %arg13[%c0_295, %c0_296, %c0_297] : memref<2x16x128xf32, #tpu.memory_space<vmem>>, vector<1x16x128xf32>
    %382 = vector.shape_cast %381 : vector<1x16x128xf32> to vector<16x128xf32>
    %383 = vector.shape_cast %380 : vector<16x128xf32> to vector<1x16x128xf32>
    tpu.vector_store %arg13[%c0_295, %c0_296, %c0_297], %383 {strides = array<i32>} : memref<2x16x128xf32, #tpu.memory_space<vmem>>, vector<1x16x128xf32>,
    %cst_298 = arith.constant dense<0.000000e+00> : vector<16x128xf32>
    %384 = tpu.matmul %380, %18, %cst_298 {dimension_numbers = #tpu.dot_dimension_numbers<[1], [0], [0], [1], [0, 0, 1, 1], [], []>} : vector<16x128xf32>, vector<128x128xf32>, vector<16x128xf32> -> vector<16x128xf32>
    %c1_299 = arith.constant 1 : index
    %c0_300 = arith.constant 0 : index
    %c0_301 = arith.constant 0 : index
    %385 = vector.load %arg13[%c1_299, %c0_300, %c0_301] : memref<2x16x128xf32, #tpu.memory_space<vmem>>, vector<1x16x128xf32>
    %386 = vector.shape_cast %385 : vector<1x16x128xf32> to vector<16x128xf32>
    %cst_302 = arith.constant dense<0.000000e+00> : vector<16x128xf32>
    %387 = tpu.matmul %386, %16, %cst_302 {dimension_numbers = #tpu.dot_dimension_numbers<[1], [0], [0], [1], [0, 0, 1, 1], [], []>} : vector<16x128xf32>, vector<128x128xf32>, vector<16x128xf32> -> vector<16x128xf32>
    %388 = arith.addf %384, %387 : vector<16x128xf32>
    %389 = arith.addf %388, %22 : vector<16x128xf32>
    %390 = math.tanh %389 : vector<16x128xf32>
    %c1_303 = arith.constant 1 : index
    %c0_304 = arith.constant 0 : index
    %c0_305 = arith.constant 0 : index
    %391 = vector.load %arg13[%c1_303, %c0_304, %c0_305] : memref<2x16x128xf32, #tpu.memory_space<vmem>>, vector<1x16x128xf32>
    %392 = vector.shape_cast %391 : vector<1x16x128xf32> to vector<16x128xf32>
    %393 = vector.shape_cast %390 : vector<16x128xf32> to vector<1x16x128xf32>
    tpu.vector_store %arg13[%c1_303, %c0_304, %c0_305], %393 {strides = array<i32>} : memref<2x16x128xf32, #tpu.memory_space<vmem>>, vector<1x16x128xf32>,
    %394 = arith.index_cast %c14_i32 : i32 to index
    %c0_306 = arith.constant 0 : index
    %c0_307 = arith.constant 0 : index
    %395 = vector.load %arg8[%394, %c0_306, %c0_307] : memref<16x16x128xf32, #tpu.memory_space<vmem>>, vector<1x16x128xf32>
    %396 = vector.shape_cast %395 : vector<1x16x128xf32> to vector<16x128xf32>
    %397 = vector.shape_cast %390 : vector<16x128xf32> to vector<1x16x128xf32>
    tpu.vector_store %arg8[%394, %c0_306, %c0_307], %397 {strides = array<i32>} : memref<16x16x128xf32, #tpu.memory_space<vmem>>, vector<1x16x128xf32>,
    %c15_i32 = arith.constant 15 : i32
    %398 = arith.index_cast %c15_i32 : i32 to index
    %c0_308 = arith.constant 0 : index
    %c0_309 = arith.constant 0 : index
    %399 = vector.load %arg14[%398, %c0_308, %c0_309] : memref<16x16x128xf32, #tpu.memory_space<vmem>>, vector<1x16x128xf32>
    %400 = vector.shape_cast %399 : vector<1x16x128xf32> to vector<16x128xf32>
    %c0_310 = arith.constant 0 : index
    %c0_311 = arith.constant 0 : index
    %c0_312 = arith.constant 0 : index
    %401 = vector.load %arg13[%c0_310, %c0_311, %c0_312] : memref<2x16x128xf32, #tpu.memory_space<vmem>>, vector<1x16x128xf32>
    %402 = vector.shape_cast %401 : vector<1x16x128xf32> to vector<16x128xf32>
    %cst_313 = arith.constant dense<0.000000e+00> : vector<16x128xf32>
    %403 = tpu.matmul %402, %14, %cst_313 {dimension_numbers = #tpu.dot_dimension_numbers<[1], [0], [0], [1], [0, 0, 1, 1], [], []>} : vector<16x128xf32>, vector<128x128xf32>, vector<16x128xf32> -> vector<16x128xf32>
    %404 = arith.addf %400, %403 : vector<16x128xf32>
    %405 = math.tanh %404 : vector<16x128xf32>
    %c0_314 = arith.constant 0 : index
    %c0_315 = arith.constant 0 : index
    %c0_316 = arith.constant 0 : index
    %406 = vector.load %arg13[%c0_314, %c0_315, %c0_316] : memref<2x16x128xf32, #tpu.memory_space<vmem>>, vector<1x16x128xf32>
    %407 = vector.shape_cast %406 : vector<1x16x128xf32> to vector<16x128xf32>
    %408 = vector.shape_cast %405 : vector<16x128xf32> to vector<1x16x128xf32>
    tpu.vector_store %arg13[%c0_314, %c0_315, %c0_316], %408 {strides = array<i32>} : memref<2x16x128xf32, #tpu.memory_space<vmem>>, vector<1x16x128xf32>,
    %cst_317 = arith.constant dense<0.000000e+00> : vector<16x128xf32>
    %409 = tpu.matmul %405, %18, %cst_317 {dimension_numbers = #tpu.dot_dimension_numbers<[1], [0], [0], [1], [0, 0, 1, 1], [], []>} : vector<16x128xf32>, vector<128x128xf32>, vector<16x128xf32> -> vector<16x128xf32>
    %c1_318 = arith.constant 1 : index
    %c0_319 = arith.constant 0 : index
    %c0_320 = arith.constant 0 : index
    %410 = vector.load %arg13[%c1_318, %c0_319, %c0_320] : memref<2x16x128xf32, #tpu.memory_space<vmem>>, vector<1x16x128xf32>
    %411 = vector.shape_cast %410 : vector<1x16x128xf32> to vector<16x128xf32>
    %cst_321 = arith.constant dense<0.000000e+00> : vector<16x128xf32>
    %412 = tpu.matmul %411, %16, %cst_321 {dimension_numbers = #tpu.dot_dimension_numbers<[1], [0], [0], [1], [0, 0, 1, 1], [], []>} : vector<16x128xf32>, vector<128x128xf32>, vector<16x128xf32> -> vector<16x128xf32>
    %413 = arith.addf %409, %412 : vector<16x128xf32>
    %414 = arith.addf %413, %22 : vector<16x128xf32>
    %415 = math.tanh %414 : vector<16x128xf32>
    %c1_322 = arith.constant 1 : index
    %c0_323 = arith.constant 0 : index
    %c0_324 = arith.constant 0 : index
    %416 = vector.load %arg13[%c1_322, %c0_323, %c0_324] : memref<2x16x128xf32, #tpu.memory_space<vmem>>, vector<1x16x128xf32>
    %417 = vector.shape_cast %416 : vector<1x16x128xf32> to vector<16x128xf32>
    %418 = vector.shape_cast %415 : vector<16x128xf32> to vector<1x16x128xf32>
    tpu.vector_store %arg13[%c1_322, %c0_323, %c0_324], %418 {strides = array<i32>} : memref<2x16x128xf32, #tpu.memory_space<vmem>>, vector<1x16x128xf32>,
    %419 = arith.index_cast %c15_i32 : i32 to index
    %c0_325 = arith.constant 0 : index
    %c0_326 = arith.constant 0 : index
    %420 = vector.load %arg8[%419, %c0_325, %c0_326] : memref<16x16x128xf32, #tpu.memory_space<vmem>>, vector<1x16x128xf32>
    %421 = vector.shape_cast %420 : vector<1x16x128xf32> to vector<16x128xf32>
    %422 = vector.shape_cast %415 : vector<16x128xf32> to vector<1x16x128xf32>
    tpu.vector_store %arg8[%419, %c0_325, %c0_326], %422 {strides = array<i32>} : memref<16x16x128xf32, #tpu.memory_space<vmem>>, vector<1x16x128xf32>,
    %c16_i32 = arith.constant 16 : i32
    %c0_i32_327 = arith.constant 0 : i32
    %423 = arith.cmpi eq, %arg1, %c0_i32_327 : i32
    %424 = arith.extui %423 : i1 to i32
    %c0_i32_328 = arith.constant 0 : i32
    %425 = arith.cmpi ne, %424, %c0_i32_328 : i32
    scf.if %425 {
      %c0_329 = arith.constant 0 : index
      %c0_330 = arith.constant 0 : index
      %c0_331 = arith.constant 0 : index
      %426 = vector.load %arg13[%c0_329, %c0_330, %c0_331] : memref<2x16x128xf32, #tpu.memory_space<vmem>>, vector<2x16x128xf32>
      %c0_332 = arith.constant 0 : index
      %c0_333 = arith.constant 0 : index
      %c0_334 = arith.constant 0 : index
      %427 = vector.load %arg9[%c0_332, %c0_333, %c0_334] : memref<2x16x128xf32, #tpu.memory_space<vmem>>, vector<2x16x128xf32>
      tpu.vector_store %arg9[%c0_332, %c0_333, %c0_334], %426 {strides = array<i32>} : memref<2x16x128xf32, #tpu.memory_space<vmem>>, vector<2x16x128xf32>,
    } else {
    }
    return
  }
  func.func @transform_0(%arg0: i32, %arg1: i32) -> (i32, i32, i32) {
    %c0_i32 = arith.constant 0 : i32
    %c0_i32_0 = arith.constant 0 : i32
    return %arg1, %arg0, %c0_i32 : i32, i32, i32
  }
  func.func @transform_1(%arg0: i32, %arg1: i32) -> (i32, i32, i32) {
    %c0_i32 = arith.constant 0 : i32
    %c0_i32_0 = arith.constant 0 : i32
    %c0_i32_1 = arith.constant 0 : i32
    return %c0_i32, %arg0, %c0_i32_0 : i32, i32, i32
  }
  func.func @transform_2(%arg0: i32, %arg1: i32) -> (i32, i32, i32) {
    %c0_i32 = arith.constant 0 : i32
    %c0_i32_0 = arith.constant 0 : i32
    %c0_i32_1 = arith.constant 0 : i32
    %c0_i32_2 = arith.constant 0 : i32
    return %c0_i32, %c0_i32_0, %c0_i32_1 : i32, i32, i32
  }
  func.func @transform_6(%arg0: i32, %arg1: i32) -> (i32, i32, i32) {
    %c0_i32 = arith.constant 0 : i32
    %c0_i32_0 = arith.constant 0 : i32
    return %arg1, %arg0, %c0_i32 : i32, i32, i32
  }
  func.func @transform_7(%arg0: i32, %arg1: i32) -> (i32, i32, i32) {
    %c0_i32 = arith.constant 0 : i32
    %c0_i32_0 = arith.constant 0 : i32
    %c0_i32_1 = arith.constant 0 : i32
    return %c0_i32, %arg0, %c0_i32_0 : i32, i32, i32
  }
}

</mosaic_0001>

<llo_original>
// kernel: rnn_forward.3
$region0: #{rnn_forward.3}
  #allocation0 [shape = 'u32[]', space=smem, size = 0x4, offset = 0x4, fixed_abs, tag = 'smem constant byte address 0x4 - core index']
  #allocation1 [shape = 'u32[72,128]{1,0:T(1,128)}', space=vmem, size = 0x9000, scoped, tag = 'internal scratch']
  %s0 = inlined_call_operand.vmem [shape: f32[256,128], index: 0, kind: input, shape index: {}]
  %s1 = inlined_call_operand.vmem [shape: f32[128,512], index: 1, kind: input, shape index: {}]
  %s2 = inlined_call_operand.vmem [shape: f32[1,512], index: 2, kind: input, shape index: {}]
  %s3 = inlined_call_operand.hbm [shape: f32[256,512], index: 3, kind: output, shape index: {}]
  %s4 = sld [smem:[#allocation0]]
  $region22: #{rnn_forward.3} parent=0
    _
  %s6 = ssub.s32 1, %s4
  %s7 = scalar_select 0, %s6, %s4
  $region1: #{rnn_forward.3} parent=0
    #allocation2 [shape = 'u8[524288]{0}', space=vmem, size = 0x80000, scoped, tag = 'output window, operand 0, single buffered']
    #allocation3 [shape = 's32[1]{0}', space=sflag, size = 0x4, scoped, tag = 'scoped memory for rnn_forward.3']
    %8 = vsyncpa [#allocation3], 0
    // Predicated region
    $region2: #{rnn_forward.3} parent=1 // pred_check
      _
    $region3: #{rnn_forward.3} parent=1 // pred_check_branch
      %10 = sbr.rel (0) target = $region5
    $region4: #{rnn_forward.3} parent=1 // pred_region
      _
    $region5: #{rnn_forward.3} parent=1 // pred_fallthru
      _
    // Predicated region
    $region6: #{rnn_forward.3} parent=1 // pred_check
      _
    $region7: #{rnn_forward.3} parent=1 // pred_check_branch
      %12 = sbr.rel (0) target = $region9
    $region8: #{rnn_forward.3} parent=1 // pred_region
      _
    $region9: #{rnn_forward.3} parent=1 // pred_fallthru
      _
    // Predicated region
    $region10: #{rnn_forward.3} parent=1 // pred_check
      _
    $region11: #{rnn_forward.3} parent=1 // pred_check_branch
      %14 = sbr.rel (0) target = $region13
    $region12: #{rnn_forward.3} parent=1 // pred_region
      _
    $region13: #{rnn_forward.3} parent=1 // pred_fallthru
      _
    %v15 = vld [vmem:[%s0] sm:$0xff]
    %v16 = vld [vmem:[%s0 + $0x8] sm:$0xff]
    %v17 = vld [vmem:[%s0 + $0x10] sm:$0xff]
    %v18 = vld [vmem:[%s0 + $0x18] sm:$0xff]
    %v19 = vld [vmem:[%s0 + $0x20] sm:$0xff]
    %v20 = vld [vmem:[%s0 + $0x28] sm:$0xff]
    %v21 = vld [vmem:[%s0 + $0x30] sm:$0xff]
    %v22 = vld [vmem:[%s0 + $0x38] sm:$0xff]
    %v23 = vld [vmem:[%s0 + $0x40] sm:$0xff]
    %v24 = vld [vmem:[%s0 + $0x48] sm:$0xff]
    %v25 = vld [vmem:[%s0 + $0x50] sm:$0xff]
    %v26 = vld [vmem:[%s0 + $0x58] sm:$0xff]
    %v27 = vld [vmem:[%s0 + $0x60] sm:$0xff]
    %v28 = vld [vmem:[%s0 + $0x68] sm:$0xff]
    %v29 = vld [vmem:[%s0 + $0x70] sm:$0xff]
    %v30 = vld [vmem:[%s0 + $0x78] sm:$0xff]
    %v31 = vld [vmem:[%s0 + $0x80] sm:$0xff]
    %v32 = vld [vmem:[%s0 + $0x88] sm:$0xff]
    %v33 = vld [vmem:[%s0 + $0x90] sm:$0xff]
    %v34 = vld [vmem:[%s0 + $0x98] sm:$0xff]
    %v35 = vld [vmem:[%s0 + $0xa0] sm:$0xff]
    %v36 = vld [vmem:[%s0 + $0xa8] sm:$0xff]
    %v37 = vld [vmem:[%s0 + $0xb0] sm:$0xff]
    %v38 = vld [vmem:[%s0 + $0xb8] sm:$0xff]
    %v39 = vld [vmem:[%s0 + $0xc0] sm:$0xff]
    %v40 = vld [vmem:[%s0 + $0xc8] sm:$0xff]
    %v41 = vld [vmem:[%s0 + $0xd0] sm:$0xff]
    %v42 = vld [vmem:[%s0 + $0xd8] sm:$0xff]
    %v43 = vld [vmem:[%s0 + $0xe0] sm:$0xff]
    %v44 = vld [vmem:[%s0 + $0xe8] sm:$0xff]
    %v45 = vld [vmem:[%s0 + $0xf0] sm:$0xff]
    %v46 = vld [vmem:[%s0 + $0xf8] sm:$0xff]
    %v47 = vld [vmem:[%s1] sm:$0xff]
    %v48 = vld [vmem:[%s1 + $0x8] sm:$0xff]
    %v49 = vld [vmem:[%s1 + $0x10] sm:$0xff]
    %v50 = vld [vmem:[%s1 + $0x18] sm:$0xff]
    %v51 = vld [vmem:[%s1 + $0x20] sm:$0xff]
    %v52 = vld [vmem:[%s1 + $0x28] sm:$0xff]
    %v53 = vld [vmem:[%s1 + $0x30] sm:$0xff]
    %v54 = vld [vmem:[%s1 + $0x38] sm:$0xff]
    %v55 = vld [vmem:[%s1 + $0x40] sm:$0xff]
    %v56 = vld [vmem:[%s1 + $0x48] sm:$0xff]
    %v57 = vld [vmem:[%s1 + $0x50] sm:$0xff]
    %v58 = vld [vmem:[%s1 + $0x58] sm:$0xff]
    %v59 = vld [vmem:[%s1 + $0x60] sm:$0xff]
    %v60 = vld [vmem:[%s1 + $0x68] sm:$0xff]
    %v61 = vld [vmem:[%s1 + $0x70] sm:$0xff]
    %v62 = vld [vmem:[%s1 + $0x78] sm:$0xff]
    %v63 = vld [vmem:[%s1 + $0x80] sm:$0xff]
    %v64 = vld [vmem:[%s1 + $0x88] sm:$0xff]
    %v65 = vld [vmem:[%s1 + $0x90] sm:$0xff]
    %v66 = vld [vmem:[%s1 + $0x98] sm:$0xff]
    %v67 = vld [vmem:[%s1 + $0xa0] sm:$0xff]
    %v68 = vld [vmem:[%s1 + $0xa8] sm:$0xff]
    %v69 = vld [vmem:[%s1 + $0xb0] sm:$0xff]
    %v70 = vld [vmem:[%s1 + $0xb8] sm:$0xff]
    %v71 = vld [vmem:[%s1 + $0xc0] sm:$0xff]
    %v72 = vld [vmem:[%s1 + $0xc8] sm:$0xff]
    %v73 = vld [vmem:[%s1 + $0xd0] sm:$0xff]
    %v74 = vld [vmem:[%s1 + $0xd8] sm:$0xff]
    %v75 = vld [vmem:[%s1 + $0xe0] sm:$0xff]
    %v76 = vld [vmem:[%s1 + $0xe8] sm:$0xff]
    %v77 = vld [vmem:[%s1 + $0xf0] sm:$0xff]
    %v78 = vld [vmem:[%s1 + $0xf8] sm:$0xff]
    %v79 = vld [vmem:[%s1 + $0x100] sm:$0xff]
    %v80 = vld [vmem:[%s1 + $0x108] sm:$0xff]
    %v81 = vld [vmem:[%s1 + $0x110] sm:$0xff]
    %v82 = vld [vmem:[%s1 + $0x118] sm:$0xff]
    %v83 = vld [vmem:[%s1 + $0x120] sm:$0xff]
    %v84 = vld [vmem:[%s1 + $0x128] sm:$0xff]
    %v85 = vld [vmem:[%s1 + $0x130] sm:$0xff]
    %v86 = vld [vmem:[%s1 + $0x138] sm:$0xff]
    %v87 = vld [vmem:[%s1 + $0x140] sm:$0xff]
    %v88 = vld [vmem:[%s1 + $0x148] sm:$0xff]
    %v89 = vld [vmem:[%s1 + $0x150] sm:$0xff]
    %v90 = vld [vmem:[%s1 + $0x158] sm:$0xff]
    %v91 = vld [vmem:[%s1 + $0x160] sm:$0xff]
    %v92 = vld [vmem:[%s1 + $0x168] sm:$0xff]
    %v93 = vld [vmem:[%s1 + $0x170] sm:$0xff]
    %v94 = vld [vmem:[%s1 + $0x178] sm:$0xff]
    %v95 = vld [vmem:[%s1 + $0x180] sm:$0xff]
    %v96 = vld [vmem:[%s1 + $0x188] sm:$0xff]
    %v97 = vld [vmem:[%s1 + $0x190] sm:$0xff]
    %v98 = vld [vmem:[%s1 + $0x198] sm:$0xff]
    %v99 = vld [vmem:[%s1 + $0x1a0] sm:$0xff]
    %v100 = vld [vmem:[%s1 + $0x1a8] sm:$0xff]
    %v101 = vld [vmem:[%s1 + $0x1b0] sm:$0xff]
    %v102 = vld [vmem:[%s1 + $0x1b8] sm:$0xff]
    %v103 = vld [vmem:[%s1 + $0x1c0] sm:$0xff]
    %v104 = vld [vmem:[%s1 + $0x1c8] sm:$0xff]
    %v105 = vld [vmem:[%s1 + $0x1d0] sm:$0xff]
    %v106 = vld [vmem:[%s1 + $0x1d8] sm:$0xff]
    %v107 = vld [vmem:[%s1 + $0x1e0] sm:$0xff]
    %v108 = vld [vmem:[%s1 + $0x1e8] sm:$0xff]
    %v109 = vld [vmem:[%s1 + $0x1f0] sm:$0xff]
    %v110 = vld [vmem:[%s1 + $0x1f8] sm:$0xff]
    %v111 = vld [vmem:[%s2] sm:$0xf]
    %v113 = vperm.slane %v111, 0
    %v114 = vperm.slane %v111, 1
    %v115 = vperm.slane %v111, 2
    %v116 = vperm.slane %v111, 3
    %121 = vmatpush.msra.mxu0 %v107
    %122 = vmatpush.msra.mxu0 %v103
    %123 = vmatpush.msra.mxu0 %v99
    %124 = vmatpush.msra.mxu0 %v95
    %125 = vmatpush.msra.mxu0 %v91
    %126 = vmatpush.msra.mxu0 %v87
    %127 = vmatpush.msra.mxu0 %v83
    %128 = vmatpush.msra.mxu0 %v79
    %129 = vmatpush.msra.mxu0 %v75
    %130 = vmatpush.msra.mxu0 %v71
    %131 = vmatpush.msra.mxu0 %v67
    %132 = vmatpush.msra.mxu0 %v63
    %133 = vmatpush.msra.mxu0 %v59
    %134 = vmatpush.msra.mxu0 %v55
    %135 = vmatpush.msra.mxu0 %v51
    %136 = vmatpush.msra.mxu0 %v47
    %137 = vmatmul.f32.gmra.mxu0 %v15
    %v138 = vpop.f32.mrf.mxu0
    %v139 = vadd.f32 %v113, %v138
    %140 = vmatmul.f32.gmra.mxu0 %v16
    %v141 = vpop.f32.mrf.mxu0
    %v142 = vadd.f32 %v113, %v141
    %143 = vmatmul.f32.gmra.mxu0 %v17
    %v144 = vpop.f32.mrf.mxu0
    %v145 = vadd.f32 %v113, %v144
    %146 = vmatmul.f32.gmra.mxu0 %v18
    %v147 = vpop.f32.mrf.mxu0
    %v148 = vadd.f32 %v113, %v147
    %149 = vmatmul.f32.gmra.mxu0 %v19
    %v150 = vpop.f32.mrf.mxu0
    %v151 = vadd.f32 %v113, %v150
    %152 = vmatmul.f32.gmra.mxu0 %v20
    %v153 = vpop.f32.mrf.mxu0
    %v154 = vadd.f32 %v113, %v153
    %155 = vmatmul.f32.gmra.mxu0 %v21
    %v156 = vpop.f32.mrf.mxu0
    %v157 = vadd.f32 %v113, %v156
    %158 = vmatmul.f32.gmra.mxu0 %v22
    %v159 = vpop.f32.mrf.mxu0
    %v160 = vadd.f32 %v113, %v159
    %161 = vmatmul.f32.gmra.mxu0 %v23
    %v162 = vpop.f32.mrf.mxu0
    %v163 = vadd.f32 %v113, %v162
    %164 = vmatmul.f32.gmra.mxu0 %v24
    %v165 = vpop.f32.mrf.mxu0
    %v166 = vadd.f32 %v113, %v165
    %167 = vmatmul.f32.gmra.mxu0 %v25
    %v168 = vpop.f32.mrf.mxu0
    %v169 = vadd.f32 %v113, %v168
    %170 = vmatmul.f32.gmra.mxu0 %v26
    %v171 = vpop.f32.mrf.mxu0
    %v172 = vadd.f32 %v113, %v171
    %173 = vmatmul.f32.gmra.mxu0 %v27
    %v174 = vpop.f32.mrf.mxu0
    %v175 = vadd.f32 %v113, %v174
    %176 = vmatmul.f32.gmra.mxu0 %v28
    %v177 = vpop.f32.mrf.mxu0
    %v178 = vadd.f32 %v113, %v177
    %179 = vmatmul.f32.gmra.mxu0 %v29
    %v180 = vpop.f32.mrf.mxu0
    %v181 = vadd.f32 %v113, %v180
    %182 = vmatmul.f32.gmra.mxu0 %v30
    %v183 = vpop.f32.mrf.mxu0
    %v184 = vadd.f32 %v113, %v183
    %185 = vmatmul.f32.gmra.mxu0 %v31
    %v186 = vpop.f32.mrf.mxu0
    %v187 = vadd.f32 %v113, %v186
    %188 = vmatmul.f32.gmra.mxu0 %v32
    %v189 = vpop.f32.mrf.mxu0
    %v190 = vadd.f32 %v113, %v189
    %191 = vmatmul.f32.gmra.mxu0 %v33
    %v192 = vpop.f32.mrf.mxu0
    %v193 = vadd.f32 %v113, %v192
    %194 = vmatmul.f32.gmra.mxu0 %v34
    %v195 = vpop.f32.mrf.mxu0
    %v196 = vadd.f32 %v113, %v195
    %197 = vmatmul.f32.gmra.mxu0 %v35
    %v198 = vpop.f32.mrf.mxu0
    %v199 = vadd.f32 %v113, %v198
    %200 = vmatmul.f32.gmra.mxu0 %v36
    %v201 = vpop.f32.mrf.mxu0
    %v202 = vadd.f32 %v113, %v201
    %203 = vmatmul.f32.gmra.mxu0 %v37
    %v204 = vpop.f32.mrf.mxu0
    %v205 = vadd.f32 %v113, %v204
    %206 = vmatmul.f32.gmra.mxu0 %v38
    %v207 = vpop.f32.mrf.mxu0
    %v208 = vadd.f32 %v113, %v207
    %209 = vmatmul.f32.gmra.mxu0 %v39
    %v210 = vpop.f32.mrf.mxu0
    %v211 = vadd.f32 %v113, %v210
    %212 = vmatmul.f32.gmra.mxu0 %v40
    %v213 = vpop.f32.mrf.mxu0
    %v214 = vadd.f32 %v113, %v213
    %215 = vmatmul.f32.gmra.mxu0 %v41
    %v216 = vpop.f32.mrf.mxu0
    %v217 = vadd.f32 %v113, %v216
    %218 = vmatmul.f32.gmra.mxu0 %v42
    %v219 = vpop.f32.mrf.mxu0
    %v220 = vadd.f32 %v113, %v219
    %221 = vmatmul.f32.gmra.mxu0 %v43
    %v222 = vpop.f32.mrf.mxu0
    %v223 = vadd.f32 %v113, %v222
    %224 = vmatmul.f32.gmra.mxu0 %v44
    %v225 = vpop.f32.mrf.mxu0
    %v226 = vadd.f32 %v113, %v225
    %227 = vmatmul.f32.gmra.mxu0 %v45
    %v228 = vpop.f32.mrf.mxu0
    %v229 = vadd.f32 %v113, %v228
    %230 = vmatmul.f32.gmra.mxu0 %v46
    %v231 = vpop.f32.mrf.mxu0
    %v232 = vadd.f32 %v113, %v231
    %233 = vdwg.mxu0
    %234 = vmatpush.msra.mxu0 %v108
    %235 = vmatpush.msra.mxu0 %v104
    %236 = vmatpush.msra.mxu0 %v100
    %237 = vmatpush.msra.mxu0 %v96
    %238 = vmatpush.msra.mxu0 %v92
    %239 = vmatpush.msra.mxu0 %v88
    %240 = vmatpush.msra.mxu0 %v84
    %241 = vmatpush.msra.mxu0 %v80
    %242 = vmatpush.msra.mxu0 %v76
    %243 = vmatpush.msra.mxu0 %v72
    %244 = vmatpush.msra.mxu0 %v68
    %245 = vmatpush.msra.mxu0 %v64
    %246 = vmatpush.msra.mxu0 %v60
    %247 = vmatpush.msra.mxu0 %v56
    %248 = vmatpush.msra.mxu0 %v52
    %249 = vmatpush.msra.mxu0 %v48
    %250 = vmatmul.f32.gmra.mxu0 %v15
    %v251 = vpop.f32.mrf.mxu0
    %v252 = vadd.f32 %v114, %v251
    %253 = vmatmul.f32.gmra.mxu0 %v16
    %v254 = vpop.f32.mrf.mxu0
    %v255 = vadd.f32 %v114, %v254
    %256 = vmatmul.f32.gmra.mxu0 %v17
    %v257 = vpop.f32.mrf.mxu0
    %v258 = vadd.f32 %v114, %v257
    %259 = vmatmul.f32.gmra.mxu0 %v18
    %v260 = vpop.f32.mrf.mxu0
    %v261 = vadd.f32 %v114, %v260
    %262 = vmatmul.f32.gmra.mxu0 %v19
    %v263 = vpop.f32.mrf.mxu0
    %v264 = vadd.f32 %v114, %v263
    %265 = vmatmul.f32.gmra.mxu0 %v20
    %v266 = vpop.f32.mrf.mxu0
    %v267 = vadd.f32 %v114, %v266
    %268 = vmatmul.f32.gmra.mxu0 %v21
    %v269 = vpop.f32.mrf.mxu0
    %v270 = vadd.f32 %v114, %v269
    %271 = vmatmul.f32.gmra.mxu0 %v22
    %v272 = vpop.f32.mrf.mxu0
    %v273 = vadd.f32 %v114, %v272
    %274 = vmatmul.f32.gmra.mxu0 %v23
    %v275 = vpop.f32.mrf.mxu0
    %v276 = vadd.f32 %v114, %v275
    %277 = vmatmul.f32.gmra.mxu0 %v24
    %v278 = vpop.f32.mrf.mxu0
    %v279 = vadd.f32 %v114, %v278
    %280 = vmatmul.f32.gmra.mxu0 %v25
    %v281 = vpop.f32.mrf.mxu0
    %v282 = vadd.f32 %v114, %v281
    %283 = vmatmul.f32.gmra.mxu0 %v26
    %v284 = vpop.f32.mrf.mxu0
    %v285 = vadd.f32 %v114, %v284
    %286 = vmatmul.f32.gmra.mxu0 %v27
    %v287 = vpop.f32.mrf.mxu0
    %v288 = vadd.f32 %v114, %v287
    %289 = vmatmul.f32.gmra.mxu0 %v28
    %v290 = vpop.f32.mrf.mxu0
    %v291 = vadd.f32 %v114, %v290
    %292 = vmatmul.f32.gmra.mxu0 %v29
    %v293 = vpop.f32.mrf.mxu0
    %v294 = vadd.f32 %v114, %v293
    %295 = vmatmul.f32.gmra.mxu0 %v30
    %v296 = vpop.f32.mrf.mxu0
    %v297 = vadd.f32 %v114, %v296
    %298 = vmatmul.f32.gmra.mxu0 %v31
    %v299 = vpop.f32.mrf.mxu0
    %v300 = vadd.f32 %v114, %v299
    %301 = vmatmul.f32.gmra.mxu0 %v32
    %v302 = vpop.f32.mrf.mxu0
    %v303 = vadd.f32 %v114, %v302
    %304 = vmatmul.f32.gmra.mxu0 %v33
    %v305 = vpop.f32.mrf.mxu0
    %v306 = vadd.f32 %v114, %v305
    %307 = vmatmul.f32.gmra.mxu0 %v34
    %v308 = vpop.f32.mrf.mxu0
    %v309 = vadd.f32 %v114, %v308
    %310 = vmatmul.f32.gmra.mxu0 %v35
    %v311 = vpop.f32.mrf.mxu0
    %v312 = vadd.f32 %v114, %v311
    %313 = vmatmul.f32.gmra.mxu0 %v36
    %v314 = vpop.f32.mrf.mxu0
    %v315 = vadd.f32 %v114, %v314
    %316 = vmatmul.f32.gmra.mxu0 %v37
    %v317 = vpop.f32.mrf.mxu0
    %v318 = vadd.f32 %v114, %v317
    %319 = vmatmul.f32.gmra.mxu0 %v38
    %v320 = vpop.f32.mrf.mxu0
    %v321 = vadd.f32 %v114, %v320
    %322 = vmatmul.f32.gmra.mxu0 %v39
    %v323 = vpop.f32.mrf.mxu0
    %v324 = vadd.f32 %v114, %v323
    %325 = vmatmul.f32.gmra.mxu0 %v40
    %v326 = vpop.f32.mrf.mxu0
    %v327 = vadd.f32 %v114, %v326
    %328 = vmatmul.f32.gmra.mxu0 %v41
    %v329 = vpop.f32.mrf.mxu0
    %v330 = vadd.f32 %v114, %v329
    %331 = vmatmul.f32.gmra.mxu0 %v42
    %v332 = vpop.f32.mrf.mxu0
    %v333 = vadd.f32 %v114, %v332
    %334 = vmatmul.f32.gmra.mxu0 %v43
    %v335 = vpop.f32.mrf.mxu0
    %v336 = vadd.f32 %v114, %v335
    %337 = vmatmul.f32.gmra.mxu0 %v44
    %v338 = vpop.f32.mrf.mxu0
    %v339 = vadd.f32 %v114, %v338
    %340 = vmatmul.f32.gmra.mxu0 %v45
    %v341 = vpop.f32.mrf.mxu0
    %v342 = vadd.f32 %v114, %v341
    %343 = vmatmul.f32.gmra.mxu0 %v46
    %v344 = vpop.f32.mrf.mxu0
    %v345 = vadd.f32 %v114, %v344
    %346 = vdwg.mxu0
    %347 = vmatpush.msra.mxu0 %v109
    %348 = vmatpush.msra.mxu0 %v105
    %349 = vmatpush.msra.mxu0 %v101
    %350 = vmatpush.msra.mxu0 %v97
    %351 = vmatpush.msra.mxu0 %v93
    %352 = vmatpush.msra.mxu0 %v89
    %353 = vmatpush.msra.mxu0 %v85
    %354 = vmatpush.msra.mxu0 %v81
    %355 = vmatpush.msra.mxu0 %v77
    %356 = vmatpush.msra.mxu0 %v73
    %357 = vmatpush.msra.mxu0 %v69
    %358 = vmatpush.msra.mxu0 %v65
    %359 = vmatpush.msra.mxu0 %v61
    %360 = vmatpush.msra.mxu0 %v57
    %361 = vmatpush.msra.mxu0 %v53
    %362 = vmatpush.msra.mxu0 %v49
    %363 = vmatmul.f32.gmra.mxu0 %v15
    %v364 = vpop.f32.mrf.mxu0
    %v365 = vadd.f32 %v115, %v364
    %366 = vmatmul.f32.gmra.mxu0 %v16
    %v367 = vpop.f32.mrf.mxu0
    %v368 = vadd.f32 %v115, %v367
    %369 = vmatmul.f32.gmra.mxu0 %v17
    %v370 = vpop.f32.mrf.mxu0
    %v371 = vadd.f32 %v115, %v370
    %372 = vmatmul.f32.gmra.mxu0 %v18
    %v373 = vpop.f32.mrf.mxu0
    %v374 = vadd.f32 %v115, %v373
    %375 = vmatmul.f32.gmra.mxu0 %v19
    %v376 = vpop.f32.mrf.mxu0
    %v377 = vadd.f32 %v115, %v376
    %378 = vmatmul.f32.gmra.mxu0 %v20
    %v379 = vpop.f32.mrf.mxu0
    %v380 = vadd.f32 %v115, %v379
    %381 = vmatmul.f32.gmra.mxu0 %v21
    %v382 = vpop.f32.mrf.mxu0
    %v383 = vadd.f32 %v115, %v382
    %384 = vmatmul.f32.gmra.mxu0 %v22
    %v385 = vpop.f32.mrf.mxu0
    %v386 = vadd.f32 %v115, %v385
    %387 = vmatmul.f32.gmra.mxu0 %v23
    %v388 = vpop.f32.mrf.mxu0
    %v389 = vadd.f32 %v115, %v388
    %390 = vmatmul.f32.gmra.mxu0 %v24
    %v391 = vpop.f32.mrf.mxu0
    %v392 = vadd.f32 %v115, %v391
    %393 = vmatmul.f32.gmra.mxu0 %v25
    %v394 = vpop.f32.mrf.mxu0
    %v395 = vadd.f32 %v115, %v394
    %396 = vmatmul.f32.gmra.mxu0 %v26
    %v397 = vpop.f32.mrf.mxu0
    %v398 = vadd.f32 %v115, %v397
    %399 = vmatmul.f32.gmra.mxu0 %v27
    %v400 = vpop.f32.mrf.mxu0
    %v401 = vadd.f32 %v115, %v400
    %402 = vmatmul.f32.gmra.mxu0 %v28
    %v403 = vpop.f32.mrf.mxu0
    %v404 = vadd.f32 %v115, %v403
    %405 = vmatmul.f32.gmra.mxu0 %v29
    %v406 = vpop.f32.mrf.mxu0
    %v407 = vadd.f32 %v115, %v406
    %408 = vmatmul.f32.gmra.mxu0 %v30
    %v409 = vpop.f32.mrf.mxu0
    %v410 = vadd.f32 %v115, %v409
    %411 = vmatmul.f32.gmra.mxu0 %v31
    %v412 = vpop.f32.mrf.mxu0
    %v413 = vadd.f32 %v115, %v412
    %414 = vmatmul.f32.gmra.mxu0 %v32
    %v415 = vpop.f32.mrf.mxu0
    %v416 = vadd.f32 %v115, %v415
    %417 = vmatmul.f32.gmra.mxu0 %v33
    %v418 = vpop.f32.mrf.mxu0
    %v419 = vadd.f32 %v115, %v418
    %420 = vmatmul.f32.gmra.mxu0 %v34
    %v421 = vpop.f32.mrf.mxu0
    %v422 = vadd.f32 %v115, %v421
    %423 = vmatmul.f32.gmra.mxu0 %v35
    %v424 = vpop.f32.mrf.mxu0
    %v425 = vadd.f32 %v115, %v424
    %426 = vmatmul.f32.gmra.mxu0 %v36
    %v427 = vpop.f32.mrf.mxu0
    %v428 = vadd.f32 %v115, %v427
    %429 = vmatmul.f32.gmra.mxu0 %v37
    %v430 = vpop.f32.mrf.mxu0
    %v431 = vadd.f32 %v115, %v430
    %432 = vmatmul.f32.gmra.mxu0 %v38
    %v433 = vpop.f32.mrf.mxu0
    %v434 = vadd.f32 %v115, %v433
    %435 = vmatmul.f32.gmra.mxu0 %v39
    %v436 = vpop.f32.mrf.mxu0
    %v437 = vadd.f32 %v115, %v436
    %438 = vmatmul.f32.gmra.mxu0 %v40
    %v439 = vpop.f32.mrf.mxu0
    %v440 = vadd.f32 %v115, %v439
    %441 = vmatmul.f32.gmra.mxu0 %v41
    %v442 = vpop.f32.mrf.mxu0
    %v443 = vadd.f32 %v115, %v442
    %444 = vmatmul.f32.gmra.mxu0 %v42
    %v445 = vpop.f32.mrf.mxu0
    %v446 = vadd.f32 %v115, %v445
    %447 = vmatmul.f32.gmra.mxu0 %v43
    %v448 = vpop.f32.mrf.mxu0
    %v449 = vadd.f32 %v115, %v448
    %450 = vmatmul.f32.gmra.mxu0 %v44
    %v451 = vpop.f32.mrf.mxu0
    %v452 = vadd.f32 %v115, %v451
    %453 = vmatmul.f32.gmra.mxu0 %v45
    %v454 = vpop.f32.mrf.mxu0
    %v455 = vadd.f32 %v115, %v454
    %456 = vmatmul.f32.gmra.mxu0 %v46
    %v457 = vpop.f32.mrf.mxu0
    %v458 = vadd.f32 %v115, %v457
    %459 = vdwg.mxu0
    %460 = vmatpush.msra.mxu0 %v110
    %461 = vmatpush.msra.mxu0 %v106
    %462 = vmatpush.msra.mxu0 %v102
    %463 = vmatpush.msra.mxu0 %v98
    %464 = vmatpush.msra.mxu0 %v94
    %465 = vmatpush.msra.mxu0 %v90
    %466 = vmatpush.msra.mxu0 %v86
    %467 = vmatpush.msra.mxu0 %v82
    %468 = vmatpush.msra.mxu0 %v78
    %469 = vmatpush.msra.mxu0 %v74
    %470 = vmatpush.msra.mxu0 %v70
    %471 = vmatpush.msra.mxu0 %v66
    %472 = vmatpush.msra.mxu0 %v62
    %473 = vmatpush.msra.mxu0 %v58
    %474 = vmatpush.msra.mxu0 %v54
    %475 = vmatpush.msra.mxu0 %v50
    %476 = vmatmul.f32.gmra.mxu0 %v15
    %v477 = vpop.f32.mrf.mxu0
    %v478 = vadd.f32 %v116, %v477
    %479 = vmatmul.f32.gmra.mxu0 %v16
    %v480 = vpop.f32.mrf.mxu0
    %v481 = vadd.f32 %v116, %v480
    %482 = vmatmul.f32.gmra.mxu0 %v17
    %v483 = vpop.f32.mrf.mxu0
    %v484 = vadd.f32 %v116, %v483
    %485 = vmatmul.f32.gmra.mxu0 %v18
    %v486 = vpop.f32.mrf.mxu0
    %v487 = vadd.f32 %v116, %v486
    %488 = vmatmul.f32.gmra.mxu0 %v19
    %v489 = vpop.f32.mrf.mxu0
    %v490 = vadd.f32 %v116, %v489
    %491 = vmatmul.f32.gmra.mxu0 %v20
    %v492 = vpop.f32.mrf.mxu0
    %v493 = vadd.f32 %v116, %v492
    %494 = vmatmul.f32.gmra.mxu0 %v21
    %v495 = vpop.f32.mrf.mxu0
    %v496 = vadd.f32 %v116, %v495
    %497 = vmatmul.f32.gmra.mxu0 %v22
    %v498 = vpop.f32.mrf.mxu0
    %v499 = vadd.f32 %v116, %v498
    %500 = vmatmul.f32.gmra.mxu0 %v23
    %v501 = vpop.f32.mrf.mxu0
    %v502 = vadd.f32 %v116, %v501
    %503 = vmatmul.f32.gmra.mxu0 %v24
    %v504 = vpop.f32.mrf.mxu0
    %v505 = vadd.f32 %v116, %v504
    %506 = vmatmul.f32.gmra.mxu0 %v25
    %v507 = vpop.f32.mrf.mxu0
    %v508 = vadd.f32 %v116, %v507
    %509 = vmatmul.f32.gmra.mxu0 %v26
    %v510 = vpop.f32.mrf.mxu0
    %v511 = vadd.f32 %v116, %v510
    %512 = vmatmul.f32.gmra.mxu0 %v27
    %v513 = vpop.f32.mrf.mxu0
    %v514 = vadd.f32 %v116, %v513
    %515 = vmatmul.f32.gmra.mxu0 %v28
    %v516 = vpop.f32.mrf.mxu0
    %v517 = vadd.f32 %v116, %v516
    %518 = vmatmul.f32.gmra.mxu0 %v29
    %v519 = vpop.f32.mrf.mxu0
    %v520 = vadd.f32 %v116, %v519
    %521 = vmatmul.f32.gmra.mxu0 %v30
    %v522 = vpop.f32.mrf.mxu0
    %v523 = vadd.f32 %v116, %v522
    %524 = vmatmul.f32.gmra.mxu0 %v31
    %v525 = vpop.f32.mrf.mxu0
    %v526 = vadd.f32 %v116, %v525
    %527 = vmatmul.f32.gmra.mxu0 %v32
    %v528 = vpop.f32.mrf.mxu0
    %v529 = vadd.f32 %v116, %v528
    %530 = vmatmul.f32.gmra.mxu0 %v33
    %v531 = vpop.f32.mrf.mxu0
    %v532 = vadd.f32 %v116, %v531
    %533 = vmatmul.f32.gmra.mxu0 %v34
    %v534 = vpop.f32.mrf.mxu0
    %v535 = vadd.f32 %v116, %v534
    %536 = vmatmul.f32.gmra.mxu0 %v35
    %v537 = vpop.f32.mrf.mxu0
    %v538 = vadd.f32 %v116, %v537
    %539 = vmatmul.f32.gmra.mxu0 %v36
    %v540 = vpop.f32.mrf.mxu0
    %v541 = vadd.f32 %v116, %v540
    %542 = vmatmul.f32.gmra.mxu0 %v37
    %v543 = vpop.f32.mrf.mxu0
    %v544 = vadd.f32 %v116, %v543
    %545 = vmatmul.f32.gmra.mxu0 %v38
    %v546 = vpop.f32.mrf.mxu0
    %v547 = vadd.f32 %v116, %v546
    %548 = vmatmul.f32.gmra.mxu0 %v39
    %v549 = vpop.f32.mrf.mxu0
    %v550 = vadd.f32 %v116, %v549
    %551 = vmatmul.f32.gmra.mxu0 %v40
    %v552 = vpop.f32.mrf.mxu0
    %v553 = vadd.f32 %v116, %v552
    %554 = vmatmul.f32.gmra.mxu0 %v41
    %v555 = vpop.f32.mrf.mxu0
    %v556 = vadd.f32 %v116, %v555
    %557 = vmatmul.f32.gmra.mxu0 %v42
    %v558 = vpop.f32.mrf.mxu0
    %v559 = vadd.f32 %v116, %v558
    %560 = vmatmul.f32.gmra.mxu0 %v43
    %v561 = vpop.f32.mrf.mxu0
    %v562 = vadd.f32 %v116, %v561
    %563 = vmatmul.f32.gmra.mxu0 %v44
    %v564 = vpop.f32.mrf.mxu0
    %v565 = vadd.f32 %v116, %v564
    %566 = vmatmul.f32.gmra.mxu0 %v45
    %v567 = vpop.f32.mrf.mxu0
    %v568 = vadd.f32 %v116, %v567
    %569 = vmatmul.f32.gmra.mxu0 %v46
    %v570 = vpop.f32.mrf.mxu0
    %v571 = vadd.f32 %v116, %v570
    %572 = vdwg.mxu0
    %573 = vst [vmem:[#allocation2] sm:$0xff] %v139
    %574 = vst [vmem:[#allocation2 + $0x8] sm:$0xff] %v252
    %575 = vst [vmem:[#allocation2 + $0x10] sm:$0xff] %v365
    %576 = vst [vmem:[#allocation2 + $0x18] sm:$0xff] %v478
    %577 = vst [vmem:[#allocation2 + $0x20] sm:$0xff] %v142
    %578 = vst [vmem:[#allocation2 + $0x28] sm:$0xff] %v255
    %579 = vst [vmem:[#allocation2 + $0x30] sm:$0xff] %v368
    %580 = vst [vmem:[#allocation2 + $0x38] sm:$0xff] %v481
    %581 = vst [vmem:[#allocation2 + $0x40] sm:$0xff] %v145
    %582 = vst [vmem:[#allocation2 + $0x48] sm:$0xff] %v258
    %583 = vst [vmem:[#allocation2 + $0x50] sm:$0xff] %v371
    %584 = vst [vmem:[#allocation2 + $0x58] sm:$0xff] %v484
    %585 = vst [vmem:[#allocation2 + $0x60] sm:$0xff] %v148
    %586 = vst [vmem:[#allocation2 + $0x68] sm:$0xff] %v261
    %587 = vst [vmem:[#allocation2 + $0x70] sm:$0xff] %v374
    %588 = vst [vmem:[#allocation2 + $0x78] sm:$0xff] %v487
    %589 = vst [vmem:[#allocation2 + $0x80] sm:$0xff] %v151
    %590 = vst [vmem:[#allocation2 + $0x88] sm:$0xff] %v264
    %591 = vst [vmem:[#allocation2 + $0x90] sm:$0xff] %v377
    %592 = vst [vmem:[#allocation2 + $0x98] sm:$0xff] %v490
    %593 = vst [vmem:[#allocation2 + $0xa0] sm:$0xff] %v154
    %594 = vst [vmem:[#allocation2 + $0xa8] sm:$0xff] %v267
    %595 = vst [vmem:[#allocation2 + $0xb0] sm:$0xff] %v380
    %596 = vst [vmem:[#allocation2 + $0xb8] sm:$0xff] %v493
    %597 = vst [vmem:[#allocation2 + $0xc0] sm:$0xff] %v157
    %598 = vst [vmem:[#allocation2 + $0xc8] sm:$0xff] %v270
    %599 = vst [vmem:[#allocation2 + $0xd0] sm:$0xff] %v383
    %600 = vst [vmem:[#allocation2 + $0xd8] sm:$0xff] %v496
    %601 = vst [vmem:[#allocation2 + $0xe0] sm:$0xff] %v160
    %602 = vst [vmem:[#allocation2 + $0xe8] sm:$0xff] %v273
    %603 = vst [vmem:[#allocation2 + $0xf0] sm:$0xff] %v386
    %604 = vst [vmem:[#allocation2 + $0xf8] sm:$0xff] %v499
    %605 = vst [vmem:[#allocation2 + $0x100] sm:$0xff] %v163
    %606 = vst [vmem:[#allocation2 + $0x108] sm:$0xff] %v276
    %607 = vst [vmem:[#allocation2 + $0x110] sm:$0xff] %v389
    %608 = vst [vmem:[#allocation2 + $0x118] sm:$0xff] %v502
    %609 = vst [vmem:[#allocation2 + $0x120] sm:$0xff] %v166
    %610 = vst [vmem:[#allocation2 + $0x128] sm:$0xff] %v279
    %611 = vst [vmem:[#allocation2 + $0x130] sm:$0xff] %v392
    %612 = vst [vmem:[#allocation2 + $0x138] sm:$0xff] %v505
    %613 = vst [vmem:[#allocation2 + $0x140] sm:$0xff] %v169
    %614 = vst [vmem:[#allocation2 + $0x148] sm:$0xff] %v282
    %615 = vst [vmem:[#allocation2 + $0x150] sm:$0xff] %v395
    %616 = vst [vmem:[#allocation2 + $0x158] sm:$0xff] %v508
    %617 = vst [vmem:[#allocation2 + $0x160] sm:$0xff] %v172
    %618 = vst [vmem:[#allocation2 + $0x168] sm:$0xff] %v285
    %619 = vst [vmem:[#allocation2 + $0x170] sm:$0xff] %v398
    %620 = vst [vmem:[#allocation2 + $0x178] sm:$0xff] %v511
    %621 = vst [vmem:[#allocation2 + $0x180] sm:$0xff] %v175
    %622 = vst [vmem:[#allocation2 + $0x188] sm:$0xff] %v288
    %623 = vst [vmem:[#allocation2 + $0x190] sm:$0xff] %v401
    %624 = vst [vmem:[#allocation2 + $0x198] sm:$0xff] %v514
    %625 = vst [vmem:[#allocation2 + $0x1a0] sm:$0xff] %v178
    %626 = vst [vmem:[#allocation2 + $0x1a8] sm:$0xff] %v291
    %627 = vst [vmem:[#allocation2 + $0x1b0] sm:$0xff] %v404
    %628 = vst [vmem:[#allocation2 + $0x1b8] sm:$0xff] %v517
    %629 = vst [vmem:[#allocation2 + $0x1c0] sm:$0xff] %v181
    %630 = vst [vmem:[#allocation2 + $0x1c8] sm:$0xff] %v294
    %631 = vst [vmem:[#allocation2 + $0x1d0] sm:$0xff] %v407
    %632 = vst [vmem:[#allocation2 + $0x1d8] sm:$0xff] %v520
    %633 = vst [vmem:[#allocation2 + $0x1e0] sm:$0xff] %v184
    %634 = vst [vmem:[#allocation2 + $0x1e8] sm:$0xff] %v297
    %635 = vst [vmem:[#allocation2 + $0x1f0] sm:$0xff] %v410
    %636 = vst [vmem:[#allocation2 + $0x1f8] sm:$0xff] %v523
    %637 = vst [vmem:[#allocation2 + $0x200] sm:$0xff] %v187
    %638 = vst [vmem:[#allocation2 + $0x208] sm:$0xff] %v300
    %639 = vst [vmem:[#allocation2 + $0x210] sm:$0xff] %v413
    %640 = vst [vmem:[#allocation2 + $0x218] sm:$0xff] %v526
    %641 = vst [vmem:[#allocation2 + $0x220] sm:$0xff] %v190
    %642 = vst [vmem:[#allocation2 + $0x228] sm:$0xff] %v303
    %643 = vst [vmem:[#allocation2 + $0x230] sm:$0xff] %v416
    %644 = vst [vmem:[#allocation2 + $0x238] sm:$0xff] %v529
    %645 = vst [vmem:[#allocation2 + $0x240] sm:$0xff] %v193
    %646 = vst [vmem:[#allocation2 + $0x248] sm:$0xff] %v306
    %647 = vst [vmem:[#allocation2 + $0x250] sm:$0xff] %v419
    %648 = vst [vmem:[#allocation2 + $0x258] sm:$0xff] %v532
    %649 = vst [vmem:[#allocation2 + $0x260] sm:$0xff] %v196
    %650 = vst [vmem:[#allocation2 + $0x268] sm:$0xff] %v309
    %651 = vst [vmem:[#allocation2 + $0x270] sm:$0xff] %v422
    %652 = vst [vmem:[#allocation2 + $0x278] sm:$0xff] %v535
    %653 = vst [vmem:[#allocation2 + $0x280] sm:$0xff] %v199
    %654 = vst [vmem:[#allocation2 + $0x288] sm:$0xff] %v312
    %655 = vst [vmem:[#allocation2 + $0x290] sm:$0xff] %v425
    %656 = vst [vmem:[#allocation2 + $0x298] sm:$0xff] %v538
    %657 = vst [vmem:[#allocation2 + $0x2a0] sm:$0xff] %v202
    %658 = vst [vmem:[#allocation2 + $0x2a8] sm:$0xff] %v315
    %659 = vst [vmem:[#allocation2 + $0x2b0] sm:$0xff] %v428
    %660 = vst [vmem:[#allocation2 + $0x2b8] sm:$0xff] %v541
    %661 = vst [vmem:[#allocation2 + $0x2c0] sm:$0xff] %v205
    %662 = vst [vmem:[#allocation2 + $0x2c8] sm:$0xff] %v318
    %663 = vst [vmem:[#allocation2 + $0x2d0] sm:$0xff] %v431
    %664 = vst [vmem:[#allocation2 + $0x2d8] sm:$0xff] %v544
    %665 = vst [vmem:[#allocation2 + $0x2e0] sm:$0xff] %v208
    %666 = vst [vmem:[#allocation2 + $0x2e8] sm:$0xff] %v321
    %667 = vst [vmem:[#allocation2 + $0x2f0] sm:$0xff] %v434
    %668 = vst [vmem:[#allocation2 + $0x2f8] sm:$0xff] %v547
    %669 = vst [vmem:[#allocation2 + $0x300] sm:$0xff] %v211
    %670 = vst [vmem:[#allocation2 + $0x308] sm:$0xff] %v324
    %671 = vst [vmem:[#allocation2 + $0x310] sm:$0xff] %v437
    %672 = vst [vmem:[#allocation2 + $0x318] sm:$0xff] %v550
    %673 = vst [vmem:[#allocation2 + $0x320] sm:$0xff] %v214
    %674 = vst [vmem:[#allocation2 + $0x328] sm:$0xff] %v327
    %675 = vst [vmem:[#allocation2 + $0x330] sm:$0xff] %v440
    %676 = vst [vmem:[#allocation2 + $0x338] sm:$0xff] %v553
    %677 = vst [vmem:[#allocation2 + $0x340] sm:$0xff] %v217
    %678 = vst [vmem:[#allocation2 + $0x348] sm:$0xff] %v330
    %679 = vst [vmem:[#allocation2 + $0x350] sm:$0xff] %v443
    %680 = vst [vmem:[#allocation2 + $0x358] sm:$0xff] %v556
    %681 = vst [vmem:[#allocation2 + $0x360] sm:$0xff] %v220
    %682 = vst [vmem:[#allocation2 + $0x368] sm:$0xff] %v333
    %683 = vst [vmem:[#allocation2 + $0x370] sm:$0xff] %v446
    %684 = vst [vmem:[#allocation2 + $0x378] sm:$0xff] %v559
    %685 = vst [vmem:[#allocation2 + $0x380] sm:$0xff] %v223
    %686 = vst [vmem:[#allocation2 + $0x388] sm:$0xff] %v336
    %687 = vst [vmem:[#allocation2 + $0x390] sm:$0xff] %v449
    %688 = vst [vmem:[#allocation2 + $0x398] sm:$0xff] %v562
    %689 = vst [vmem:[#allocation2 + $0x3a0] sm:$0xff] %v226
    %690 = vst [vmem:[#allocation2 + $0x3a8] sm:$0xff] %v339
    %691 = vst [vmem:[#allocation2 + $0x3b0] sm:$0xff] %v452
    %692 = vst [vmem:[#allocation2 + $0x3b8] sm:$0xff] %v565
    %693 = vst [vmem:[#allocation2 + $0x3c0] sm:$0xff] %v229
    %694 = vst [vmem:[#allocation2 + $0x3c8] sm:$0xff] %v342
    %695 = vst [vmem:[#allocation2 + $0x3d0] sm:$0xff] %v455
    %696 = vst [vmem:[#allocation2 + $0x3d8] sm:$0xff] %v568
    %697 = vst [vmem:[#allocation2 + $0x3e0] sm:$0xff] %v232
    %698 = vst [vmem:[#allocation2 + $0x3e8] sm:$0xff] %v345
    %699 = vst [vmem:[#allocation2 + $0x3f0] sm:$0xff] %v458
    %700 = vst [vmem:[#allocation2 + $0x3f8] sm:$0xff] %v571
    // Predicated region
    $region14: #{rnn_forward.3} parent=1 // pred_check
      _
    $region15: #{rnn_forward.3} parent=1 // pred_check_branch
      %702 = sbr.rel (0) target = $region17
    $region16: #{rnn_forward.3} parent=1 // pred_region
      %704 = vsyncadd [#allocation3], 0
      %s705 = sshll.u32 [#allocation2], 4
      %s706 = int_to_ptr.vmem [resolvable:$true] %s705
      %s707 = sshll.u32 %s3, 4
      %s708 = int_to_ptr.hbm [resolvable:$true] %s707
      %713 = dma.vmem_to_hbm [thread:$0]  %s706, 16384, %s708, [#allocation3], 512, 512, 32
    $region17: #{rnn_forward.3} parent=1 // pred_fallthru
      _
    // Predicated region
    $region18: #{rnn_forward.3} parent=1 // pred_check
      _
    $region19: #{rnn_forward.3} parent=1 // pred_check_branch
      %715 = sbr.rel (0) target = $region21
    $region20: #{rnn_forward.3} parent=1 // pred_region
      %717 = dma.done [#allocation3], 16384
    $region21: #{rnn_forward.3} parent=1 // pred_fallthru
      _
    %718 = vsyncpa [#allocation3], 1

// kernel: rnn_forward.2
$region0: #{rnn_forward.2}
  #allocation0 [shape = 'u32[]', space=smem, size = 0x4, offset = 0x4, fixed_abs, tag = 'smem constant byte address 0x4 - core index']
  #allocation1 [shape = 'u32[72,128]{1,0:T(1,128)}', space=vmem, size = 0x9000, scoped, tag = 'internal scratch']
  #allocation2 [shape = 'f32[128,128]{1,0:T(8,128)}', space=vmem, size = 0x10000, scoped, tag = 'scratch operand']
  #allocation3 [shape = 'f32[2,128,128]{2,1,0:T(8,128)}', space=vmem, size = 0x20000, scoped, tag = 'scratch operand']
  #allocation4 [shape = 'f32[1,128,128]{2,1,0:T(8,128)}', space=vmem, size = 0x10000, scoped, tag = 'scratch operand']
  #allocation5 [shape = 'f32[2,16,128]{2,1,0:T(8,128)}', space=vmem, size = 0x4000, scoped, tag = 'scratch operand']
  #allocation6 [shape = 'f32[16,16,128]{2,1,0:T(8,128)}', space=vmem, size = 0x20000, scoped, tag = 'scratch operand']
  #allocation7 [shape = 's32[1]{0}', space=sflag, size = 0x4, scoped, tag = 'scratch operand']
  #allocation8 [shape = 's32[]', space=sflag, size = 0x4, offset = 0, fixed_abs, tag = 'sflag constant byte address 0x0 - dummy sync flag']
  #allocation9 [shape = 's32[]', space=sflag, size = 0x4, offset = 0, fixed_abs, tag = 'sflag constant byte address 0x0 - dummy sync flag']
  #allocation10 [shape = 's32[]', space=sflag, size = 0x4, offset = 0, fixed_abs, tag = 'sflag constant byte address 0x0 - dummy sync flag']
  %s0 = inlined_call_operand.vmem [shape: f32[16,16,128], index: 0, kind: input, shape index: {}]
  %s1 = inlined_call_operand.vmem [shape: f32[2,16,128], index: 1, kind: input, shape index: {}, may-alias: {1,7}]
  %s2 = inlined_call_operand.vmem [shape: f32[2,1,128], index: 2, kind: input, shape index: {}]
  %s3 = inlined_call_operand.vmem [shape: f32[128,128], index: 3, kind: input, shape index: {}]
  %s4 = inlined_call_operand.vmem [shape: f32[2,128,128], index: 4, kind: input, shape index: {}]
  %s5 = inlined_call_operand.vmem [shape: f32[1,128,128], index: 5, kind: input, shape index: {}]
  %s6 = inlined_call_operand.vmem [shape: f32[16,16,128], index: 6, kind: output, shape index: {0}]
  %s7 = inlined_call_operand.vmem [shape: f32[2,16,128], index: 7, kind: output, shape index: {1}, may-alias: {1,7}]
  %8 = xla_tuple %s6, %s7
  %s9 = sld [smem:[#allocation0]]
  $region95: #{rnn_forward.2} parent=0
    _
  %s11 = ssub.s32 1, %s9
  %s12 = scalar_select 0, %s11, %s9
  // Predicated region
  $region2: #{rnn_forward.2} parent=0 // pred_check
    _
  $region3: #{rnn_forward.2} parent=0 // pred_check_branch
    %14 = sbr.rel (0) target = $region5
  $region4: #{rnn_forward.2} parent=0 // pred_region
    _
  $region5: #{rnn_forward.2} parent=0 // pred_fallthru
    _
  // Predicated region
  $region6: #{rnn_forward.2} parent=0 // pred_check
    _
  $region7: #{rnn_forward.2} parent=0 // pred_check_branch
    %16 = sbr.rel (0) target = $region9
  $region8: #{rnn_forward.2} parent=0 // pred_region
    _
  $region9: #{rnn_forward.2} parent=0 // pred_fallthru
    _
  // Predicated region
  $region10: #{rnn_forward.2} parent=0 // pred_check
    _
  $region11: #{rnn_forward.2} parent=0 // pred_check_branch
    %18 = sbr.rel (0) target = $region13
  $region12: #{rnn_forward.2} parent=0 // pred_region
    _
  $region13: #{rnn_forward.2} parent=0 // pred_fallthru
    _
  %p19 = scmp.eq.s32.totalorder 0, 0
  // Predicated region
  $region14: #{rnn_forward.2} parent=0 // pred_check
    %p20 = pneg %p19
  $region15: #{rnn_forward.2} parent=0 // pred_check_branch
    %22 = sbr.rel (%p20) target = $region17
  $region16: #{rnn_forward.2} parent=0 // pred_region
    // Predicated region
    $region18: #{rnn_forward.2} parent=16 // pred_check
      _
    $region19: #{rnn_forward.2} parent=16 // pred_check_branch
      %24 = sbr.rel (0) target = $region21
    $region20: #{rnn_forward.2} parent=16 // pred_region
      loop: start=0, step=1, limit=1
      $region22: #{rnn_forward.2} parent=20 // loop_pre_header
        _
      $region23: #{rnn_forward.2} parent=20 // loop_header
        %s26 = sphi 0, %s30
        %p27 = scmp.ge.s32.totalorder %s26, 1
        %s31 = sphi %s3, %s3
        %s32 = sphi [#allocation2], [#allocation2]
      $region24: #{rnn_forward.2} parent=20 // loop_header_branch
        %29 = sbr.rel (%p27) target = $region28
      $region25: #{rnn_forward.2} parent=20 // loop_body
        %v33 = vld [vmem:[%s31] sm:$0xff]
        %34 = vst [vmem:[%s32] sm:$0xff] %v33
        %v35 = vld [vmem:[%s31 + $0x8] sm:$0xff]
        %36 = vst [vmem:[%s32 + $0x8] sm:$0xff] %v35
        %v37 = vld [vmem:[%s31 + $0x10] sm:$0xff]
        %38 = vst [vmem:[%s32 + $0x10] sm:$0xff] %v37
        %v39 = vld [vmem:[%s31 + $0x18] sm:$0xff]
        %40 = vst [vmem:[%s32 + $0x18] sm:$0xff] %v39
        %v41 = vld [vmem:[%s31 + $0x20] sm:$0xff]
        %42 = vst [vmem:[%s32 + $0x20] sm:$0xff] %v41
        %v43 = vld [vmem:[%s31 + $0x28] sm:$0xff]
        %44 = vst [vmem:[%s32 + $0x28] sm:$0xff] %v43
        %v45 = vld [vmem:[%s31 + $0x30] sm:$0xff]
        %46 = vst [vmem:[%s32 + $0x30] sm:$0xff] %v45
        %v47 = vld [vmem:[%s31 + $0x38] sm:$0xff]
        %48 = vst [vmem:[%s32 + $0x38] sm:$0xff] %v47
        %v49 = vld [vmem:[%s31 + $0x40] sm:$0xff]
        %50 = vst [vmem:[%s32 + $0x40] sm:$0xff] %v49
        %v51 = vld [vmem:[%s31 + $0x48] sm:$0xff]
        %52 = vst [vmem:[%s32 + $0x48] sm:$0xff] %v51
        %v53 = vld [vmem:[%s31 + $0x50] sm:$0xff]
        %54 = vst [vmem:[%s32 + $0x50] sm:$0xff] %v53
        %v55 = vld [vmem:[%s31 + $0x58] sm:$0xff]
        %56 = vst [vmem:[%s32 + $0x58] sm:$0xff] %v55
        %v57 = vld [vmem:[%s31 + $0x60] sm:$0xff]
        %58 = vst [vmem:[%s32 + $0x60] sm:$0xff] %v57
        %v59 = vld [vmem:[%s31 + $0x68] sm:$0xff]
        %60 = vst [vmem:[%s32 + $0x68] sm:$0xff] %v59
        %v61 = vld [vmem:[%s31 + $0x70] sm:$0xff]
        %62 = vst [vmem:[%s32 + $0x70] sm:$0xff] %v61
        %v63 = vld [vmem:[%s31 + $0x78] sm:$0xff]
        %64 = vst [vmem:[%s32 + $0x78] sm:$0xff] %v63
      $region26: #{rnn_forward.2} parent=20 // loop_footer
        %s30 = sadd.s32 1, %s26
      $region27: #{rnn_forward.2} parent=20 // loop_footer_branch
        %25 = sbr.rel target = $region23
      $region28: #{rnn_forward.2} parent=20 // loop_exit
        _
    $region21: #{rnn_forward.2} parent=16 // pred_fallthru
      _
    // Predicated region
    $region29: #{rnn_forward.2} parent=16 // pred_check
      _
    $region30: #{rnn_forward.2} parent=16 // pred_check_branch
      %66 = sbr.rel target = $region32
    $region31: #{rnn_forward.2} parent=16 // pred_region
      _
    $region32: #{rnn_forward.2} parent=16 // pred_fallthru
      _
    // Predicated region
    $region33: #{rnn_forward.2} parent=16 // pred_check
      _
    $region34: #{rnn_forward.2} parent=16 // pred_check_branch
      %69 = sbr.rel (0) target = $region36
    $region35: #{rnn_forward.2} parent=16 // pred_region
      %70 = vsyncadd [#allocation7], 2048
    $region36: #{rnn_forward.2} parent=16 // pred_fallthru
      _
    %s71 = smul.u32 128, 1
    %s72 = sshll.u32 %s71, 4
    %73 = dma.done [#allocation7], %s72
    // Predicated region
    $region37: #{rnn_forward.2} parent=16 // pred_check
      _
    $region38: #{rnn_forward.2} parent=16 // pred_check_branch
      %75 = sbr.rel (0) target = $region40
    $region39: #{rnn_forward.2} parent=16 // pred_region
      loop: start=0, step=1, limit=1
      $region41: #{rnn_forward.2} parent=39 // loop_pre_header
        _
      $region42: #{rnn_forward.2} parent=39 // loop_header
        %s77 = sphi 0, %s81
        %p78 = scmp.ge.s32.totalorder %s77, 1
        %s82 = sphi %s4, %s4
        %s83 = sphi [#allocation3], [#allocation3]
      $region43: #{rnn_forward.2} parent=39 // loop_header_branch
        %80 = sbr.rel (%p78) target = $region47
      $region44: #{rnn_forward.2} parent=39 // loop_body
        %v84 = vld [vmem:[%s82] sm:$0xff]
        %85 = vst [vmem:[%s83] sm:$0xff] %v84
        %v86 = vld [vmem:[%s82 + $0x8] sm:$0xff]
        %87 = vst [vmem:[%s83 + $0x8] sm:$0xff] %v86
        %v88 = vld [vmem:[%s82 + $0x10] sm:$0xff]
        %89 = vst [vmem:[%s83 + $0x10] sm:$0xff] %v88
        %v90 = vld [vmem:[%s82 + $0x18] sm:$0xff]
        %91 = vst [vmem:[%s83 + $0x18] sm:$0xff] %v90
        %v92 = vld [vmem:[%s82 + $0x20] sm:$0xff]
        %93 = vst [vmem:[%s83 + $0x20] sm:$0xff] %v92
        %v94 = vld [vmem:[%s82 + $0x28] sm:$0xff]
        %95 = vst [vmem:[%s83 + $0x28] sm:$0xff] %v94
        %v96 = vld [vmem:[%s82 + $0x30] sm:$0xff]
        %97 = vst [vmem:[%s83 + $0x30] sm:$0xff] %v96
        %v98 = vld [vmem:[%s82 + $0x38] sm:$0xff]
        %99 = vst [vmem:[%s83 + $0x38] sm:$0xff] %v98
        %v100 = vld [vmem:[%s82 + $0x40] sm:$0xff]
        %101 = vst [vmem:[%s83 + $0x40] sm:$0xff] %v100
        %v102 = vld [vmem:[%s82 + $0x48] sm:$0xff]
        %103 = vst [vmem:[%s83 + $0x48] sm:$0xff] %v102
        %v104 = vld [vmem:[%s82 + $0x50] sm:$0xff]
        %105 = vst [vmem:[%s83 + $0x50] sm:$0xff] %v104
        %v106 = vld [vmem:[%s82 + $0x58] sm:$0xff]
        %107 = vst [vmem:[%s83 + $0x58] sm:$0xff] %v106
        %v108 = vld [vmem:[%s82 + $0x60] sm:$0xff]
        %109 = vst [vmem:[%s83 + $0x60] sm:$0xff] %v108
        %v110 = vld [vmem:[%s82 + $0x68] sm:$0xff]
        %111 = vst [vmem:[%s83 + $0x68] sm:$0xff] %v110
        %v112 = vld [vmem:[%s82 + $0x70] sm:$0xff]
        %113 = vst [vmem:[%s83 + $0x70] sm:$0xff] %v112
        %v114 = vld [vmem:[%s82 + $0x78] sm:$0xff]
        %115 = vst [vmem:[%s83 + $0x78] sm:$0xff] %v114
        %v116 = vld [vmem:[%s82 + $0x80] sm:$0xff]
        %117 = vst [vmem:[%s83 + $0x80] sm:$0xff] %v116
        %v118 = vld [vmem:[%s82 + $0x88] sm:$0xff]
        %119 = vst [vmem:[%s83 + $0x88] sm:$0xff] %v118
        %v120 = vld [vmem:[%s82 + $0x90] sm:$0xff]
        %121 = vst [vmem:[%s83 + $0x90] sm:$0xff] %v120
        %v122 = vld [vmem:[%s82 + $0x98] sm:$0xff]
        %123 = vst [vmem:[%s83 + $0x98] sm:$0xff] %v122
        %v124 = vld [vmem:[%s82 + $0xa0] sm:$0xff]
        %125 = vst [vmem:[%s83 + $0xa0] sm:$0xff] %v124
        %v126 = vld [vmem:[%s82 + $0xa8] sm:$0xff]
        %127 = vst [vmem:[%s83 + $0xa8] sm:$0xff] %v126
        %v128 = vld [vmem:[%s82 + $0xb0] sm:$0xff]
        %129 = vst [vmem:[%s83 + $0xb0] sm:$0xff] %v128
        %v130 = vld [vmem:[%s82 + $0xb8] sm:$0xff]
        %131 = vst [vmem:[%s83 + $0xb8] sm:$0xff] %v130
        %v132 = vld [vmem:[%s82 + $0xc0] sm:$0xff]
        %133 = vst [vmem:[%s83 + $0xc0] sm:$0xff] %v132
        %v134 = vld [vmem:[%s82 + $0xc8] sm:$0xff]
        %135 = vst [vmem:[%s83 + $0xc8] sm:$0xff] %v134
        %v136 = vld [vmem:[%s82 + $0xd0] sm:$0xff]
        %137 = vst [vmem:[%s83 + $0xd0] sm:$0xff] %v136
        %v138 = vld [vmem:[%s82 + $0xd8] sm:$0xff]
        %139 = vst [vmem:[%s83 + $0xd8] sm:$0xff] %v138
        %v140 = vld [vmem:[%s82 + $0xe0] sm:$0xff]
        %141 = vst [vmem:[%s83 + $0xe0] sm:$0xff] %v140
        %v142 = vld [vmem:[%s82 + $0xe8] sm:$0xff]
        %143 = vst [vmem:[%s83 + $0xe8] sm:$0xff] %v142
        %v144 = vld [vmem:[%s82 + $0xf0] sm:$0xff]
        %145 = vst [vmem:[%s83 + $0xf0] sm:$0xff] %v144
        %v146 = vld [vmem:[%s82 + $0xf8] sm:$0xff]
        %147 = vst [vmem:[%s83 + $0xf8] sm:$0xff] %v146
      $region45: #{rnn_forward.2} parent=39 // loop_footer
        %s81 = sadd.s32 1, %s77
      $region46: #{rnn_forward.2} parent=39 // loop_footer_branch
        %76 = sbr.rel target = $region42
      $region47: #{rnn_forward.2} parent=39 // loop_exit
        _
    $region40: #{rnn_forward.2} parent=16 // pred_fallthru
      _
    // Predicated region
    $region48: #{rnn_forward.2} parent=16 // pred_check
      _
    $region49: #{rnn_forward.2} parent=16 // pred_check_branch
      %149 = sbr.rel target = $region51
    $region50: #{rnn_forward.2} parent=16 // pred_region
      _
    $region51: #{rnn_forward.2} parent=16 // pred_fallthru
      _
    // Predicated region
    $region52: #{rnn_forward.2} parent=16 // pred_check
      _
    $region53: #{rnn_forward.2} parent=16 // pred_check_branch
      %152 = sbr.rel (0) target = $region55
    $region54: #{rnn_forward.2} parent=16 // pred_region
      %153 = vsyncadd [#allocation7], 4096
    $region55: #{rnn_forward.2} parent=16 // pred_fallthru
      _
    %s154 = smul.u32 2, 128
    %s155 = smul.u32 %s154, 1
    %s156 = sshll.u32 %s155, 4
    %157 = dma.done [#allocation7], %s156
    // Predicated region
    $region56: #{rnn_forward.2} parent=16 // pred_check
      _
    $region57: #{rnn_forward.2} parent=16 // pred_check_branch
      %159 = sbr.rel (0) target = $region59
    $region58: #{rnn_forward.2} parent=16 // pred_region
      loop: start=0, step=1, limit=1
      $region60: #{rnn_forward.2} parent=58 // loop_pre_header
        _
      $region61: #{rnn_forward.2} parent=58 // loop_header
        %s161 = sphi 0, %s165
        %p162 = scmp.ge.s32.totalorder %s161, 1
        %s166 = sphi %s5, %s5
        %s167 = sphi [#allocation4], [#allocation4]
      $region62: #{rnn_forward.2} parent=58 // loop_header_branch
        %164 = sbr.rel (%p162) target = $region66
      $region63: #{rnn_forward.2} parent=58 // loop_body
        %v168 = vld [vmem:[%s166] sm:$0xff]
        %169 = vst [vmem:[%s167] sm:$0xff] %v168
        %v170 = vld [vmem:[%s166 + $0x8] sm:$0xff]
        %171 = vst [vmem:[%s167 + $0x8] sm:$0xff] %v170
        %v172 = vld [vmem:[%s166 + $0x10] sm:$0xff]
        %173 = vst [vmem:[%s167 + $0x10] sm:$0xff] %v172
        %v174 = vld [vmem:[%s166 + $0x18] sm:$0xff]
        %175 = vst [vmem:[%s167 + $0x18] sm:$0xff] %v174
        %v176 = vld [vmem:[%s166 + $0x20] sm:$0xff]
        %177 = vst [vmem:[%s167 + $0x20] sm:$0xff] %v176
        %v178 = vld [vmem:[%s166 + $0x28] sm:$0xff]
        %179 = vst [vmem:[%s167 + $0x28] sm:$0xff] %v178
        %v180 = vld [vmem:[%s166 + $0x30] sm:$0xff]
        %181 = vst [vmem:[%s167 + $0x30] sm:$0xff] %v180
        %v182 = vld [vmem:[%s166 + $0x38] sm:$0xff]
        %183 = vst [vmem:[%s167 + $0x38] sm:$0xff] %v182
        %v184 = vld [vmem:[%s166 + $0x40] sm:$0xff]
        %185 = vst [vmem:[%s167 + $0x40] sm:$0xff] %v184
        %v186 = vld [vmem:[%s166 + $0x48] sm:$0xff]
        %187 = vst [vmem:[%s167 + $0x48] sm:$0xff] %v186
        %v188 = vld [vmem:[%s166 + $0x50] sm:$0xff]
        %189 = vst [vmem:[%s167 + $0x50] sm:$0xff] %v188
        %v190 = vld [vmem:[%s166 + $0x58] sm:$0xff]
        %191 = vst [vmem:[%s167 + $0x58] sm:$0xff] %v190
        %v192 = vld [vmem:[%s166 + $0x60] sm:$0xff]
        %193 = vst [vmem:[%s167 + $0x60] sm:$0xff] %v192
        %v194 = vld [vmem:[%s166 + $0x68] sm:$0xff]
        %195 = vst [vmem:[%s167 + $0x68] sm:$0xff] %v194
        %v196 = vld [vmem:[%s166 + $0x70] sm:$0xff]
        %197 = vst [vmem:[%s167 + $0x70] sm:$0xff] %v196
        %v198 = vld [vmem:[%s166 + $0x78] sm:$0xff]
        %199 = vst [vmem:[%s167 + $0x78] sm:$0xff] %v198
      $region64: #{rnn_forward.2} parent=58 // loop_footer
        %s165 = sadd.s32 1, %s161
      $region65: #{rnn_forward.2} parent=58 // loop_footer_branch
        %160 = sbr.rel target = $region61
      $region66: #{rnn_forward.2} parent=58 // loop_exit
        _
    $region59: #{rnn_forward.2} parent=16 // pred_fallthru
      _
    // Predicated region
    $region67: #{rnn_forward.2} parent=16 // pred_check
      _
    $region68: #{rnn_forward.2} parent=16 // pred_check_branch
      %201 = sbr.rel target = $region70
    $region69: #{rnn_forward.2} parent=16 // pred_region
      _
    $region70: #{rnn_forward.2} parent=16 // pred_fallthru
      _
    // Predicated region
    $region71: #{rnn_forward.2} parent=16 // pred_check
      _
    $region72: #{rnn_forward.2} parent=16 // pred_check_branch
      %204 = sbr.rel (0) target = $region74
    $region73: #{rnn_forward.2} parent=16 // pred_region
      %205 = vsyncadd [#allocation7], 2048
    $region74: #{rnn_forward.2} parent=16 // pred_fallthru
      _
    %s206 = smul.u32 1, 128
    %s207 = smul.u32 %s206, 1
    %s208 = sshll.u32 %s207, 4
    %209 = dma.done [#allocation7], %s208
    %v210 = vld [vmem:[%s1] sm:$0xff]
    %v211 = vld [vmem:[%s1 + $0x8] sm:$0xff]
    %v212 = vld [vmem:[%s1 + $0x10] sm:$0xff]
    %v213 = vld [vmem:[%s1 + $0x18] sm:$0xff]
    %214 = vst [vmem:[#allocation5] sm:$0xff] %v210
    %215 = vst [vmem:[#allocation5 + $0x8] sm:$0xff] %v211
    %216 = vst [vmem:[#allocation5 + $0x10] sm:$0xff] %v212
    %217 = vst [vmem:[#allocation5 + $0x18] sm:$0xff] %v213
  $region17: #{rnn_forward.2} parent=0 // pred_fallthru
    _
  %v218 = vld [vmem:[%s0] sm:$0xff]
  %v219 = vld [vmem:[%s0 + $0x8] sm:$0xff]
  %v220 = vld [vmem:[%s0 + $0x10] sm:$0xff]
  %v221 = vld [vmem:[%s0 + $0x18] sm:$0xff]
  %v222 = vld [vmem:[%s0 + $0x20] sm:$0xff]
  %v223 = vld [vmem:[%s0 + $0x28] sm:$0xff]
  %v224 = vld [vmem:[%s0 + $0x30] sm:$0xff]
  %v225 = vld [vmem:[%s0 + $0x38] sm:$0xff]
  %v226 = vld [vmem:[%s0 + $0x40] sm:$0xff]
  %v227 = vld [vmem:[%s0 + $0x48] sm:$0xff]
  %v228 = vld [vmem:[%s0 + $0x50] sm:$0xff]
  %v229 = vld [vmem:[%s0 + $0x58] sm:$0xff]
  %v230 = vld [vmem:[%s0 + $0x60] sm:$0xff]
  %v231 = vld [vmem:[%s0 + $0x68] sm:$0xff]
  %v232 = vld [vmem:[%s0 + $0x70] sm:$0xff]
  %v233 = vld [vmem:[%s0 + $0x78] sm:$0xff]
  %v234 = vld [vmem:[%s0 + $0x80] sm:$0xff]
  %v235 = vld [vmem:[%s0 + $0x88] sm:$0xff]
  %v236 = vld [vmem:[%s0 + $0x90] sm:$0xff]
  %v237 = vld [vmem:[%s0 + $0x98] sm:$0xff]
  %v238 = vld [vmem:[%s0 + $0xa0] sm:$0xff]
  %v239 = vld [vmem:[%s0 + $0xa8] sm:$0xff]
  %v240 = vld [vmem:[%s0 + $0xb0] sm:$0xff]
  %v241 = vld [vmem:[%s0 + $0xb8] sm:$0xff]
  %v242 = vld [vmem:[%s0 + $0xc0] sm:$0xff]
  %v243 = vld [vmem:[%s0 + $0xc8] sm:$0xff]
  %v244 = vld [vmem:[%s0 + $0xd0] sm:$0xff]
  %v245 = vld [vmem:[%s0 + $0xd8] sm:$0xff]
  %v246 = vld [vmem:[%s0 + $0xe0] sm:$0xff]
  %v247 = vld [vmem:[%s0 + $0xe8] sm:$0xff]
  %v248 = vld [vmem:[%s0 + $0xf0] sm:$0xff]
  %v249 = vld [vmem:[%s0 + $0xf8] sm:$0xff]
  %v250 = vld [vmem:[#allocation2] sm:$0xff]
  %v251 = vld [vmem:[#allocation2 + $0x8] sm:$0xff]
  %v252 = vld [vmem:[#allocation2 + $0x10] sm:$0xff]
  %v253 = vld [vmem:[#allocation2 + $0x18] sm:$0xff]
  %v254 = vld [vmem:[#allocation2 + $0x20] sm:$0xff]
  %v255 = vld [vmem:[#allocation2 + $0x28] sm:$0xff]
  %v256 = vld [vmem:[#allocation2 + $0x30] sm:$0xff]
  %v257 = vld [vmem:[#allocation2 + $0x38] sm:$0xff]
  %v258 = vld [vmem:[#allocation2 + $0x40] sm:$0xff]
  %v259 = vld [vmem:[#allocation2 + $0x48] sm:$0xff]
  %v260 = vld [vmem:[#allocation2 + $0x50] sm:$0xff]
  %v261 = vld [vmem:[#allocation2 + $0x58] sm:$0xff]
  %v262 = vld [vmem:[#allocation2 + $0x60] sm:$0xff]
  %v263 = vld [vmem:[#allocation2 + $0x68] sm:$0xff]
  %v264 = vld [vmem:[#allocation2 + $0x70] sm:$0xff]
  %v265 = vld [vmem:[#allocation2 + $0x78] sm:$0xff]
  %v266 = vld [vmem:[%s2] sm:$0x1]
  %v268 = vperm.slane %v266, 0
  %270 = vmatpush.msra.mxu0 %v265
  %271 = vmatpush.msra.mxu0 %v264
  %272 = vmatpush.msra.mxu0 %v263
  %273 = vmatpush.msra.mxu0 %v262
  %274 = vmatpush.msra.mxu0 %v261
  %275 = vmatpush.msra.mxu0 %v260
  %276 = vmatpush.msra.mxu0 %v259
  %277 = vmatpush.msra.mxu0 %v258
  %278 = vmatpush.msra.mxu0 %v257
  %279 = vmatpush.msra.mxu0 %v256
  %280 = vmatpush.msra.mxu0 %v255
  %281 = vmatpush.msra.mxu0 %v254
  %282 = vmatpush.msra.mxu0 %v253
  %283 = vmatpush.msra.mxu0 %v252
  %284 = vmatpush.msra.mxu0 %v251
  %285 = vmatpush.msra.mxu0 %v250
  %286 = vmatmul.f32.gmra.mxu0 %v218
  %v287 = vpop.f32.mrf.mxu0
  %v288 = vadd.f32 %v268, %v287
  %289 = vmatmul.f32.gmra.mxu0 %v219
  %v290 = vpop.f32.mrf.mxu0
  %v291 = vadd.f32 %v268, %v290
  %292 = vmatmul.f32.gmra.mxu0 %v220
  %v293 = vpop.f32.mrf.mxu0
  %v294 = vadd.f32 %v268, %v293
  %295 = vmatmul.f32.gmra.mxu0 %v221
  %v296 = vpop.f32.mrf.mxu0
  %v297 = vadd.f32 %v268, %v296
  %298 = vmatmul.f32.gmra.mxu0 %v222
  %v299 = vpop.f32.mrf.mxu0
  %v300 = vadd.f32 %v268, %v299
  %301 = vmatmul.f32.gmra.mxu0 %v223
  %v302 = vpop.f32.mrf.mxu0
  %v303 = vadd.f32 %v268, %v302
  %304 = vmatmul.f32.gmra.mxu0 %v224
  %v305 = vpop.f32.mrf.mxu0
  %v306 = vadd.f32 %v268, %v305
  %307 = vmatmul.f32.gmra.mxu0 %v225
  %v308 = vpop.f32.mrf.mxu0
  %v309 = vadd.f32 %v268, %v308
  %310 = vmatmul.f32.gmra.mxu0 %v226
  %v311 = vpop.f32.mrf.mxu0
  %v312 = vadd.f32 %v268, %v311
  %313 = vmatmul.f32.gmra.mxu0 %v227
  %v314 = vpop.f32.mrf.mxu0
  %v315 = vadd.f32 %v268, %v314
  %316 = vmatmul.f32.gmra.mxu0 %v228
  %v317 = vpop.f32.mrf.mxu0
  %v318 = vadd.f32 %v268, %v317
  %319 = vmatmul.f32.gmra.mxu0 %v229
  %v320 = vpop.f32.mrf.mxu0
  %v321 = vadd.f32 %v268, %v320
  %322 = vmatmul.f32.gmra.mxu0 %v230
  %v323 = vpop.f32.mrf.mxu0
  %v324 = vadd.f32 %v268, %v323
  %325 = vmatmul.f32.gmra.mxu0 %v231
  %v326 = vpop.f32.mrf.mxu0
  %v327 = vadd.f32 %v268, %v326
  %328 = vmatmul.f32.gmra.mxu0 %v232
  %v329 = vpop.f32.mrf.mxu0
  %v330 = vadd.f32 %v268, %v329
  %331 = vmatmul.f32.gmra.mxu0 %v233
  %v332 = vpop.f32.mrf.mxu0
  %v333 = vadd.f32 %v268, %v332
  %334 = vmatmul.f32.gmra.mxu0 %v234
  %v335 = vpop.f32.mrf.mxu0
  %v336 = vadd.f32 %v268, %v335
  %337 = vmatmul.f32.gmra.mxu0 %v235
  %v338 = vpop.f32.mrf.mxu0
  %v339 = vadd.f32 %v268, %v338
  %340 = vmatmul.f32.gmra.mxu0 %v236
  %v341 = vpop.f32.mrf.mxu0
  %v342 = vadd.f32 %v268, %v341
  %343 = vmatmul.f32.gmra.mxu0 %v237
  %v344 = vpop.f32.mrf.mxu0
  %v345 = vadd.f32 %v268, %v344
  %346 = vmatmul.f32.gmra.mxu0 %v238
  %v347 = vpop.f32.mrf.mxu0
  %v348 = vadd.f32 %v268, %v347
  %349 = vmatmul.f32.gmra.mxu0 %v239
  %v350 = vpop.f32.mrf.mxu0
  %v351 = vadd.f32 %v268, %v350
  %352 = vmatmul.f32.gmra.mxu0 %v240
  %v353 = vpop.f32.mrf.mxu0
  %v354 = vadd.f32 %v268, %v353
  %355 = vmatmul.f32.gmra.mxu0 %v241
  %v356 = vpop.f32.mrf.mxu0
  %v357 = vadd.f32 %v268, %v356
  %358 = vmatmul.f32.gmra.mxu0 %v242
  %v359 = vpop.f32.mrf.mxu0
  %v360 = vadd.f32 %v268, %v359
  %361 = vmatmul.f32.gmra.mxu0 %v243
  %v362 = vpop.f32.mrf.mxu0
  %v363 = vadd.f32 %v268, %v362
  %364 = vmatmul.f32.gmra.mxu0 %v244
  %v365 = vpop.f32.mrf.mxu0
  %v366 = vadd.f32 %v268, %v365
  %367 = vmatmul.f32.gmra.mxu0 %v245
  %v368 = vpop.f32.mrf.mxu0
  %v369 = vadd.f32 %v268, %v368
  %370 = vmatmul.f32.gmra.mxu0 %v246
  %v371 = vpop.f32.mrf.mxu0
  %v372 = vadd.f32 %v268, %v371
  %373 = vmatmul.f32.gmra.mxu0 %v247
  %v374 = vpop.f32.mrf.mxu0
  %v375 = vadd.f32 %v268, %v374
  %376 = vmatmul.f32.gmra.mxu0 %v248
  %v377 = vpop.f32.mrf.mxu0
  %v378 = vadd.f32 %v268, %v377
  %379 = vmatmul.f32.gmra.mxu0 %v249
  %v380 = vpop.f32.mrf.mxu0
  %v381 = vadd.f32 %v268, %v380
  %382 = vdwg.mxu0
  %383 = vst [vmem:[#allocation6] sm:$0xff] %v288
  %384 = vst [vmem:[#allocation6 + $0x8] sm:$0xff] %v291
  %385 = vst [vmem:[#allocation6 + $0x10] sm:$0xff] %v294
  %386 = vst [vmem:[#allocation6 + $0x18] sm:$0xff] %v297
  %387 = vst [vmem:[#allocation6 + $0x20] sm:$0xff] %v300
  %388 = vst [vmem:[#allocation6 + $0x28] sm:$0xff] %v303
  %389 = vst [vmem:[#allocation6 + $0x30] sm:$0xff] %v306
  %390 = vst [vmem:[#allocation6 + $0x38] sm:$0xff] %v309
  %391 = vst [vmem:[#allocation6 + $0x40] sm:$0xff] %v312
  %392 = vst [vmem:[#allocation6 + $0x48] sm:$0xff] %v315
  %393 = vst [vmem:[#allocation6 + $0x50] sm:$0xff] %v318
  %394 = vst [vmem:[#allocation6 + $0x58] sm:$0xff] %v321
  %395 = vst [vmem:[#allocation6 + $0x60] sm:$0xff] %v324
  %396 = vst [vmem:[#allocation6 + $0x68] sm:$0xff] %v327
  %397 = vst [vmem:[#allocation6 + $0x70] sm:$0xff] %v330
  %398 = vst [vmem:[#allocation6 + $0x78] sm:$0xff] %v333
  %399 = vst [vmem:[#allocation6 + $0x80] sm:$0xff] %v336
  %400 = vst [vmem:[#allocation6 + $0x88] sm:$0xff] %v339
  %401 = vst [vmem:[#allocation6 + $0x90] sm:$0xff] %v342
  %402 = vst [vmem:[#allocation6 + $0x98] sm:$0xff] %v345
  %403 = vst [vmem:[#allocation6 + $0xa0] sm:$0xff] %v348
  %404 = vst [vmem:[#allocation6 + $0xa8] sm:$0xff] %v351
  %405 = vst [vmem:[#allocation6 + $0xb0] sm:$0xff] %v354
  %406 = vst [vmem:[#allocation6 + $0xb8] sm:$0xff] %v357
  %407 = vst [vmem:[#allocation6 + $0xc0] sm:$0xff] %v360
  %408 = vst [vmem:[#allocation6 + $0xc8] sm:$0xff] %v363
  %409 = vst [vmem:[#allocation6 + $0xd0] sm:$0xff] %v366
  %410 = vst [vmem:[#allocation6 + $0xd8] sm:$0xff] %v369
  %411 = vst [vmem:[#allocation6 + $0xe0] sm:$0xff] %v372
  %412 = vst [vmem:[#allocation6 + $0xe8] sm:$0xff] %v375
  %413 = vst [vmem:[#allocation6 + $0xf0] sm:$0xff] %v378
  %414 = vst [vmem:[#allocation6 + $0xf8] sm:$0xff] %v381
  %v415 = vld [vmem:[#allocation3] sm:$0xff]
  %v416 = vld [vmem:[#allocation3 + $0x8] sm:$0xff]
  %v417 = vld [vmem:[#allocation3 + $0x10] sm:$0xff]
  %v418 = vld [vmem:[#allocation3 + $0x18] sm:$0xff]
  %v419 = vld [vmem:[#allocation3 + $0x20] sm:$0xff]
  %v420 = vld [vmem:[#allocation3 + $0x28] sm:$0xff]
  %v421 = vld [vmem:[#allocation3 + $0x30] sm:$0xff]
  %v422 = vld [vmem:[#allocation3 + $0x38] sm:$0xff]
  %v423 = vld [vmem:[#allocation3 + $0x40] sm:$0xff]
  %v424 = vld [vmem:[#allocation3 + $0x48] sm:$0xff]
  %v425 = vld [vmem:[#allocation3 + $0x50] sm:$0xff]
  %v426 = vld [vmem:[#allocation3 + $0x58] sm:$0xff]
  %v427 = vld [vmem:[#allocation3 + $0x60] sm:$0xff]
  %v428 = vld [vmem:[#allocation3 + $0x68] sm:$0xff]
  %v429 = vld [vmem:[#allocation3 + $0x70] sm:$0xff]
  %v430 = vld [vmem:[#allocation3 + $0x78] sm:$0xff]
  %s431 = scalar_lea.vmem [#allocation3], 128
  %v432 = vld [vmem:[%s431] sm:$0xff]
  %v433 = vld [vmem:[%s431 + $0x8] sm:$0xff]
  %v434 = vld [vmem:[%s431 + $0x10] sm:$0xff]
  %v435 = vld [vmem:[%s431 + $0x18] sm:$0xff]
  %v436 = vld [vmem:[%s431 + $0x20] sm:$0xff]
  %v437 = vld [vmem:[%s431 + $0x28] sm:$0xff]
  %v438 = vld [vmem:[%s431 + $0x30] sm:$0xff]
  %v439 = vld [vmem:[%s431 + $0x38] sm:$0xff]
  %v440 = vld [vmem:[%s431 + $0x40] sm:$0xff]
  %v441 = vld [vmem:[%s431 + $0x48] sm:$0xff]
  %v442 = vld [vmem:[%s431 + $0x50] sm:$0xff]
  %v443 = vld [vmem:[%s431 + $0x58] sm:$0xff]
  %v444 = vld [vmem:[%s431 + $0x60] sm:$0xff]
  %v445 = vld [vmem:[%s431 + $0x68] sm:$0xff]
  %v446 = vld [vmem:[%s431 + $0x70] sm:$0xff]
  %v447 = vld [vmem:[%s431 + $0x78] sm:$0xff]
  %v448 = vld [vmem:[#allocation4] sm:$0xff]
  %v449 = vld [vmem:[#allocation4 + $0x8] sm:$0xff]
  %v450 = vld [vmem:[#allocation4 + $0x10] sm:$0xff]
  %v451 = vld [vmem:[#allocation4 + $0x18] sm:$0xff]
  %v452 = vld [vmem:[#allocation4 + $0x20] sm:$0xff]
  %v453 = vld [vmem:[#allocation4 + $0x28] sm:$0xff]
  %v454 = vld [vmem:[#allocation4 + $0x30] sm:$0xff]
  %v455 = vld [vmem:[#allocation4 + $0x38] sm:$0xff]
  %v456 = vld [vmem:[#allocation4 + $0x40] sm:$0xff]
  %v457 = vld [vmem:[#allocation4 + $0x48] sm:$0xff]
  %v458 = vld [vmem:[#allocation4 + $0x50] sm:$0xff]
  %v459 = vld [vmem:[#allocation4 + $0x58] sm:$0xff]
  %v460 = vld [vmem:[#allocation4 + $0x60] sm:$0xff]
  %v461 = vld [vmem:[#allocation4 + $0x68] sm:$0xff]
  %v462 = vld [vmem:[#allocation4 + $0x70] sm:$0xff]
  %v463 = vld [vmem:[#allocation4 + $0x78] sm:$0xff]
  %s464 = scalar_lea.vmem %s2, 1
  %v465 = vld [vmem:[%s464] sm:$0x1]
  %v467 = vperm.slane %v465, 0
  %v469 = vld [vmem:[#allocation6] sm:$0xff]
  %v470 = vld [vmem:[#allocation6 + $0x8] sm:$0xff]
  %v471 = vld [vmem:[#allocation5] sm:$0xff]
  %v472 = vld [vmem:[#allocation5 + $0x8] sm:$0xff]
  %473 = vmatpush.msra.mxu0 %v430
  %474 = vmatpush.msra.mxu0 %v429
  %475 = vmatpush.msra.mxu0 %v428
  %476 = vmatpush.msra.mxu0 %v427
  %477 = vmatpush.msra.mxu0 %v426
  %478 = vmatpush.msra.mxu0 %v425
  %479 = vmatpush.msra.mxu0 %v424
  %480 = vmatpush.msra.mxu0 %v423
  %481 = vmatpush.msra.mxu0 %v422
  %482 = vmatpush.msra.mxu0 %v421
  %483 = vmatpush.msra.mxu0 %v420
  %484 = vmatpush.msra.mxu0 %v419
  %485 = vmatpush.msra.mxu0 %v418
  %486 = vmatpush.msra.mxu0 %v417
  %487 = vmatpush.msra.mxu0 %v416
  %488 = vmatpush.msra.mxu0 %v415
  %489 = vmatmul.f32.gmra.mxu0 %v471
  %v490 = vpop.f32.mrf.mxu0
  %v491 = vadd.f32 0.0, %v490
  %492 = vmatmul.f32.gmra.mxu0 %v472
  %v493 = vpop.f32.mrf.mxu0
  %v494 = vadd.f32 0.0, %v493
  %495 = vdwg.mxu0
  %v496 = vadd.f32 %v469, %v491
  %v497 = vadd.f32 %v470, %v494
  %v498 = vtanh.pop %v496
  %v499 = vtanh.pop %v497
  %500 = vst [vmem:[#allocation5] sm:$0xff] %v498
  %501 = vst [vmem:[#allocation5 + $0x8] sm:$0xff] %v499
  %s502 = scalar_lea.vmem [#allocation5], 16
  %v503 = vld [vmem:[%s502] sm:$0xff]
  %v504 = vld [vmem:[%s502 + $0x8] sm:$0xff]
  %505 = vmatpush.msra.mxu0 %v447
  %506 = vmatpush.msra.mxu0 %v446
  %507 = vmatpush.msra.mxu0 %v445
  %508 = vmatpush.msra.mxu0 %v444
  %509 = vmatpush.msra.mxu0 %v443
  %510 = vmatpush.msra.mxu0 %v442
  %511 = vmatpush.msra.mxu0 %v441
  %512 = vmatpush.msra.mxu0 %v440
  %513 = vmatpush.msra.mxu0 %v439
  %514 = vmatpush.msra.mxu0 %v438
  %515 = vmatpush.msra.mxu0 %v437
  %516 = vmatpush.msra.mxu0 %v436
  %517 = vmatpush.msra.mxu0 %v435
  %518 = vmatpush.msra.mxu0 %v434
  %519 = vmatpush.msra.mxu0 %v433
  %520 = vmatpush.msra.mxu0 %v432
  %521 = vmatmul.f32.gmra.mxu0 %v503
  %v522 = vpop.f32.mrf.mxu0
  %v523 = vadd.f32 0.0, %v522
  %524 = vmatmul.f32.gmra.mxu0 %v504
  %v525 = vpop.f32.mrf.mxu0
  %v526 = vadd.f32 0.0, %v525
  %527 = vdwg.mxu0
  %528 = vmatpush.msra.mxu0 %v463
  %529 = vmatpush.msra.mxu0 %v462
  %530 = vmatpush.msra.mxu0 %v461
  %531 = vmatpush.msra.mxu0 %v460
  %532 = vmatpush.msra.mxu0 %v459
  %533 = vmatpush.msra.mxu0 %v458
  %534 = vmatpush.msra.mxu0 %v457
  %535 = vmatpush.msra.mxu0 %v456
  %536 = vmatpush.msra.mxu0 %v455
  %537 = vmatpush.msra.mxu0 %v454
  %538 = vmatpush.msra.mxu0 %v453
  %539 = vmatpush.msra.mxu0 %v452
  %540 = vmatpush.msra.mxu0 %v451
  %541 = vmatpush.msra.mxu0 %v450
  %542 = vmatpush.msra.mxu0 %v449
  %543 = vmatpush.msra.mxu0 %v448
  %544 = vmatmul.f32.gmra.mxu0 %v498
  %v545 = vpop.f32.mrf.mxu0
  %v546 = vadd.f32 %v523, %v545
  %547 = vmatmul.f32.gmra.mxu0 %v499
  %v548 = vpop.f32.mrf.mxu0
  %v549 = vadd.f32 %v526, %v548
  %550 = vdwg.mxu0
  %v551 = vadd.f32 %v546, %v467
  %v552 = vadd.f32 %v549, %v467
  %v553 = vtanh.pop %v551
  %v554 = vtanh.pop %v552
  %555 = vst [vmem:[%s502] sm:$0xff] %v553
  %556 = vst [vmem:[%s502 + $0x8] sm:$0xff] %v554
  %557 = vst [vmem:[%s6] sm:$0xff] %v553
  %558 = vst [vmem:[%s6 + $0x8] sm:$0xff] %v554
  %s559 = scalar_lea.vmem [#allocation6], 16
  %v560 = vld [vmem:[%s559] sm:$0xff]
  %v561 = vld [vmem:[%s559 + $0x8] sm:$0xff]
  %v562 = vld [vmem:[#allocation5] sm:$0xff]
  %v563 = vld [vmem:[#allocation5 + $0x8] sm:$0xff]
  %564 = vmatpush.msra.mxu0 %v430
  %565 = vmatpush.msra.mxu0 %v429
  %566 = vmatpush.msra.mxu0 %v428
  %567 = vmatpush.msra.mxu0 %v427
  %568 = vmatpush.msra.mxu0 %v426
  %569 = vmatpush.msra.mxu0 %v425
  %570 = vmatpush.msra.mxu0 %v424
  %571 = vmatpush.msra.mxu0 %v423
  %572 = vmatpush.msra.mxu0 %v422
  %573 = vmatpush.msra.mxu0 %v421
  %574 = vmatpush.msra.mxu0 %v420
  %575 = vmatpush.msra.mxu0 %v419
  %576 = vmatpush.msra.mxu0 %v418
  %577 = vmatpush.msra.mxu0 %v417
  %578 = vmatpush.msra.mxu0 %v416
  %579 = vmatpush.msra.mxu0 %v415
  %580 = vmatmul.f32.gmra.mxu0 %v562
  %v581 = vpop.f32.mrf.mxu0
  %v582 = vadd.f32 0.0, %v581
  %583 = vmatmul.f32.gmra.mxu0 %v563
  %v584 = vpop.f32.mrf.mxu0
  %v585 = vadd.f32 0.0, %v584
  %586 = vdwg.mxu0
  %v587 = vadd.f32 %v560, %v582
  %v588 = vadd.f32 %v561, %v585
  %v589 = vtanh.pop %v587
  %v590 = vtanh.pop %v588
  %591 = vst [vmem:[#allocation5] sm:$0xff] %v589
  %592 = vst [vmem:[#allocation5 + $0x8] sm:$0xff] %v590
  %v593 = vld [vmem:[%s502] sm:$0xff]
  %v594 = vld [vmem:[%s502 + $0x8] sm:$0xff]
  %595 = vmatpush.msra.mxu0 %v447
  %596 = vmatpush.msra.mxu0 %v446
  %597 = vmatpush.msra.mxu0 %v445
  %598 = vmatpush.msra.mxu0 %v444
  %599 = vmatpush.msra.mxu0 %v443
  %600 = vmatpush.msra.mxu0 %v442
  %601 = vmatpush.msra.mxu0 %v441
  %602 = vmatpush.msra.mxu0 %v440
  %603 = vmatpush.msra.mxu0 %v439
  %604 = vmatpush.msra.mxu0 %v438
  %605 = vmatpush.msra.mxu0 %v437
  %606 = vmatpush.msra.mxu0 %v436
  %607 = vmatpush.msra.mxu0 %v435
  %608 = vmatpush.msra.mxu0 %v434
  %609 = vmatpush.msra.mxu0 %v433
  %610 = vmatpush.msra.mxu0 %v432
  %611 = vmatmul.f32.gmra.mxu0 %v593
  %v612 = vpop.f32.mrf.mxu0
  %v613 = vadd.f32 0.0, %v612
  %614 = vmatmul.f32.gmra.mxu0 %v594
  %v615 = vpop.f32.mrf.mxu0
  %v616 = vadd.f32 0.0, %v615
  %617 = vdwg.mxu0
  %618 = vmatpush.msra.mxu0 %v463
  %619 = vmatpush.msra.mxu0 %v462
  %620 = vmatpush.msra.mxu0 %v461
  %621 = vmatpush.msra.mxu0 %v460
  %622 = vmatpush.msra.mxu0 %v459
  %623 = vmatpush.msra.mxu0 %v458
  %624 = vmatpush.msra.mxu0 %v457
  %625 = vmatpush.msra.mxu0 %v456
  %626 = vmatpush.msra.mxu0 %v455
  %627 = vmatpush.msra.mxu0 %v454
  %628 = vmatpush.msra.mxu0 %v453
  %629 = vmatpush.msra.mxu0 %v452
  %630 = vmatpush.msra.mxu0 %v451
  %631 = vmatpush.msra.mxu0 %v450
  %632 = vmatpush.msra.mxu0 %v449
  %633 = vmatpush.msra.mxu0 %v448
  %634 = vmatmul.f32.gmra.mxu0 %v589
  %v635 = vpop.f32.mrf.mxu0
  %v636 = vadd.f32 %v613, %v635
  %637 = vmatmul.f32.gmra.mxu0 %v590
  %v638 = vpop.f32.mrf.mxu0
  %v639 = vadd.f32 %v616, %v638
  %640 = vdwg.mxu0
  %v641 = vadd.f32 %v636, %v467
  %v642 = vadd.f32 %v639, %v467
  %v643 = vtanh.pop %v641
  %v644 = vtanh.pop %v642
  %645 = vst [vmem:[%s502] sm:$0xff] %v643
  %646 = vst [vmem:[%s502 + $0x8] sm:$0xff] %v644
  %s647 = scalar_lea.vmem %s6, 16
  %648 = vst [vmem:[%s647] sm:$0xff] %v643
  %649 = vst [vmem:[%s647 + $0x8] sm:$0xff] %v644
  %s650 = scalar_lea.vmem [#allocation6], 32
  %v651 = vld [vmem:[%s650] sm:$0xff]
  %v652 = vld [vmem:[%s650 + $0x8] sm:$0xff]
  %v653 = vld [vmem:[#allocation5] sm:$0xff]
  %v654 = vld [vmem:[#allocation5 + $0x8] sm:$0xff]
  %655 = vmatpush.msra.mxu0 %v430
  %656 = vmatpush.msra.mxu0 %v429
  %657 = vmatpush.msra.mxu0 %v428
  %658 = vmatpush.msra.mxu0 %v427
  %659 = vmatpush.msra.mxu0 %v426
  %660 = vmatpush.msra.mxu0 %v425
  %661 = vmatpush.msra.mxu0 %v424
  %662 = vmatpush.msra.mxu0 %v423
  %663 = vmatpush.msra.mxu0 %v422
  %664 = vmatpush.msra.mxu0 %v421
  %665 = vmatpush.msra.mxu0 %v420
  %666 = vmatpush.msra.mxu0 %v419
  %667 = vmatpush.msra.mxu0 %v418
  %668 = vmatpush.msra.mxu0 %v417
  %669 = vmatpush.msra.mxu0 %v416
  %670 = vmatpush.msra.mxu0 %v415
  %671 = vmatmul.f32.gmra.mxu0 %v653
  %v672 = vpop.f32.mrf.mxu0
  %v673 = vadd.f32 0.0, %v672
  %674 = vmatmul.f32.gmra.mxu0 %v654
  %v675 = vpop.f32.mrf.mxu0
  %v676 = vadd.f32 0.0, %v675
  %677 = vdwg.mxu0
  %v678 = vadd.f32 %v651, %v673
  %v679 = vadd.f32 %v652, %v676
  %v680 = vtanh.pop %v678
  %v681 = vtanh.pop %v679
  %682 = vst [vmem:[#allocation5] sm:$0xff] %v680
  %683 = vst [vmem:[#allocation5 + $0x8] sm:$0xff] %v681
  %v684 = vld [vmem:[%s502] sm:$0xff]
  %v685 = vld [vmem:[%s502 + $0x8] sm:$0xff]
  %686 = vmatpush.msra.mxu0 %v447
  %687 = vmatpush.msra.mxu0 %v446
  %688 = vmatpush.msra.mxu0 %v445
  %689 = vmatpush.msra.mxu0 %v444
  %690 = vmatpush.msra.mxu0 %v443
  %691 = vmatpush.msra.mxu0 %v442
  %692 = vmatpush.msra.mxu0 %v441
  %693 = vmatpush.msra.mxu0 %v440
  %694 = vmatpush.msra.mxu0 %v439
  %695 = vmatpush.msra.mxu0 %v438
  %696 = vmatpush.msra.mxu0 %v437
  %697 = vmatpush.msra.mxu0 %v436
  %698 = vmatpush.msra.mxu0 %v435
  %699 = vmatpush.msra.mxu0 %v434
  %700 = vmatpush.msra.mxu0 %v433
  %701 = vmatpush.msra.mxu0 %v432
  %702 = vmatmul.f32.gmra.mxu0 %v684
  %v703 = vpop.f32.mrf.mxu0
  %v704 = vadd.f32 0.0, %v703
  %705 = vmatmul.f32.gmra.mxu0 %v685
  %v706 = vpop.f32.mrf.mxu0
  %v707 = vadd.f32 0.0, %v706
  %708 = vdwg.mxu0
  %709 = vmatpush.msra.mxu0 %v463
  %710 = vmatpush.msra.mxu0 %v462
  %711 = vmatpush.msra.mxu0 %v461
  %712 = vmatpush.msra.mxu0 %v460
  %713 = vmatpush.msra.mxu0 %v459
  %714 = vmatpush.msra.mxu0 %v458
  %715 = vmatpush.msra.mxu0 %v457
  %716 = vmatpush.msra.mxu0 %v456
  %717 = vmatpush.msra.mxu0 %v455
  %718 = vmatpush.msra.mxu0 %v454
  %719 = vmatpush.msra.mxu0 %v453
  %720 = vmatpush.msra.mxu0 %v452
  %721 = vmatpush.msra.mxu0 %v451
  %722 = vmatpush.msra.mxu0 %v450
  %723 = vmatpush.msra.mxu0 %v449
  %724 = vmatpush.msra.mxu0 %v448
  %725 = vmatmul.f32.gmra.mxu0 %v680
  %v726 = vpop.f32.mrf.mxu0
  %v727 = vadd.f32 %v704, %v726
  %728 = vmatmul.f32.gmra.mxu0 %v681
  %v729 = vpop.f32.mrf.mxu0
  %v730 = vadd.f32 %v707, %v729
  %731 = vdwg.mxu0
  %v732 = vadd.f32 %v727, %v467
  %v733 = vadd.f32 %v730, %v467
  %v734 = vtanh.pop %v732
  %v735 = vtanh.pop %v733
  %736 = vst [vmem:[%s502] sm:$0xff] %v734
  %737 = vst [vmem:[%s502 + $0x8] sm:$0xff] %v735
  %s738 = scalar_lea.vmem %s6, 32
  %739 = vst [vmem:[%s738] sm:$0xff] %v734
  %740 = vst [vmem:[%s738 + $0x8] sm:$0xff] %v735
  %s741 = scalar_lea.vmem [#allocation6], 48
  %v742 = vld [vmem:[%s741] sm:$0xff]
  %v743 = vld [vmem:[%s741 + $0x8] sm:$0xff]
  %v744 = vld [vmem:[#allocation5] sm:$0xff]
  %v745 = vld [vmem:[#allocation5 + $0x8] sm:$0xff]
  %746 = vmatpush.msra.mxu0 %v430
  %747 = vmatpush.msra.mxu0 %v429
  %748 = vmatpush.msra.mxu0 %v428
  %749 = vmatpush.msra.mxu0 %v427
  %750 = vmatpush.msra.mxu0 %v426
  %751 = vmatpush.msra.mxu0 %v425
  %752 = vmatpush.msra.mxu0 %v424
  %753 = vmatpush.msra.mxu0 %v423
  %754 = vmatpush.msra.mxu0 %v422
  %755 = vmatpush.msra.mxu0 %v421
  %756 = vmatpush.msra.mxu0 %v420
  %757 = vmatpush.msra.mxu0 %v419
  %758 = vmatpush.msra.mxu0 %v418
  %759 = vmatpush.msra.mxu0 %v417
  %760 = vmatpush.msra.mxu0 %v416
  %761 = vmatpush.msra.mxu0 %v415
  %762 = vmatmul.f32.gmra.mxu0 %v744
  %v763 = vpop.f32.mrf.mxu0
  %v764 = vadd.f32 0.0, %v763
  %765 = vmatmul.f32.gmra.mxu0 %v745
  %v766 = vpop.f32.mrf.mxu0
  %v767 = vadd.f32 0.0, %v766
  %768 = vdwg.mxu0
  %v769 = vadd.f32 %v742, %v764
  %v770 = vadd.f32 %v743, %v767
  %v771 = vtanh.pop %v769
  %v772 = vtanh.pop %v770
  %773 = vst [vmem:[#allocation5] sm:$0xff] %v771
  %774 = vst [vmem:[#allocation5 + $0x8] sm:$0xff] %v772
  %v775 = vld [vmem:[%s502] sm:$0xff]
  %v776 = vld [vmem:[%s502 + $0x8] sm:$0xff]
  %777 = vmatpush.msra.mxu0 %v447
  %778 = vmatpush.msra.mxu0 %v446
  %779 = vmatpush.msra.mxu0 %v445
  %780 = vmatpush.msra.mxu0 %v444
  %781 = vmatpush.msra.mxu0 %v443
  %782 = vmatpush.msra.mxu0 %v442
  %783 = vmatpush.msra.mxu0 %v441
  %784 = vmatpush.msra.mxu0 %v440
  %785 = vmatpush.msra.mxu0 %v439
  %786 = vmatpush.msra.mxu0 %v438
  %787 = vmatpush.msra.mxu0 %v437
  %788 = vmatpush.msra.mxu0 %v436
  %789 = vmatpush.msra.mxu0 %v435
  %790 = vmatpush.msra.mxu0 %v434
  %791 = vmatpush.msra.mxu0 %v433
  %792 = vmatpush.msra.mxu0 %v432
  %793 = vmatmul.f32.gmra.mxu0 %v775
  %v794 = vpop.f32.mrf.mxu0
  %v795 = vadd.f32 0.0, %v794
  %796 = vmatmul.f32.gmra.mxu0 %v776
  %v797 = vpop.f32.mrf.mxu0
  %v798 = vadd.f32 0.0, %v797
  %799 = vdwg.mxu0
  %800 = vmatpush.msra.mxu0 %v463
  %801 = vmatpush.msra.mxu0 %v462
  %802 = vmatpush.msra.mxu0 %v461
  %803 = vmatpush.msra.mxu0 %v460
  %804 = vmatpush.msra.mxu0 %v459
  %805 = vmatpush.msra.mxu0 %v458
  %806 = vmatpush.msra.mxu0 %v457
  %807 = vmatpush.msra.mxu0 %v456
  %808 = vmatpush.msra.mxu0 %v455
  %809 = vmatpush.msra.mxu0 %v454
  %810 = vmatpush.msra.mxu0 %v453
  %811 = vmatpush.msra.mxu0 %v452
  %812 = vmatpush.msra.mxu0 %v451
  %813 = vmatpush.msra.mxu0 %v450
  %814 = vmatpush.msra.mxu0 %v449
  %815 = vmatpush.msra.mxu0 %v448
  %816 = vmatmul.f32.gmra.mxu0 %v771
  %v817 = vpop.f32.mrf.mxu0
  %v818 = vadd.f32 %v795, %v817
  %819 = vmatmul.f32.gmra.mxu0 %v772
  %v820 = vpop.f32.mrf.mxu0
  %v821 = vadd.f32 %v798, %v820
  %822 = vdwg.mxu0
  %v823 = vadd.f32 %v818, %v467
  %v824 = vadd.f32 %v821, %v467
  %v825 = vtanh.pop %v823
  %v826 = vtanh.pop %v824
  %827 = vst [vmem:[%s502] sm:$0xff] %v825
  %828 = vst [vmem:[%s502 + $0x8] sm:$0xff] %v826
  %s829 = scalar_lea.vmem %s6, 48
  %830 = vst [vmem:[%s829] sm:$0xff] %v825
  %831 = vst [vmem:[%s829 + $0x8] sm:$0xff] %v826
  %s832 = scalar_lea.vmem [#allocation6], 64
  %v833 = vld [vmem:[%s832] sm:$0xff]
  %v834 = vld [vmem:[%s832 + $0x8] sm:$0xff]
  %v835 = vld [vmem:[#allocation5] sm:$0xff]
  %v836 = vld [vmem:[#allocation5 + $0x8] sm:$0xff]
  %837 = vmatpush.msra.mxu0 %v430
  %838 = vmatpush.msra.mxu0 %v429
  %839 = vmatpush.msra.mxu0 %v428
  %840 = vmatpush.msra.mxu0 %v427
  %841 = vmatpush.msra.mxu0 %v426
  %842 = vmatpush.msra.mxu0 %v425
  %843 = vmatpush.msra.mxu0 %v424
  %844 = vmatpush.msra.mxu0 %v423
  %845 = vmatpush.msra.mxu0 %v422
  %846 = vmatpush.msra.mxu0 %v421
  %847 = vmatpush.msra.mxu0 %v420
  %848 = vmatpush.msra.mxu0 %v419
  %849 = vmatpush.msra.mxu0 %v418
  %850 = vmatpush.msra.mxu0 %v417
  %851 = vmatpush.msra.mxu0 %v416
  %852 = vmatpush.msra.mxu0 %v415
  %853 = vmatmul.f32.gmra.mxu0 %v835
  %v854 = vpop.f32.mrf.mxu0
  %v855 = vadd.f32 0.0, %v854
  %856 = vmatmul.f32.gmra.mxu0 %v836
  %v857 = vpop.f32.mrf.mxu0
  %v858 = vadd.f32 0.0, %v857
  %859 = vdwg.mxu0
  %v860 = vadd.f32 %v833, %v855
  %v861 = vadd.f32 %v834, %v858
  %v862 = vtanh.pop %v860
  %v863 = vtanh.pop %v861
  %864 = vst [vmem:[#allocation5] sm:$0xff] %v862
  %865 = vst [vmem:[#allocation5 + $0x8] sm:$0xff] %v863
  %v866 = vld [vmem:[%s502] sm:$0xff]
  %v867 = vld [vmem:[%s502 + $0x8] sm:$0xff]
  %868 = vmatpush.msra.mxu0 %v447
  %869 = vmatpush.msra.mxu0 %v446
  %870 = vmatpush.msra.mxu0 %v445
  %871 = vmatpush.msra.mxu0 %v444
  %872 = vmatpush.msra.mxu0 %v443
  %873 = vmatpush.msra.mxu0 %v442
  %874 = vmatpush.msra.mxu0 %v441
  %875 = vmatpush.msra.mxu0 %v440
  %876 = vmatpush.msra.mxu0 %v439
  %877 = vmatpush.msra.mxu0 %v438
  %878 = vmatpush.msra.mxu0 %v437
  %879 = vmatpush.msra.mxu0 %v436
  %880 = vmatpush.msra.mxu0 %v435
  %881 = vmatpush.msra.mxu0 %v434
  %882 = vmatpush.msra.mxu0 %v433
  %883 = vmatpush.msra.mxu0 %v432
  %884 = vmatmul.f32.gmra.mxu0 %v866
  %v885 = vpop.f32.mrf.mxu0
  %v886 = vadd.f32 0.0, %v885
  %887 = vmatmul.f32.gmra.mxu0 %v867
  %v888 = vpop.f32.mrf.mxu0
  %v889 = vadd.f32 0.0, %v888
  %890 = vdwg.mxu0
  %891 = vmatpush.msra.mxu0 %v463
  %892 = vmatpush.msra.mxu0 %v462
  %893 = vmatpush.msra.mxu0 %v461
  %894 = vmatpush.msra.mxu0 %v460
  %895 = vmatpush.msra.mxu0 %v459
  %896 = vmatpush.msra.mxu0 %v458
  %897 = vmatpush.msra.mxu0 %v457
  %898 = vmatpush.msra.mxu0 %v456
  %899 = vmatpush.msra.mxu0 %v455
  %900 = vmatpush.msra.mxu0 %v454
  %901 = vmatpush.msra.mxu0 %v453
  %902 = vmatpush.msra.mxu0 %v452
  %903 = vmatpush.msra.mxu0 %v451
  %904 = vmatpush.msra.mxu0 %v450
  %905 = vmatpush.msra.mxu0 %v449
  %906 = vmatpush.msra.mxu0 %v448
  %907 = vmatmul.f32.gmra.mxu0 %v862
  %v908 = vpop.f32.mrf.mxu0
  %v909 = vadd.f32 %v886, %v908
  %910 = vmatmul.f32.gmra.mxu0 %v863
  %v911 = vpop.f32.mrf.mxu0
  %v912 = vadd.f32 %v889, %v911
  %913 = vdwg.mxu0
  %v914 = vadd.f32 %v909, %v467
  %v915 = vadd.f32 %v912, %v467
  %v916 = vtanh.pop %v914
  %v917 = vtanh.pop %v915
  %918 = vst [vmem:[%s502] sm:$0xff] %v916
  %919 = vst [vmem:[%s502 + $0x8] sm:$0xff] %v917
  %s920 = scalar_lea.vmem %s6, 64
  %921 = vst [vmem:[%s920] sm:$0xff] %v916
  %922 = vst [vmem:[%s920 + $0x8] sm:$0xff] %v917
  %s923 = scalar_lea.vmem [#allocation6], 80
  %v924 = vld [vmem:[%s923] sm:$0xff]
  %v925 = vld [vmem:[%s923 + $0x8] sm:$0xff]
  %v926 = vld [vmem:[#allocation5] sm:$0xff]
  %v927 = vld [vmem:[#allocation5 + $0x8] sm:$0xff]
  %928 = vmatpush.msra.mxu0 %v430
  %929 = vmatpush.msra.mxu0 %v429
  %930 = vmatpush.msra.mxu0 %v428
  %931 = vmatpush.msra.mxu0 %v427
  %932 = vmatpush.msra.mxu0 %v426
  %933 = vmatpush.msra.mxu0 %v425
  %934 = vmatpush.msra.mxu0 %v424
  %935 = vmatpush.msra.mxu0 %v423
  %936 = vmatpush.msra.mxu0 %v422
  %937 = vmatpush.msra.mxu0 %v421
  %938 = vmatpush.msra.mxu0 %v420
  %939 = vmatpush.msra.mxu0 %v419
  %940 = vmatpush.msra.mxu0 %v418
  %941 = vmatpush.msra.mxu0 %v417
  %942 = vmatpush.msra.mxu0 %v416
  %943 = vmatpush.msra.mxu0 %v415
  %944 = vmatmul.f32.gmra.mxu0 %v926
  %v945 = vpop.f32.mrf.mxu0
  %v946 = vadd.f32 0.0, %v945
  %947 = vmatmul.f32.gmra.mxu0 %v927
  %v948 = vpop.f32.mrf.mxu0
  %v949 = vadd.f32 0.0, %v948
  %950 = vdwg.mxu0
  %v951 = vadd.f32 %v924, %v946
  %v952 = vadd.f32 %v925, %v949
  %v953 = vtanh.pop %v951
  %v954 = vtanh.pop %v952
  %955 = vst [vmem:[#allocation5] sm:$0xff] %v953
  %956 = vst [vmem:[#allocation5 + $0x8] sm:$0xff] %v954
  %v957 = vld [vmem:[%s502] sm:$0xff]
  %v958 = vld [vmem:[%s502 + $0x8] sm:$0xff]
  %959 = vmatpush.msra.mxu0 %v447
  %960 = vmatpush.msra.mxu0 %v446
  %961 = vmatpush.msra.mxu0 %v445
  %962 = vmatpush.msra.mxu0 %v444
  %963 = vmatpush.msra.mxu0 %v443
  %964 = vmatpush.msra.mxu0 %v442
  %965 = vmatpush.msra.mxu0 %v441
  %966 = vmatpush.msra.mxu0 %v440
  %967 = vmatpush.msra.mxu0 %v439
  %968 = vmatpush.msra.mxu0 %v438
  %969 = vmatpush.msra.mxu0 %v437
  %970 = vmatpush.msra.mxu0 %v436
  %971 = vmatpush.msra.mxu0 %v435
  %972 = vmatpush.msra.mxu0 %v434
  %973 = vmatpush.msra.mxu0 %v433
  %974 = vmatpush.msra.mxu0 %v432
  %975 = vmatmul.f32.gmra.mxu0 %v957
  %v976 = vpop.f32.mrf.mxu0
  %v977 = vadd.f32 0.0, %v976
  %978 = vmatmul.f32.gmra.mxu0 %v958
  %v979 = vpop.f32.mrf.mxu0
  %v980 = vadd.f32 0.0, %v979
  %981 = vdwg.mxu0
  %982 = vmatpush.msra.mxu0 %v463
  %983 = vmatpush.msra.mxu0 %v462
  %984 = vmatpush.msra.mxu0 %v461
  %985 = vmatpush.msra.mxu0 %v460
  %986 = vmatpush.msra.mxu0 %v459
  %987 = vmatpush.msra.mxu0 %v458
  %988 = vmatpush.msra.mxu0 %v457
  %989 = vmatpush.msra.mxu0 %v456
  %990 = vmatpush.msra.mxu0 %v455
  %991 = vmatpush.msra.mxu0 %v454
  %992 = vmatpush.msra.mxu0 %v453
  %993 = vmatpush.msra.mxu0 %v452
  %994 = vmatpush.msra.mxu0 %v451
  %995 = vmatpush.msra.mxu0 %v450
  %996 = vmatpush.msra.mxu0 %v449
  %997 = vmatpush.msra.mxu0 %v448
  %998 = vmatmul.f32.gmra.mxu0 %v953
  %v999 = vpop.f32.mrf.mxu0
  %v1000 = vadd.f32 %v977, %v999
  %1001 = vmatmul.f32.gmra.mxu0 %v954
  %v1002 = vpop.f32.mrf.mxu0
  %v1003 = vadd.f32 %v980, %v1002
  %1004 = vdwg.mxu0
  %v1005 = vadd.f32 %v1000, %v467
  %v1006 = vadd.f32 %v1003, %v467
  %v1007 = vtanh.pop %v1005
  %v1008 = vtanh.pop %v1006
  %1009 = vst [vmem:[%s502] sm:$0xff] %v1007
  %1010 = vst [vmem:[%s502 + $0x8] sm:$0xff] %v1008
  %s1011 = scalar_lea.vmem %s6, 80
  %1012 = vst [vmem:[%s1011] sm:$0xff] %v1007
  %1013 = vst [vmem:[%s1011 + $0x8] sm:$0xff] %v1008
  %s1014 = scalar_lea.vmem [#allocation6], 96
  %v1015 = vld [vmem:[%s1014] sm:$0xff]
  %v1016 = vld [vmem:[%s1014 + $0x8] sm:$0xff]
  %v1017 = vld [vmem:[#allocation5] sm:$0xff]
  %v1018 = vld [vmem:[#allocation5 + $0x8] sm:$0xff]
  %1019 = vmatpush.msra.mxu0 %v430
  %1020 = vmatpush.msra.mxu0 %v429
  %1021 = vmatpush.msra.mxu0 %v428
  %1022 = vmatpush.msra.mxu0 %v427
  %1023 = vmatpush.msra.mxu0 %v426
  %1024 = vmatpush.msra.mxu0 %v425
  %1025 = vmatpush.msra.mxu0 %v424
  %1026 = vmatpush.msra.mxu0 %v423
  %1027 = vmatpush.msra.mxu0 %v422
  %1028 = vmatpush.msra.mxu0 %v421
  %1029 = vmatpush.msra.mxu0 %v420
  %1030 = vmatpush.msra.mxu0 %v419
  %1031 = vmatpush.msra.mxu0 %v418
  %1032 = vmatpush.msra.mxu0 %v417
  %1033 = vmatpush.msra.mxu0 %v416
  %1034 = vmatpush.msra.mxu0 %v415
  %1035 = vmatmul.f32.gmra.mxu0 %v1017
  %v1036 = vpop.f32.mrf.mxu0
  %v1037 = vadd.f32 0.0, %v1036
  %1038 = vmatmul.f32.gmra.mxu0 %v1018
  %v1039 = vpop.f32.mrf.mxu0
  %v1040 = vadd.f32 0.0, %v1039
  %1041 = vdwg.mxu0
  %v1042 = vadd.f32 %v1015, %v1037
  %v1043 = vadd.f32 %v1016, %v1040
  %v1044 = vtanh.pop %v1042
  %v1045 = vtanh.pop %v1043
  %1046 = vst [vmem:[#allocation5] sm:$0xff] %v1044
  %1047 = vst [vmem:[#allocation5 + $0x8] sm:$0xff] %v1045
  %v1048 = vld [vmem:[%s502] sm:$0xff]
  %v1049 = vld [vmem:[%s502 + $0x8] sm:$0xff]
  %1050 = vmatpush.msra.mxu0 %v447
  %1051 = vmatpush.msra.mxu0 %v446
  %1052 = vmatpush.msra.mxu0 %v445
  %1053 = vmatpush.msra.mxu0 %v444
  %1054 = vmatpush.msra.mxu0 %v443
  %1055 = vmatpush.msra.mxu0 %v442
  %1056 = vmatpush.msra.mxu0 %v441
  %1057 = vmatpush.msra.mxu0 %v440
  %1058 = vmatpush.msra.mxu0 %v439
  %1059 = vmatpush.msra.mxu0 %v438
  %1060 = vmatpush.msra.mxu0 %v437
  %1061 = vmatpush.msra.mxu0 %v436
  %1062 = vmatpush.msra.mxu0 %v435
  %1063 = vmatpush.msra.mxu0 %v434
  %1064 = vmatpush.msra.mxu0 %v433
  %1065 = vmatpush.msra.mxu0 %v432
  %1066 = vmatmul.f32.gmra.mxu0 %v1048
  %v1067 = vpop.f32.mrf.mxu0
  %v1068 = vadd.f32 0.0, %v1067
  %1069 = vmatmul.f32.gmra.mxu0 %v1049
  %v1070 = vpop.f32.mrf.mxu0
  %v1071 = vadd.f32 0.0, %v1070
  %1072 = vdwg.mxu0
  %1073 = vmatpush.msra.mxu0 %v463
  %1074 = vmatpush.msra.mxu0 %v462
  %1075 = vmatpush.msra.mxu0 %v461
  %1076 = vmatpush.msra.mxu0 %v460
  %1077 = vmatpush.msra.mxu0 %v459
  %1078 = vmatpush.msra.mxu0 %v458
  %1079 = vmatpush.msra.mxu0 %v457
  %1080 = vmatpush.msra.mxu0 %v456
  %1081 = vmatpush.msra.mxu0 %v455
  %1082 = vmatpush.msra.mxu0 %v454
  %1083 = vmatpush.msra.mxu0 %v453
  %1084 = vmatpush.msra.mxu0 %v452
  %1085 = vmatpush.msra.mxu0 %v451
  %1086 = vmatpush.msra.mxu0 %v450
  %1087 = vmatpush.msra.mxu0 %v449
  %1088 = vmatpush.msra.mxu0 %v448
  %1089 = vmatmul.f32.gmra.mxu0 %v1044
  %v1090 = vpop.f32.mrf.mxu0
  %v1091 = vadd.f32 %v1068, %v1090
  %1092 = vmatmul.f32.gmra.mxu0 %v1045
  %v1093 = vpop.f32.mrf.mxu0
  %v1094 = vadd.f32 %v1071, %v1093
  %1095 = vdwg.mxu0
  %v1096 = vadd.f32 %v1091, %v467
  %v1097 = vadd.f32 %v1094, %v467
  %v1098 = vtanh.pop %v1096
  %v1099 = vtanh.pop %v1097
  %1100 = vst [vmem:[%s502] sm:$0xff] %v1098
  %1101 = vst [vmem:[%s502 + $0x8] sm:$0xff] %v1099
  %s1102 = scalar_lea.vmem %s6, 96
  %1103 = vst [vmem:[%s1102] sm:$0xff] %v1098
  %1104 = vst [vmem:[%s1102 + $0x8] sm:$0xff] %v1099
  %s1105 = scalar_lea.vmem [#allocation6], 112
  %v1106 = vld [vmem:[%s1105] sm:$0xff]
  %v1107 = vld [vmem:[%s1105 + $0x8] sm:$0xff]
  %v1108 = vld [vmem:[#allocation5] sm:$0xff]
  %v1109 = vld [vmem:[#allocation5 + $0x8] sm:$0xff]
  %1110 = vmatpush.msra.mxu0 %v430
  %1111 = vmatpush.msra.mxu0 %v429
  %1112 = vmatpush.msra.mxu0 %v428
  %1113 = vmatpush.msra.mxu0 %v427
  %1114 = vmatpush.msra.mxu0 %v426
  %1115 = vmatpush.msra.mxu0 %v425
  %1116 = vmatpush.msra.mxu0 %v424
  %1117 = vmatpush.msra.mxu0 %v423
  %1118 = vmatpush.msra.mxu0 %v422
  %1119 = vmatpush.msra.mxu0 %v421
  %1120 = vmatpush.msra.mxu0 %v420
  %1121 = vmatpush.msra.mxu0 %v419
  %1122 = vmatpush.msra.mxu0 %v418
  %1123 = vmatpush.msra.mxu0 %v417
  %1124 = vmatpush.msra.mxu0 %v416
  %1125 = vmatpush.msra.mxu0 %v415
  %1126 = vmatmul.f32.gmra.mxu0 %v1108
  %v1127 = vpop.f32.mrf.mxu0
  %v1128 = vadd.f32 0.0, %v1127
  %1129 = vmatmul.f32.gmra.mxu0 %v1109
  %v1130 = vpop.f32.mrf.mxu0
  %v1131 = vadd.f32 0.0, %v1130
  %1132 = vdwg.mxu0
  %v1133 = vadd.f32 %v1106, %v1128
  %v1134 = vadd.f32 %v1107, %v1131
  %v1135 = vtanh.pop %v1133
  %v1136 = vtanh.pop %v1134
  %1137 = vst [vmem:[#allocation5] sm:$0xff] %v1135
  %1138 = vst [vmem:[#allocation5 + $0x8] sm:$0xff] %v1136
  %v1139 = vld [vmem:[%s502] sm:$0xff]
  %v1140 = vld [vmem:[%s502 + $0x8] sm:$0xff]
  %1141 = vmatpush.msra.mxu0 %v447
  %1142 = vmatpush.msra.mxu0 %v446
  %1143 = vmatpush.msra.mxu0 %v445
  %1144 = vmatpush.msra.mxu0 %v444
  %1145 = vmatpush.msra.mxu0 %v443
  %1146 = vmatpush.msra.mxu0 %v442
  %1147 = vmatpush.msra.mxu0 %v441
  %1148 = vmatpush.msra.mxu0 %v440
  %1149 = vmatpush.msra.mxu0 %v439
  %1150 = vmatpush.msra.mxu0 %v438
  %1151 = vmatpush.msra.mxu0 %v437
  %1152 = vmatpush.msra.mxu0 %v436
  %1153 = vmatpush.msra.mxu0 %v435
  %1154 = vmatpush.msra.mxu0 %v434
  %1155 = vmatpush.msra.mxu0 %v433
  %1156 = vmatpush.msra.mxu0 %v432
  %1157 = vmatmul.f32.gmra.mxu0 %v1139
  %v1158 = vpop.f32.mrf.mxu0
  %v1159 = vadd.f32 0.0, %v1158
  %1160 = vmatmul.f32.gmra.mxu0 %v1140
  %v1161 = vpop.f32.mrf.mxu0
  %v1162 = vadd.f32 0.0, %v1161
  %1163 = vdwg.mxu0
  %1164 = vmatpush.msra.mxu0 %v463
  %1165 = vmatpush.msra.mxu0 %v462
  %1166 = vmatpush.msra.mxu0 %v461
  %1167 = vmatpush.msra.mxu0 %v460
  %1168 = vmatpush.msra.mxu0 %v459
  %1169 = vmatpush.msra.mxu0 %v458
  %1170 = vmatpush.msra.mxu0 %v457
  %1171 = vmatpush.msra.mxu0 %v456
  %1172 = vmatpush.msra.mxu0 %v455
  %1173 = vmatpush.msra.mxu0 %v454
  %1174 = vmatpush.msra.mxu0 %v453
  %1175 = vmatpush.msra.mxu0 %v452
  %1176 = vmatpush.msra.mxu0 %v451
  %1177 = vmatpush.msra.mxu0 %v450
  %1178 = vmatpush.msra.mxu0 %v449
  %1179 = vmatpush.msra.mxu0 %v448
  %1180 = vmatmul.f32.gmra.mxu0 %v1135
  %v1181 = vpop.f32.mrf.mxu0
  %v1182 = vadd.f32 %v1159, %v1181
  %1183 = vmatmul.f32.gmra.mxu0 %v1136
  %v1184 = vpop.f32.mrf.mxu0
  %v1185 = vadd.f32 %v1162, %v1184
  %1186 = vdwg.mxu0
  %v1187 = vadd.f32 %v1182, %v467
  %v1188 = vadd.f32 %v1185, %v467
  %v1189 = vtanh.pop %v1187
  %v1190 = vtanh.pop %v1188
  %1191 = vst [vmem:[%s502] sm:$0xff] %v1189
  %1192 = vst [vmem:[%s502 + $0x8] sm:$0xff] %v1190
  %s1193 = scalar_lea.vmem %s6, 112
  %1194 = vst [vmem:[%s1193] sm:$0xff] %v1189
  %1195 = vst [vmem:[%s1193 + $0x8] sm:$0xff] %v1190
  %s1196 = scalar_lea.vmem [#allocation6], 128
  %v1197 = vld [vmem:[%s1196] sm:$0xff]
  %v1198 = vld [vmem:[%s1196 + $0x8] sm:$0xff]
  %v1199 = vld [vmem:[#allocation5] sm:$0xff]
  %v1200 = vld [vmem:[#allocation5 + $0x8] sm:$0xff]
  %1201 = vmatpush.msra.mxu0 %v430
  %1202 = vmatpush.msra.mxu0 %v429
  %1203 = vmatpush.msra.mxu0 %v428
  %1204 = vmatpush.msra.mxu0 %v427
  %1205 = vmatpush.msra.mxu0 %v426
  %1206 = vmatpush.msra.mxu0 %v425
  %1207 = vmatpush.msra.mxu0 %v424
  %1208 = vmatpush.msra.mxu0 %v423
  %1209 = vmatpush.msra.mxu0 %v422
  %1210 = vmatpush.msra.mxu0 %v421
  %1211 = vmatpush.msra.mxu0 %v420
  %1212 = vmatpush.msra.mxu0 %v419
  %1213 = vmatpush.msra.mxu0 %v418
  %1214 = vmatpush.msra.mxu0 %v417
  %1215 = vmatpush.msra.mxu0 %v416
  %1216 = vmatpush.msra.mxu0 %v415
  %1217 = vmatmul.f32.gmra.mxu0 %v1199
  %v1218 = vpop.f32.mrf.mxu0
  %v1219 = vadd.f32 0.0, %v1218
  %1220 = vmatmul.f32.gmra.mxu0 %v1200
  %v1221 = vpop.f32.mrf.mxu0
  %v1222 = vadd.f32 0.0, %v1221
  %1223 = vdwg.mxu0
  %v1224 = vadd.f32 %v1197, %v1219
  %v1225 = vadd.f32 %v1198, %v1222
  %v1226 = vtanh.pop %v1224
  %v1227 = vtanh.pop %v1225
  %1228 = vst [vmem:[#allocation5] sm:$0xff] %v1226
  %1229 = vst [vmem:[#allocation5 + $0x8] sm:$0xff] %v1227
  %v1230 = vld [vmem:[%s502] sm:$0xff]
  %v1231 = vld [vmem:[%s502 + $0x8] sm:$0xff]
  %1232 = vmatpush.msra.mxu0 %v447
  %1233 = vmatpush.msra.mxu0 %v446
  %1234 = vmatpush.msra.mxu0 %v445
  %1235 = vmatpush.msra.mxu0 %v444
  %1236 = vmatpush.msra.mxu0 %v443
  %1237 = vmatpush.msra.mxu0 %v442
  %1238 = vmatpush.msra.mxu0 %v441
  %1239 = vmatpush.msra.mxu0 %v440
  %1240 = vmatpush.msra.mxu0 %v439
  %1241 = vmatpush.msra.mxu0 %v438
  %1242 = vmatpush.msra.mxu0 %v437
  %1243 = vmatpush.msra.mxu0 %v436
  %1244 = vmatpush.msra.mxu0 %v435
  %1245 = vmatpush.msra.mxu0 %v434
  %1246 = vmatpush.msra.mxu0 %v433
  %1247 = vmatpush.msra.mxu0 %v432
  %1248 = vmatmul.f32.gmra.mxu0 %v1230
  %v1249 = vpop.f32.mrf.mxu0
  %v1250 = vadd.f32 0.0, %v1249
  %1251 = vmatmul.f32.gmra.mxu0 %v1231
  %v1252 = vpop.f32.mrf.mxu0
  %v1253 = vadd.f32 0.0, %v1252
  %1254 = vdwg.mxu0
  %1255 = vmatpush.msra.mxu0 %v463
  %1256 = vmatpush.msra.mxu0 %v462
  %1257 = vmatpush.msra.mxu0 %v461
  %1258 = vmatpush.msra.mxu0 %v460
  %1259 = vmatpush.msra.mxu0 %v459
  %1260 = vmatpush.msra.mxu0 %v458
  %1261 = vmatpush.msra.mxu0 %v457
  %1262 = vmatpush.msra.mxu0 %v456
  %1263 = vmatpush.msra.mxu0 %v455
  %1264 = vmatpush.msra.mxu0 %v454
  %1265 = vmatpush.msra.mxu0 %v453
  %1266 = vmatpush.msra.mxu0 %v452
  %1267 = vmatpush.msra.mxu0 %v451
  %1268 = vmatpush.msra.mxu0 %v450
  %1269 = vmatpush.msra.mxu0 %v449
  %1270 = vmatpush.msra.mxu0 %v448
  %1271 = vmatmul.f32.gmra.mxu0 %v1226
  %v1272 = vpop.f32.mrf.mxu0
  %v1273 = vadd.f32 %v1250, %v1272
  %1274 = vmatmul.f32.gmra.mxu0 %v1227
  %v1275 = vpop.f32.mrf.mxu0
  %v1276 = vadd.f32 %v1253, %v1275
  %1277 = vdwg.mxu0
  %v1278 = vadd.f32 %v1273, %v467
  %v1279 = vadd.f32 %v1276, %v467
  %v1280 = vtanh.pop %v1278
  %v1281 = vtanh.pop %v1279
  %1282 = vst [vmem:[%s502] sm:$0xff] %v1280
  %1283 = vst [vmem:[%s502 + $0x8] sm:$0xff] %v1281
  %s1284 = scalar_lea.vmem %s6, 128
  %1285 = vst [vmem:[%s1284] sm:$0xff] %v1280
  %1286 = vst [vmem:[%s1284 + $0x8] sm:$0xff] %v1281
  %s1287 = scalar_lea.vmem [#allocation6], 144
  %v1288 = vld [vmem:[%s1287] sm:$0xff]
  %v1289 = vld [vmem:[%s1287 + $0x8] sm:$0xff]
  %v1290 = vld [vmem:[#allocation5] sm:$0xff]
  %v1291 = vld [vmem:[#allocation5 + $0x8] sm:$0xff]
  %1292 = vmatpush.msra.mxu0 %v430
  %1293 = vmatpush.msra.mxu0 %v429
  %1294 = vmatpush.msra.mxu0 %v428
  %1295 = vmatpush.msra.mxu0 %v427
  %1296 = vmatpush.msra.mxu0 %v426
  %1297 = vmatpush.msra.mxu0 %v425
  %1298 = vmatpush.msra.mxu0 %v424
  %1299 = vmatpush.msra.mxu0 %v423
  %1300 = vmatpush.msra.mxu0 %v422
  %1301 = vmatpush.msra.mxu0 %v421
  %1302 = vmatpush.msra.mxu0 %v420
  %1303 = vmatpush.msra.mxu0 %v419
  %1304 = vmatpush.msra.mxu0 %v418
  %1305 = vmatpush.msra.mxu0 %v417
  %1306 = vmatpush.msra.mxu0 %v416
  %1307 = vmatpush.msra.mxu0 %v415
  %1308 = vmatmul.f32.gmra.mxu0 %v1290
  %v1309 = vpop.f32.mrf.mxu0
  %v1310 = vadd.f32 0.0, %v1309
  %1311 = vmatmul.f32.gmra.mxu0 %v1291
  %v1312 = vpop.f32.mrf.mxu0
  %v1313 = vadd.f32 0.0, %v1312
  %1314 = vdwg.mxu0
  %v1315 = vadd.f32 %v1288, %v1310
  %v1316 = vadd.f32 %v1289, %v1313
  %v1317 = vtanh.pop %v1315
  %v1318 = vtanh.pop %v1316
  %1319 = vst [vmem:[#allocation5] sm:$0xff] %v1317
  %1320 = vst [vmem:[#allocation5 + $0x8] sm:$0xff] %v1318
  %v1321 = vld [vmem:[%s502] sm:$0xff]
  %v1322 = vld [vmem:[%s502 + $0x8] sm:$0xff]
  %1323 = vmatpush.msra.mxu0 %v447
  %1324 = vmatpush.msra.mxu0 %v446
  %1325 = vmatpush.msra.mxu0 %v445
  %1326 = vmatpush.msra.mxu0 %v444
  %1327 = vmatpush.msra.mxu0 %v443
  %1328 = vmatpush.msra.mxu0 %v442
  %1329 = vmatpush.msra.mxu0 %v441
  %1330 = vmatpush.msra.mxu0 %v440
  %1331 = vmatpush.msra.mxu0 %v439
  %1332 = vmatpush.msra.mxu0 %v438
  %1333 = vmatpush.msra.mxu0 %v437
  %1334 = vmatpush.msra.mxu0 %v436
  %1335 = vmatpush.msra.mxu0 %v435
  %1336 = vmatpush.msra.mxu0 %v434
  %1337 = vmatpush.msra.mxu0 %v433
  %1338 = vmatpush.msra.mxu0 %v432
  %1339 = vmatmul.f32.gmra.mxu0 %v1321
  %v1340 = vpop.f32.mrf.mxu0
  %v1341 = vadd.f32 0.0, %v1340
  %1342 = vmatmul.f32.gmra.mxu0 %v1322
  %v1343 = vpop.f32.mrf.mxu0
  %v1344 = vadd.f32 0.0, %v1343
  %1345 = vdwg.mxu0
  %1346 = vmatpush.msra.mxu0 %v463
  %1347 = vmatpush.msra.mxu0 %v462
  %1348 = vmatpush.msra.mxu0 %v461
  %1349 = vmatpush.msra.mxu0 %v460
  %1350 = vmatpush.msra.mxu0 %v459
  %1351 = vmatpush.msra.mxu0 %v458
  %1352 = vmatpush.msra.mxu0 %v457
  %1353 = vmatpush.msra.mxu0 %v456
  %1354 = vmatpush.msra.mxu0 %v455
  %1355 = vmatpush.msra.mxu0 %v454
  %1356 = vmatpush.msra.mxu0 %v453
  %1357 = vmatpush.msra.mxu0 %v452
  %1358 = vmatpush.msra.mxu0 %v451
  %1359 = vmatpush.msra.mxu0 %v450
  %1360 = vmatpush.msra.mxu0 %v449
  %1361 = vmatpush.msra.mxu0 %v448
  %1362 = vmatmul.f32.gmra.mxu0 %v1317
  %v1363 = vpop.f32.mrf.mxu0
  %v1364 = vadd.f32 %v1341, %v1363
  %1365 = vmatmul.f32.gmra.mxu0 %v1318
  %v1366 = vpop.f32.mrf.mxu0
  %v1367 = vadd.f32 %v1344, %v1366
  %1368 = vdwg.mxu0
  %v1369 = vadd.f32 %v1364, %v467
  %v1370 = vadd.f32 %v1367, %v467
  %v1371 = vtanh.pop %v1369
  %v1372 = vtanh.pop %v1370
  %1373 = vst [vmem:[%s502] sm:$0xff] %v1371
  %1374 = vst [vmem:[%s502 + $0x8] sm:$0xff] %v1372
  %s1375 = scalar_lea.vmem %s6, 144
  %1376 = vst [vmem:[%s1375] sm:$0xff] %v1371
  %1377 = vst [vmem:[%s1375 + $0x8] sm:$0xff] %v1372
  %s1378 = scalar_lea.vmem [#allocation6], 160
  %v1379 = vld [vmem:[%s1378] sm:$0xff]
  %v1380 = vld [vmem:[%s1378 + $0x8] sm:$0xff]
  %v1381 = vld [vmem:[#allocation5] sm:$0xff]
  %v1382 = vld [vmem:[#allocation5 + $0x8] sm:$0xff]
  %1383 = vmatpush.msra.mxu0 %v430
  %1384 = vmatpush.msra.mxu0 %v429
  %1385 = vmatpush.msra.mxu0 %v428
  %1386 = vmatpush.msra.mxu0 %v427
  %1387 = vmatpush.msra.mxu0 %v426
  %1388 = vmatpush.msra.mxu0 %v425
  %1389 = vmatpush.msra.mxu0 %v424
  %1390 = vmatpush.msra.mxu0 %v423
  %1391 = vmatpush.msra.mxu0 %v422
  %1392 = vmatpush.msra.mxu0 %v421
  %1393 = vmatpush.msra.mxu0 %v420
  %1394 = vmatpush.msra.mxu0 %v419
  %1395 = vmatpush.msra.mxu0 %v418
  %1396 = vmatpush.msra.mxu0 %v417
  %1397 = vmatpush.msra.mxu0 %v416
  %1398 = vmatpush.msra.mxu0 %v415
  %1399 = vmatmul.f32.gmra.mxu0 %v1381
  %v1400 = vpop.f32.mrf.mxu0
  %v1401 = vadd.f32 0.0, %v1400
  %1402 = vmatmul.f32.gmra.mxu0 %v1382
  %v1403 = vpop.f32.mrf.mxu0
  %v1404 = vadd.f32 0.0, %v1403
  %1405 = vdwg.mxu0
  %v1406 = vadd.f32 %v1379, %v1401
  %v1407 = vadd.f32 %v1380, %v1404
  %v1408 = vtanh.pop %v1406
  %v1409 = vtanh.pop %v1407
  %1410 = vst [vmem:[#allocation5] sm:$0xff] %v1408
  %1411 = vst [vmem:[#allocation5 + $0x8] sm:$0xff] %v1409
  %v1412 = vld [vmem:[%s502] sm:$0xff]
  %v1413 = vld [vmem:[%s502 + $0x8] sm:$0xff]
  %1414 = vmatpush.msra.mxu0 %v447
  %1415 = vmatpush.msra.mxu0 %v446
  %1416 = vmatpush.msra.mxu0 %v445
  %1417 = vmatpush.msra.mxu0 %v444
  %1418 = vmatpush.msra.mxu0 %v443
  %1419 = vmatpush.msra.mxu0 %v442
  %1420 = vmatpush.msra.mxu0 %v441
  %1421 = vmatpush.msra.mxu0 %v440
  %1422 = vmatpush.msra.mxu0 %v439
  %1423 = vmatpush.msra.mxu0 %v438
  %1424 = vmatpush.msra.mxu0 %v437
  %1425 = vmatpush.msra.mxu0 %v436
  %1426 = vmatpush.msra.mxu0 %v435
  %1427 = vmatpush.msra.mxu0 %v434
  %1428 = vmatpush.msra.mxu0 %v433
  %1429 = vmatpush.msra.mxu0 %v432
  %1430 = vmatmul.f32.gmra.mxu0 %v1412
  %v1431 = vpop.f32.mrf.mxu0
  %v1432 = vadd.f32 0.0, %v1431
  %1433 = vmatmul.f32.gmra.mxu0 %v1413
  %v1434 = vpop.f32.mrf.mxu0
  %v1435 = vadd.f32 0.0, %v1434
  %1436 = vdwg.mxu0
  %1437 = vmatpush.msra.mxu0 %v463
  %1438 = vmatpush.msra.mxu0 %v462
  %1439 = vmatpush.msra.mxu0 %v461
  %1440 = vmatpush.msra.mxu0 %v460
  %1441 = vmatpush.msra.mxu0 %v459
  %1442 = vmatpush.msra.mxu0 %v458
  %1443 = vmatpush.msra.mxu0 %v457
  %1444 = vmatpush.msra.mxu0 %v456
  %1445 = vmatpush.msra.mxu0 %v455
  %1446 = vmatpush.msra.mxu0 %v454
  %1447 = vmatpush.msra.mxu0 %v453
  %1448 = vmatpush.msra.mxu0 %v452
  %1449 = vmatpush.msra.mxu0 %v451
  %1450 = vmatpush.msra.mxu0 %v450
  %1451 = vmatpush.msra.mxu0 %v449
  %1452 = vmatpush.msra.mxu0 %v448
  %1453 = vmatmul.f32.gmra.mxu0 %v1408
  %v1454 = vpop.f32.mrf.mxu0
  %v1455 = vadd.f32 %v1432, %v1454
  %1456 = vmatmul.f32.gmra.mxu0 %v1409
  %v1457 = vpop.f32.mrf.mxu0
  %v1458 = vadd.f32 %v1435, %v1457
  %1459 = vdwg.mxu0
  %v1460 = vadd.f32 %v1455, %v467
  %v1461 = vadd.f32 %v1458, %v467
  %v1462 = vtanh.pop %v1460
  %v1463 = vtanh.pop %v1461
  %1464 = vst [vmem:[%s502] sm:$0xff] %v1462
  %1465 = vst [vmem:[%s502 + $0x8] sm:$0xff] %v1463
  %s1466 = scalar_lea.vmem %s6, 160
  %1467 = vst [vmem:[%s1466] sm:$0xff] %v1462
  %1468 = vst [vmem:[%s1466 + $0x8] sm:$0xff] %v1463
  %s1469 = scalar_lea.vmem [#allocation6], 176
  %v1470 = vld [vmem:[%s1469] sm:$0xff]
  %v1471 = vld [vmem:[%s1469 + $0x8] sm:$0xff]
  %v1472 = vld [vmem:[#allocation5] sm:$0xff]
  %v1473 = vld [vmem:[#allocation5 + $0x8] sm:$0xff]
  %1474 = vmatpush.msra.mxu0 %v430
  %1475 = vmatpush.msra.mxu0 %v429
  %1476 = vmatpush.msra.mxu0 %v428
  %1477 = vmatpush.msra.mxu0 %v427
  %1478 = vmatpush.msra.mxu0 %v426
  %1479 = vmatpush.msra.mxu0 %v425
  %1480 = vmatpush.msra.mxu0 %v424
  %1481 = vmatpush.msra.mxu0 %v423
  %1482 = vmatpush.msra.mxu0 %v422
  %1483 = vmatpush.msra.mxu0 %v421
  %1484 = vmatpush.msra.mxu0 %v420
  %1485 = vmatpush.msra.mxu0 %v419
  %1486 = vmatpush.msra.mxu0 %v418
  %1487 = vmatpush.msra.mxu0 %v417
  %1488 = vmatpush.msra.mxu0 %v416
  %1489 = vmatpush.msra.mxu0 %v415
  %1490 = vmatmul.f32.gmra.mxu0 %v1472
  %v1491 = vpop.f32.mrf.mxu0
  %v1492 = vadd.f32 0.0, %v1491
  %1493 = vmatmul.f32.gmra.mxu0 %v1473
  %v1494 = vpop.f32.mrf.mxu0
  %v1495 = vadd.f32 0.0, %v1494
  %1496 = vdwg.mxu0
  %v1497 = vadd.f32 %v1470, %v1492
  %v1498 = vadd.f32 %v1471, %v1495
  %v1499 = vtanh.pop %v1497
  %v1500 = vtanh.pop %v1498
  %1501 = vst [vmem:[#allocation5] sm:$0xff] %v1499
  %1502 = vst [vmem:[#allocation5 + $0x8] sm:$0xff] %v1500
  %v1503 = vld [vmem:[%s502] sm:$0xff]
  %v1504 = vld [vmem:[%s502 + $0x8] sm:$0xff]
  %1505 = vmatpush.msra.mxu0 %v447
  %1506 = vmatpush.msra.mxu0 %v446
  %1507 = vmatpush.msra.mxu0 %v445
  %1508 = vmatpush.msra.mxu0 %v444
  %1509 = vmatpush.msra.mxu0 %v443
  %1510 = vmatpush.msra.mxu0 %v442
  %1511 = vmatpush.msra.mxu0 %v441
  %1512 = vmatpush.msra.mxu0 %v440
  %1513 = vmatpush.msra.mxu0 %v439
  %1514 = vmatpush.msra.mxu0 %v438
  %1515 = vmatpush.msra.mxu0 %v437
  %1516 = vmatpush.msra.mxu0 %v436
  %1517 = vmatpush.msra.mxu0 %v435
  %1518 = vmatpush.msra.mxu0 %v434
  %1519 = vmatpush.msra.mxu0 %v433
  %1520 = vmatpush.msra.mxu0 %v432
  %1521 = vmatmul.f32.gmra.mxu0 %v1503
  %v1522 = vpop.f32.mrf.mxu0
  %v1523 = vadd.f32 0.0, %v1522
  %1524 = vmatmul.f32.gmra.mxu0 %v1504
  %v1525 = vpop.f32.mrf.mxu0
  %v1526 = vadd.f32 0.0, %v1525
  %1527 = vdwg.mxu0
  %1528 = vmatpush.msra.mxu0 %v463
  %1529 = vmatpush.msra.mxu0 %v462
  %1530 = vmatpush.msra.mxu0 %v461
  %1531 = vmatpush.msra.mxu0 %v460
  %1532 = vmatpush.msra.mxu0 %v459
  %1533 = vmatpush.msra.mxu0 %v458
  %1534 = vmatpush.msra.mxu0 %v457
  %1535 = vmatpush.msra.mxu0 %v456
  %1536 = vmatpush.msra.mxu0 %v455
  %1537 = vmatpush.msra.mxu0 %v454
  %1538 = vmatpush.msra.mxu0 %v453
  %1539 = vmatpush.msra.mxu0 %v452
  %1540 = vmatpush.msra.mxu0 %v451
  %1541 = vmatpush.msra.mxu0 %v450
  %1542 = vmatpush.msra.mxu0 %v449
  %1543 = vmatpush.msra.mxu0 %v448
  %1544 = vmatmul.f32.gmra.mxu0 %v1499
  %v1545 = vpop.f32.mrf.mxu0
  %v1546 = vadd.f32 %v1523, %v1545
  %1547 = vmatmul.f32.gmra.mxu0 %v1500
  %v1548 = vpop.f32.mrf.mxu0
  %v1549 = vadd.f32 %v1526, %v1548
  %1550 = vdwg.mxu0
  %v1551 = vadd.f32 %v1546, %v467
  %v1552 = vadd.f32 %v1549, %v467
  %v1553 = vtanh.pop %v1551
  %v1554 = vtanh.pop %v1552
  %1555 = vst [vmem:[%s502] sm:$0xff] %v1553
  %1556 = vst [vmem:[%s502 + $0x8] sm:$0xff] %v1554
  %s1557 = scalar_lea.vmem %s6, 176
  %1558 = vst [vmem:[%s1557] sm:$0xff] %v1553
  %1559 = vst [vmem:[%s1557 + $0x8] sm:$0xff] %v1554
  %s1560 = scalar_lea.vmem [#allocation6], 192
  %v1561 = vld [vmem:[%s1560] sm:$0xff]
  %v1562 = vld [vmem:[%s1560 + $0x8] sm:$0xff]
  %v1563 = vld [vmem:[#allocation5] sm:$0xff]
  %v1564 = vld [vmem:[#allocation5 + $0x8] sm:$0xff]
  %1565 = vmatpush.msra.mxu0 %v430
  %1566 = vmatpush.msra.mxu0 %v429
  %1567 = vmatpush.msra.mxu0 %v428
  %1568 = vmatpush.msra.mxu0 %v427
  %1569 = vmatpush.msra.mxu0 %v426
  %1570 = vmatpush.msra.mxu0 %v425
  %1571 = vmatpush.msra.mxu0 %v424
  %1572 = vmatpush.msra.mxu0 %v423
  %1573 = vmatpush.msra.mxu0 %v422
  %1574 = vmatpush.msra.mxu0 %v421
  %1575 = vmatpush.msra.mxu0 %v420
  %1576 = vmatpush.msra.mxu0 %v419
  %1577 = vmatpush.msra.mxu0 %v418
  %1578 = vmatpush.msra.mxu0 %v417
  %1579 = vmatpush.msra.mxu0 %v416
  %1580 = vmatpush.msra.mxu0 %v415
  %1581 = vmatmul.f32.gmra.mxu0 %v1563
  %v1582 = vpop.f32.mrf.mxu0
  %v1583 = vadd.f32 0.0, %v1582
  %1584 = vmatmul.f32.gmra.mxu0 %v1564
  %v1585 = vpop.f32.mrf.mxu0
  %v1586 = vadd.f32 0.0, %v1585
  %1587 = vdwg.mxu0
  %v1588 = vadd.f32 %v1561, %v1583
  %v1589 = vadd.f32 %v1562, %v1586
  %v1590 = vtanh.pop %v1588
  %v1591 = vtanh.pop %v1589
  %1592 = vst [vmem:[#allocation5] sm:$0xff] %v1590
  %1593 = vst [vmem:[#allocation5 + $0x8] sm:$0xff] %v1591
  %v1594 = vld [vmem:[%s502] sm:$0xff]
  %v1595 = vld [vmem:[%s502 + $0x8] sm:$0xff]
  %1596 = vmatpush.msra.mxu0 %v447
  %1597 = vmatpush.msra.mxu0 %v446
  %1598 = vmatpush.msra.mxu0 %v445
  %1599 = vmatpush.msra.mxu0 %v444
  %1600 = vmatpush.msra.mxu0 %v443
  %1601 = vmatpush.msra.mxu0 %v442
  %1602 = vmatpush.msra.mxu0 %v441
  %1603 = vmatpush.msra.mxu0 %v440
  %1604 = vmatpush.msra.mxu0 %v439
  %1605 = vmatpush.msra.mxu0 %v438
  %1606 = vmatpush.msra.mxu0 %v437
  %1607 = vmatpush.msra.mxu0 %v436
  %1608 = vmatpush.msra.mxu0 %v435
  %1609 = vmatpush.msra.mxu0 %v434
  %1610 = vmatpush.msra.mxu0 %v433
  %1611 = vmatpush.msra.mxu0 %v432
  %1612 = vmatmul.f32.gmra.mxu0 %v1594
  %v1613 = vpop.f32.mrf.mxu0
  %v1614 = vadd.f32 0.0, %v1613
  %1615 = vmatmul.f32.gmra.mxu0 %v1595
  %v1616 = vpop.f32.mrf.mxu0
  %v1617 = vadd.f32 0.0, %v1616
  %1618 = vdwg.mxu0
  %1619 = vmatpush.msra.mxu0 %v463
  %1620 = vmatpush.msra.mxu0 %v462
  %1621 = vmatpush.msra.mxu0 %v461
  %1622 = vmatpush.msra.mxu0 %v460
  %1623 = vmatpush.msra.mxu0 %v459
  %1624 = vmatpush.msra.mxu0 %v458
  %1625 = vmatpush.msra.mxu0 %v457
  %1626 = vmatpush.msra.mxu0 %v456
  %1627 = vmatpush.msra.mxu0 %v455
  %1628 = vmatpush.msra.mxu0 %v454
  %1629 = vmatpush.msra.mxu0 %v453
  %1630 = vmatpush.msra.mxu0 %v452
  %1631 = vmatpush.msra.mxu0 %v451
  %1632 = vmatpush.msra.mxu0 %v450
  %1633 = vmatpush.msra.mxu0 %v449
  %1634 = vmatpush.msra.mxu0 %v448
  %1635 = vmatmul.f32.gmra.mxu0 %v1590
  %v1636 = vpop.f32.mrf.mxu0
  %v1637 = vadd.f32 %v1614, %v1636
  %1638 = vmatmul.f32.gmra.mxu0 %v1591
  %v1639 = vpop.f32.mrf.mxu0
  %v1640 = vadd.f32 %v1617, %v1639
  %1641 = vdwg.mxu0
  %v1642 = vadd.f32 %v1637, %v467
  %v1643 = vadd.f32 %v1640, %v467
  %v1644 = vtanh.pop %v1642
  %v1645 = vtanh.pop %v1643
  %1646 = vst [vmem:[%s502] sm:$0xff] %v1644
  %1647 = vst [vmem:[%s502 + $0x8] sm:$0xff] %v1645
  %s1648 = scalar_lea.vmem %s6, 192
  %1649 = vst [vmem:[%s1648] sm:$0xff] %v1644
  %1650 = vst [vmem:[%s1648 + $0x8] sm:$0xff] %v1645
  %s1651 = scalar_lea.vmem [#allocation6], 208
  %v1652 = vld [vmem:[%s1651] sm:$0xff]
  %v1653 = vld [vmem:[%s1651 + $0x8] sm:$0xff]
  %v1654 = vld [vmem:[#allocation5] sm:$0xff]
  %v1655 = vld [vmem:[#allocation5 + $0x8] sm:$0xff]
  %1656 = vmatpush.msra.mxu0 %v430
  %1657 = vmatpush.msra.mxu0 %v429
  %1658 = vmatpush.msra.mxu0 %v428
  %1659 = vmatpush.msra.mxu0 %v427
  %1660 = vmatpush.msra.mxu0 %v426
  %1661 = vmatpush.msra.mxu0 %v425
  %1662 = vmatpush.msra.mxu0 %v424
  %1663 = vmatpush.msra.mxu0 %v423
  %1664 = vmatpush.msra.mxu0 %v422
  %1665 = vmatpush.msra.mxu0 %v421
  %1666 = vmatpush.msra.mxu0 %v420
  %1667 = vmatpush.msra.mxu0 %v419
  %1668 = vmatpush.msra.mxu0 %v418
  %1669 = vmatpush.msra.mxu0 %v417
  %1670 = vmatpush.msra.mxu0 %v416
  %1671 = vmatpush.msra.mxu0 %v415
  %1672 = vmatmul.f32.gmra.mxu0 %v1654
  %v1673 = vpop.f32.mrf.mxu0
  %v1674 = vadd.f32 0.0, %v1673
  %1675 = vmatmul.f32.gmra.mxu0 %v1655
  %v1676 = vpop.f32.mrf.mxu0
  %v1677 = vadd.f32 0.0, %v1676
  %1678 = vdwg.mxu0
  %v1679 = vadd.f32 %v1652, %v1674
  %v1680 = vadd.f32 %v1653, %v1677
  %v1681 = vtanh.pop %v1679
  %v1682 = vtanh.pop %v1680
  %1683 = vst [vmem:[#allocation5] sm:$0xff] %v1681
  %1684 = vst [vmem:[#allocation5 + $0x8] sm:$0xff] %v1682
  %v1685 = vld [vmem:[%s502] sm:$0xff]
  %v1686 = vld [vmem:[%s502 + $0x8] sm:$0xff]
  %1687 = vmatpush.msra.mxu0 %v447
  %1688 = vmatpush.msra.mxu0 %v446
  %1689 = vmatpush.msra.mxu0 %v445
  %1690 = vmatpush.msra.mxu0 %v444
  %1691 = vmatpush.msra.mxu0 %v443
  %1692 = vmatpush.msra.mxu0 %v442
  %1693 = vmatpush.msra.mxu0 %v441
  %1694 = vmatpush.msra.mxu0 %v440
  %1695 = vmatpush.msra.mxu0 %v439
  %1696 = vmatpush.msra.mxu0 %v438
  %1697 = vmatpush.msra.mxu0 %v437
  %1698 = vmatpush.msra.mxu0 %v436
  %1699 = vmatpush.msra.mxu0 %v435
  %1700 = vmatpush.msra.mxu0 %v434
  %1701 = vmatpush.msra.mxu0 %v433
  %1702 = vmatpush.msra.mxu0 %v432
  %1703 = vmatmul.f32.gmra.mxu0 %v1685
  %v1704 = vpop.f32.mrf.mxu0
  %v1705 = vadd.f32 0.0, %v1704
  %1706 = vmatmul.f32.gmra.mxu0 %v1686
  %v1707 = vpop.f32.mrf.mxu0
  %v1708 = vadd.f32 0.0, %v1707
  %1709 = vdwg.mxu0
  %1710 = vmatpush.msra.mxu0 %v463
  %1711 = vmatpush.msra.mxu0 %v462
  %1712 = vmatpush.msra.mxu0 %v461
  %1713 = vmatpush.msra.mxu0 %v460
  %1714 = vmatpush.msra.mxu0 %v459
  %1715 = vmatpush.msra.mxu0 %v458
  %1716 = vmatpush.msra.mxu0 %v457
  %1717 = vmatpush.msra.mxu0 %v456
  %1718 = vmatpush.msra.mxu0 %v455
  %1719 = vmatpush.msra.mxu0 %v454
  %1720 = vmatpush.msra.mxu0 %v453
  %1721 = vmatpush.msra.mxu0 %v452
  %1722 = vmatpush.msra.mxu0 %v451
  %1723 = vmatpush.msra.mxu0 %v450
  %1724 = vmatpush.msra.mxu0 %v449
  %1725 = vmatpush.msra.mxu0 %v448
  %1726 = vmatmul.f32.gmra.mxu0 %v1681
  %v1727 = vpop.f32.mrf.mxu0
  %v1728 = vadd.f32 %v1705, %v1727
  %1729 = vmatmul.f32.gmra.mxu0 %v1682
  %v1730 = vpop.f32.mrf.mxu0
  %v1731 = vadd.f32 %v1708, %v1730
  %1732 = vdwg.mxu0
  %v1733 = vadd.f32 %v1728, %v467
  %v1734 = vadd.f32 %v1731, %v467
  %v1735 = vtanh.pop %v1733
  %v1736 = vtanh.pop %v1734
  %1737 = vst [vmem:[%s502] sm:$0xff] %v1735
  %1738 = vst [vmem:[%s502 + $0x8] sm:$0xff] %v1736
  %s1739 = scalar_lea.vmem %s6, 208
  %1740 = vst [vmem:[%s1739] sm:$0xff] %v1735
  %1741 = vst [vmem:[%s1739 + $0x8] sm:$0xff] %v1736
  %s1742 = scalar_lea.vmem [#allocation6], 224
  %v1743 = vld [vmem:[%s1742] sm:$0xff]
  %v1744 = vld [vmem:[%s1742 + $0x8] sm:$0xff]
  %v1745 = vld [vmem:[#allocation5] sm:$0xff]
  %v1746 = vld [vmem:[#allocation5 + $0x8] sm:$0xff]
  %1747 = vmatpush.msra.mxu0 %v430
  %1748 = vmatpush.msra.mxu0 %v429
  %1749 = vmatpush.msra.mxu0 %v428
  %1750 = vmatpush.msra.mxu0 %v427
  %1751 = vmatpush.msra.mxu0 %v426
  %1752 = vmatpush.msra.mxu0 %v425
  %1753 = vmatpush.msra.mxu0 %v424
  %1754 = vmatpush.msra.mxu0 %v423
  %1755 = vmatpush.msra.mxu0 %v422
  %1756 = vmatpush.msra.mxu0 %v421
  %1757 = vmatpush.msra.mxu0 %v420
  %1758 = vmatpush.msra.mxu0 %v419
  %1759 = vmatpush.msra.mxu0 %v418
  %1760 = vmatpush.msra.mxu0 %v417
  %1761 = vmatpush.msra.mxu0 %v416
  %1762 = vmatpush.msra.mxu0 %v415
  %1763 = vmatmul.f32.gmra.mxu0 %v1745
  %v1764 = vpop.f32.mrf.mxu0
  %v1765 = vadd.f32 0.0, %v1764
  %1766 = vmatmul.f32.gmra.mxu0 %v1746
  %v1767 = vpop.f32.mrf.mxu0
  %v1768 = vadd.f32 0.0, %v1767
  %1769 = vdwg.mxu0
  %v1770 = vadd.f32 %v1743, %v1765
  %v1771 = vadd.f32 %v1744, %v1768
  %v1772 = vtanh.pop %v1770
  %v1773 = vtanh.pop %v1771
  %1774 = vst [vmem:[#allocation5] sm:$0xff] %v1772
  %1775 = vst [vmem:[#allocation5 + $0x8] sm:$0xff] %v1773
  %v1776 = vld [vmem:[%s502] sm:$0xff]
  %v1777 = vld [vmem:[%s502 + $0x8] sm:$0xff]
  %1778 = vmatpush.msra.mxu0 %v447
  %1779 = vmatpush.msra.mxu0 %v446
  %1780 = vmatpush.msra.mxu0 %v445
  %1781 = vmatpush.msra.mxu0 %v444
  %1782 = vmatpush.msra.mxu0 %v443
  %1783 = vmatpush.msra.mxu0 %v442
  %1784 = vmatpush.msra.mxu0 %v441
  %1785 = vmatpush.msra.mxu0 %v440
  %1786 = vmatpush.msra.mxu0 %v439
  %1787 = vmatpush.msra.mxu0 %v438
  %1788 = vmatpush.msra.mxu0 %v437
  %1789 = vmatpush.msra.mxu0 %v436
  %1790 = vmatpush.msra.mxu0 %v435
  %1791 = vmatpush.msra.mxu0 %v434
  %1792 = vmatpush.msra.mxu0 %v433
  %1793 = vmatpush.msra.mxu0 %v432
  %1794 = vmatmul.f32.gmra.mxu0 %v1776
  %v1795 = vpop.f32.mrf.mxu0
  %v1796 = vadd.f32 0.0, %v1795
  %1797 = vmatmul.f32.gmra.mxu0 %v1777
  %v1798 = vpop.f32.mrf.mxu0
  %v1799 = vadd.f32 0.0, %v1798
  %1800 = vdwg.mxu0
  %1801 = vmatpush.msra.mxu0 %v463
  %1802 = vmatpush.msra.mxu0 %v462
  %1803 = vmatpush.msra.mxu0 %v461
  %1804 = vmatpush.msra.mxu0 %v460
  %1805 = vmatpush.msra.mxu0 %v459
  %1806 = vmatpush.msra.mxu0 %v458
  %1807 = vmatpush.msra.mxu0 %v457
  %1808 = vmatpush.msra.mxu0 %v456
  %1809 = vmatpush.msra.mxu0 %v455
  %1810 = vmatpush.msra.mxu0 %v454
  %1811 = vmatpush.msra.mxu0 %v453
  %1812 = vmatpush.msra.mxu0 %v452
  %1813 = vmatpush.msra.mxu0 %v451
  %1814 = vmatpush.msra.mxu0 %v450
  %1815 = vmatpush.msra.mxu0 %v449
  %1816 = vmatpush.msra.mxu0 %v448
  %1817 = vmatmul.f32.gmra.mxu0 %v1772
  %v1818 = vpop.f32.mrf.mxu0
  %v1819 = vadd.f32 %v1796, %v1818
  %1820 = vmatmul.f32.gmra.mxu0 %v1773
  %v1821 = vpop.f32.mrf.mxu0
  %v1822 = vadd.f32 %v1799, %v1821
  %1823 = vdwg.mxu0
  %v1824 = vadd.f32 %v1819, %v467
  %v1825 = vadd.f32 %v1822, %v467
  %v1826 = vtanh.pop %v1824
  %v1827 = vtanh.pop %v1825
  %1828 = vst [vmem:[%s502] sm:$0xff] %v1826
  %1829 = vst [vmem:[%s502 + $0x8] sm:$0xff] %v1827
  %s1830 = scalar_lea.vmem %s6, 224
  %1831 = vst [vmem:[%s1830] sm:$0xff] %v1826
  %1832 = vst [vmem:[%s1830 + $0x8] sm:$0xff] %v1827
  %s1833 = scalar_lea.vmem [#allocation6], 240
  %v1834 = vld [vmem:[%s1833] sm:$0xff]
  %v1835 = vld [vmem:[%s1833 + $0x8] sm:$0xff]
  %v1836 = vld [vmem:[#allocation5] sm:$0xff]
  %v1837 = vld [vmem:[#allocation5 + $0x8] sm:$0xff]
  %1838 = vmatpush.msra.mxu0 %v430
  %1839 = vmatpush.msra.mxu0 %v429
  %1840 = vmatpush.msra.mxu0 %v428
  %1841 = vmatpush.msra.mxu0 %v427
  %1842 = vmatpush.msra.mxu0 %v426
  %1843 = vmatpush.msra.mxu0 %v425
  %1844 = vmatpush.msra.mxu0 %v424
  %1845 = vmatpush.msra.mxu0 %v423
  %1846 = vmatpush.msra.mxu0 %v422
  %1847 = vmatpush.msra.mxu0 %v421
  %1848 = vmatpush.msra.mxu0 %v420
  %1849 = vmatpush.msra.mxu0 %v419
  %1850 = vmatpush.msra.mxu0 %v418
  %1851 = vmatpush.msra.mxu0 %v417
  %1852 = vmatpush.msra.mxu0 %v416
  %1853 = vmatpush.msra.mxu0 %v415
  %1854 = vmatmul.f32.gmra.mxu0 %v1836
  %v1855 = vpop.f32.mrf.mxu0
  %v1856 = vadd.f32 0.0, %v1855
  %1857 = vmatmul.f32.gmra.mxu0 %v1837
  %v1858 = vpop.f32.mrf.mxu0
  %v1859 = vadd.f32 0.0, %v1858
  %1860 = vdwg.mxu0
  %v1861 = vadd.f32 %v1834, %v1856
  %v1862 = vadd.f32 %v1835, %v1859
  %v1863 = vtanh.pop %v1861
  %v1864 = vtanh.pop %v1862
  %1865 = vst [vmem:[#allocation5] sm:$0xff] %v1863
  %1866 = vst [vmem:[#allocation5 + $0x8] sm:$0xff] %v1864
  %v1867 = vld [vmem:[%s502] sm:$0xff]
  %v1868 = vld [vmem:[%s502 + $0x8] sm:$0xff]
  %1869 = vmatpush.msra.mxu0 %v447
  %1870 = vmatpush.msra.mxu0 %v446
  %1871 = vmatpush.msra.mxu0 %v445
  %1872 = vmatpush.msra.mxu0 %v444
  %1873 = vmatpush.msra.mxu0 %v443
  %1874 = vmatpush.msra.mxu0 %v442
  %1875 = vmatpush.msra.mxu0 %v441
  %1876 = vmatpush.msra.mxu0 %v440
  %1877 = vmatpush.msra.mxu0 %v439
  %1878 = vmatpush.msra.mxu0 %v438
  %1879 = vmatpush.msra.mxu0 %v437
  %1880 = vmatpush.msra.mxu0 %v436
  %1881 = vmatpush.msra.mxu0 %v435
  %1882 = vmatpush.msra.mxu0 %v434
  %1883 = vmatpush.msra.mxu0 %v433
  %1884 = vmatpush.msra.mxu0 %v432
  %1885 = vmatmul.f32.gmra.mxu0 %v1867
  %v1886 = vpop.f32.mrf.mxu0
  %v1887 = vadd.f32 0.0, %v1886
  %1888 = vmatmul.f32.gmra.mxu0 %v1868
  %v1889 = vpop.f32.mrf.mxu0
  %v1890 = vadd.f32 0.0, %v1889
  %1891 = vdwg.mxu0
  %1892 = vmatpush.msra.mxu0 %v463
  %1893 = vmatpush.msra.mxu0 %v462
  %1894 = vmatpush.msra.mxu0 %v461
  %1895 = vmatpush.msra.mxu0 %v460
  %1896 = vmatpush.msra.mxu0 %v459
  %1897 = vmatpush.msra.mxu0 %v458
  %1898 = vmatpush.msra.mxu0 %v457
  %1899 = vmatpush.msra.mxu0 %v456
  %1900 = vmatpush.msra.mxu0 %v455
  %1901 = vmatpush.msra.mxu0 %v454
  %1902 = vmatpush.msra.mxu0 %v453
  %1903 = vmatpush.msra.mxu0 %v452
  %1904 = vmatpush.msra.mxu0 %v451
  %1905 = vmatpush.msra.mxu0 %v450
  %1906 = vmatpush.msra.mxu0 %v449
  %1907 = vmatpush.msra.mxu0 %v448
  %1908 = vmatmul.f32.gmra.mxu0 %v1863
  %v1909 = vpop.f32.mrf.mxu0
  %v1910 = vadd.f32 %v1887, %v1909
  %1911 = vmatmul.f32.gmra.mxu0 %v1864
  %v1912 = vpop.f32.mrf.mxu0
  %v1913 = vadd.f32 %v1890, %v1912
  %1914 = vdwg.mxu0
  %v1915 = vadd.f32 %v1910, %v467
  %v1916 = vadd.f32 %v1913, %v467
  %v1917 = vtanh.pop %v1915
  %v1918 = vtanh.pop %v1916
  %1919 = vst [vmem:[%s502] sm:$0xff] %v1917
  %1920 = vst [vmem:[%s502 + $0x8] sm:$0xff] %v1918
  %s1921 = scalar_lea.vmem %s6, 240
  %1922 = vst [vmem:[%s1921] sm:$0xff] %v1917
  %1923 = vst [vmem:[%s1921 + $0x8] sm:$0xff] %v1918
  // Predicated region
  $region75: #{rnn_forward.2} parent=0 // pred_check
    %p1924 = pneg %p19
  $region76: #{rnn_forward.2} parent=0 // pred_check_branch
    %1926 = sbr.rel (%p1924) target = $region78
  $region77: #{rnn_forward.2} parent=0 // pred_region
    %v1927 = vld [vmem:[#allocation5] sm:$0xff]
    %v1928 = vld [vmem:[#allocation5 + $0x8] sm:$0xff]
    %v1929 = vld [vmem:[#allocation5 + $0x10] sm:$0xff]
    %v1930 = vld [vmem:[#allocation5 + $0x18] sm:$0xff]
    %1931 = vst [vmem:[%s7] sm:$0xff] %v1927
    %1932 = vst [vmem:[%s7 + $0x8] sm:$0xff] %v1928
    %1933 = vst [vmem:[%s7 + $0x10] sm:$0xff] %v1929
    %1934 = vst [vmem:[%s7 + $0x18] sm:$0xff] %v1930
  $region78: #{rnn_forward.2} parent=0 // pred_fallthru
    _
  // Predicated region
  $region79: #{rnn_forward.2} parent=0 // pred_check
    _
  $region80: #{rnn_forward.2} parent=0 // pred_check_branch
    %1936 = sbr.rel (0) target = $region82
  $region81: #{rnn_forward.2} parent=0 // pred_region
    _
  $region82: #{rnn_forward.2} parent=0 // pred_fallthru
    _
  // Predicated region
  $region83: #{rnn_forward.2} parent=0 // pred_check
    _
  $region84: #{rnn_forward.2} parent=0 // pred_check_branch
    %1938 = sbr.rel (0) target = $region86
  $region85: #{rnn_forward.2} parent=0 // pred_region
    _
  $region86: #{rnn_forward.2} parent=0 // pred_fallthru
    _
  // Predicated region
  $region87: #{rnn_forward.2} parent=0 // pred_check
    _
  $region88: #{rnn_forward.2} parent=0 // pred_check_branch
    %1940 = sbr.rel (0) target = $region90
  $region89: #{rnn_forward.2} parent=0 // pred_region
    _
  $region90: #{rnn_forward.2} parent=0 // pred_fallthru
    _
  // Predicated region
  $region91: #{rnn_forward.2} parent=0 // pred_check
    _
  $region92: #{rnn_forward.2} parent=0 // pred_check_branch
    %1942 = sbr.rel (0) target = $region94
  $region93: #{rnn_forward.2} parent=0 // pred_region
    _
  $region94: #{rnn_forward.2} parent=0 // pred_fallthru
    _
  %1943 = vsyncmov [#allocation7]
  %s1944 = vpop.sfrf %1943
  %p1945 = scmp.eq.s32.totalorder %s1944, 0
  %p1946 = pneg %p1945
  %1948 = shalt.err (%p1946)

</llo_original>
